<compile_context>
chip_gen: v5e
topology: v5e:2x2
jax: 0.10.0
libtpu: 0.0.40
codegen_flags: <defaults>
</compile_context>

<pallas_src>
import functools

import jax
import jax.numpy as jnp
from jax.experimental import pallas as pl
from jax.experimental.pallas import tpu as pltpu


# ----------------------------------------------------------------------------
# Fused bidirectional-LSTM layer kernel.
# grid = (2,): axis 0 selects direction (0 = forward, 1 = backward).
# The (T, B, 2H) output block is resident across the direction axis; each
# direction writes its own H-wide column slab.  The final layer additionally
# computes the decoder logits in an epilogue on the last grid step.
# ----------------------------------------------------------------------------
def _bilstm_layer_kernel(*refs, hidden, seq_len, with_decoder):
    H, T = hidden, seq_len
    if with_decoder:
        (x_ref, wx_ref, wh_ref, b_ref, dw_ref, db_ref,
         out_ref, logits_ref) = refs
    else:
        x_ref, wx_ref, wh_ref, b_ref, out_ref = refs

    d = pl.program_id(0)          # 0 = forward, 1 = backward
    B = x_ref.shape[1]

    # Fused-gate weights for this direction (lane dim = 4H = 128).
    wx = wx_ref[0]                # (D, 4H)
    wh = wh_ref[0]                # (H, 4H)
    bias = b_ref[0]               # (1, 4H)

    def run_direction(reverse, col):
        def step(t, carry):
            h, c = carry
            t_idx = (T - 1 - t) if reverse else t
            x_t = x_ref[t_idx]                                   # (B, D)
            gates = (jnp.dot(x_t, wx, preferred_element_type=jnp.float32)
                     + jnp.dot(h, wh, preferred_element_type=jnp.float32)
                     + bias)                                     # (B, 4H)
            # PyTorch gate order: input, forget, cell(g), output.
            i = jax.nn.sigmoid(gates[:, 0 * H:1 * H])
            f = jax.nn.sigmoid(gates[:, 1 * H:2 * H])
            g = jnp.tanh(gates[:, 2 * H:3 * H])
            o = jax.nn.sigmoid(gates[:, 3 * H:4 * H])
            c_new = f * c + i * g
            h_new = o * jnp.tanh(c_new)
            out_ref[pl.ds(t_idx, 1), :, col:col + H] = (
                h_new[None].astype(out_ref.dtype))
            return h_new, c_new

        zeros = jnp.zeros((B, H), jnp.float32)
        jax.lax.fori_loop(0, T, step, (zeros, zeros), unroll=True)

    @pl.when(d == 0)
    def _forward():
        run_direction(reverse=False, col=0)

    @pl.when(d == 1)
    def _backward():
        run_direction(reverse=True, col=H)

    if with_decoder:
        # Decoder fused into the last grid step; the resident output block
        # already holds both direction slabs at this point.
        @pl.when(d == pl.num_programs(0) - 1)
        def _decode():
            enc = jnp.concatenate([out_ref[0], out_ref[T - 1]], axis=-1)  # (B, 4H)
            logits_ref[...] = (
                jnp.dot(enc, dw_ref[...], preferred_element_type=jnp.float32)
                + db_ref[...]).astype(logits_ref.dtype)


def run_bilstm_layer(x, wx, wh, b, dec_w=None, dec_b=None):
    """One bidirectional LSTM layer (both directions in a single pallas_call).

    x:  (T, B, D) f32, time-major; B must be a multiple of 8.
    wx: (2, D, 4H); wh: (2, H, 4H); b: (2, 1, 4H)   [dir 0 = fwd, dir 1 = bwd]
    dec_w / dec_b: optional (4H, C) / (1, C); if given, the decoder is fused
    into the epilogue and the call also returns (B, C) logits.
    """
    T, B, D = x.shape
    H = wh.shape[1]
    with_decoder = dec_w is not None

    kernel = functools.partial(_bilstm_layer_kernel, hidden=H, seq_len=T,
                               with_decoder=with_decoder)

    in_specs = [
        pl.BlockSpec((T, B, D), lambda d: (0, 0, 0)),        # x (resident)
        pl.BlockSpec((1, D, 4 * H), lambda d: (d, 0, 0)),    # per-direction wx
        pl.BlockSpec((1, H, 4 * H), lambda d: (d, 0, 0)),    # per-direction wh
        pl.BlockSpec((1, 1, 4 * H), lambda d: (d, 0, 0)),    # per-direction bias
    ]
    out_shape = [jax.ShapeDtypeStruct((T, B, 2 * H), jnp.float32)]
    out_specs = [pl.BlockSpec((T, B, 2 * H), lambda d: (0, 0, 0))]  # resident
    args = [x, wx, wh, b]

    if with_decoder:
        C = dec_w.shape[1]
        in_specs += [pl.BlockSpec((4 * H, C), lambda d: (0, 0)),
                     pl.BlockSpec((1, C), lambda d: (0, 0))]
        out_shape += [jax.ShapeDtypeStruct((B, C), jnp.float32)]
        out_specs += [pl.BlockSpec((B, C), lambda d: (0, 0))]
        args += [dec_w, dec_b]

    outs = pl.pallas_call(
        kernel,
        out_shape=tuple(out_shape),
        grid_spec=pltpu.PrefetchScalarGridSpec(
            num_scalar_prefetch=0,
            grid=(2,),                           # direction axis (fwd, bwd)
            in_specs=in_specs,
            out_specs=tuple(out_specs),
        ),
        # The shared (T, B, 2H) output block is resident across the direction
        # axis, so this axis must stay sequential.
        compiler_params=pltpu.CompilerParams(
            dimension_semantics=("arbitrary",)),
    )(*args)

    if with_decoder:
        return outs[0], outs[1]
    return outs[0]


# ----------------------------------------------------------------------------
# Parameter construction (deterministic, PyTorch-default-like uniform init).
# Per-gate weights are fused along the last dim in PyTorch gate order i,f,g,o;
# the stored bias is b_ih + b_hh.
# ----------------------------------------------------------------------------
def init_params(key, vocab_size, embed_size, num_hiddens, num_layers):
    H = num_hiddens
    params = {}
    key, k_emb = jax.random.split(key)
    params["embedding"] = jax.random.normal(
        k_emb, (vocab_size, embed_size), jnp.float32)

    bound = 1.0 / float(H) ** 0.5
    lstm = []
    for layer in range(num_layers):
        in_dim = embed_size if layer == 0 else 2 * H
        key, k1, k2, k3, k4 = jax.random.split(key, 5)
        wx = jax.random.uniform(k1, (2, in_dim, 4 * H), jnp.float32, -bound, bound)
        wh = jax.random.uniform(k2, (2, H, 4 * H), jnp.float32, -bound, bound)
        b_ih = jax.random.uniform(k3, (2, 1, 4 * H), jnp.float32, -bound, bound)
        b_hh = jax.random.uniform(k4, (2, 1, 4 * H), jnp.float32, -bound, bound)
        lstm.append({"wx": wx, "wh": wh, "b": b_ih + b_hh})
    params["lstm"] = lstm

    key, kw, kb = jax.random.split(key, 3)
    dec_bound = 1.0 / float(4 * H) ** 0.5
    params["dec_w"] = jax.random.uniform(
        kw, (4 * H, 2), jnp.float32, -dec_bound, dec_bound)
    params["dec_b"] = jax.random.uniform(
        kb, (1, 2), jnp.float32, -dec_bound, dec_bound)
    return params


# ----------------------------------------------------------------------------
# Forward pass (embedding gather kept as plain-JAX glue, LSTM+decoder in Pallas)
# ----------------------------------------------------------------------------
@jax.jit
def birnn_forward(params, inputs):
    # inputs: (B, T) int32
    emb = params["embedding"][inputs.T]          # (T, B, E), time-major
    T, B, _ = emb.shape
    B_pad = -(-B // 8) * 8                       # pad batch to f32-sublane multiple
    if B_pad != B:
        emb = jnp.pad(emb, ((0, 0), (0, B_pad - B), (0, 0)))

    x = emb
    num_layers = len(params["lstm"])
    logits = None
    for layer, p in enumerate(params["lstm"]):
        if layer == num_layers - 1:
            x, logits = run_bilstm_layer(x, p["wx"], p["wh"], p["b"],
                                         params["dec_w"], params["dec_b"])
        else:
            x = run_bilstm_layer(x, p["wx"], p["wh"], p["b"])
    return logits[:B]                            # (B, 2)


# ----------------------------------------------------------------------------
# Pure-JAX reference of the same forward pass (correctness check only).
# ----------------------------------------------------------------------------
def birnn_reference(params, inputs):
    hp = jax.lax.Precision.HIGHEST
    x = params["embedding"][inputs.T]            # (T, B, E)
    for p in params["lstm"]:
        H = p["wh"].shape[1]
        T, B, _ = x.shape
        outs = []
        for drc, reverse in ((0, False), (1, True)):
            wx, wh, bias = p["wx"][drc], p["wh"][drc], p["b"][drc]
            h = jnp.zeros((B, H), jnp.float32)
            c = jnp.zeros((B, H), jnp.float32)
            hs = [None] * T
            order = range(T - 1, -1, -1) if reverse else range(T)
            for t in order:
                g = (jnp.dot(x[t], wx, precision=hp)
                     + jnp.dot(h, wh, precision=hp) + bias)
                i = jax.nn.sigmoid(g[:, 0 * H:1 * H])
                f = jax.nn.sigmoid(g[:, 1 * H:2 * H])
                gg = jnp.tanh(g[:, 2 * H:3 * H])
                o = jax.nn.sigmoid(g[:, 3 * H:4 * H])
                c = f * c + i * gg
                h = o * jnp.tanh(c)
                hs[t] = h
            outs.append(jnp.stack(hs))
        x = jnp.concatenate(outs, axis=-1)
    enc = jnp.concatenate([x[0], x[-1]], axis=-1)
    return jnp.dot(enc, params["dec_w"], precision=hp) + params["dec_b"]


if __name__ == "__main__":
    vocab_size = 50
    embed_size = 32
    num_hiddens = 32
    num_layers = 2
    batch = 2
    seq_len = 8

    key = jax.random.PRNGKey(0)
    key, k_in = jax.random.split(key)
    inputs = jax.random.randint(k_in, (batch, seq_len), 0, vocab_size,
                                dtype=jnp.int32)
    params = init_params(key, vocab_size, embed_size, num_hiddens, num_layers)

    out = jax.block_until_ready(birnn_forward(params, inputs))
    assert out.shape == (batch, 2), out.shape

    ref = jax.block_until_ready(birnn_reference(params, inputs))
    assert bool(jnp.allclose(out, ref, rtol=2e-2, atol=2e-2)), (out, ref)

    print("KERNEL_OK")
</pallas_src>

<mosaic_0001>
module attributes {stable_mosaic.version = 11 : i64} {
  func.func @_bilstm_layer_kernel(%arg0: i32, %arg1: memref<8x8x64xf32, #tpu.memory_space<vmem>>, %arg2: memref<1x64x128xf32, #tpu.memory_space<vmem>>, %arg3: memref<1x32x128xf32, #tpu.memory_space<vmem>>, %arg4: memref<1x1x128xf32, #tpu.memory_space<vmem>>, %arg5: memref<128x2xf32, #tpu.memory_space<vmem>>, %arg6: memref<1x2xf32, #tpu.memory_space<vmem>>, %arg7: memref<8x8x64xf32, #tpu.memory_space<vmem>>, %arg8: memref<8x2xf32, #tpu.memory_space<vmem>>) attributes {dimension_semantics = [#tpu.dimension_semantics<arbitrary>], iteration_bounds = array<i64: 2>, scalar_prefetch = 0 : i64, scratch_operands = 0 : i64, tpu.core_type = #tpu.core_type<tc>, window_params = [{pipeline_mode = #tpu.pipeline_mode<synchronous>, transform_indices = @transform_0, window_bounds = array<i64: 8, 8, 64>}, {transform_indices = @transform_1, window_bounds = array<i64: 1, 64, 128>}, {transform_indices = @transform_2, window_bounds = array<i64: 1, 32, 128>}, {transform_indices = @transform_3, window_bounds = array<i64: 1, 1, 128>}, {pipeline_mode = #tpu.pipeline_mode<synchronous>, transform_indices = @transform_4, window_bounds = array<i64: 128, 2>}, {pipeline_mode = #tpu.pipeline_mode<synchronous>, transform_indices = @transform_5, window_bounds = array<i64: 1, 2>}, {pipeline_mode = #tpu.pipeline_mode<synchronous>, transform_indices = @transform_6, window_bounds = array<i64: 8, 8, 64>}, {pipeline_mode = #tpu.pipeline_mode<synchronous>, transform_indices = @transform_7, window_bounds = array<i64: 8, 2>}]} {
    %c0 = arith.constant 0 : index
    %c0_0 = arith.constant 0 : index
    %c0_1 = arith.constant 0 : index
    %0 = vector.load %arg2[%c0, %c0_0, %c0_1] : memref<1x64x128xf32, #tpu.memory_space<vmem>>, vector<1x64x128xf32>
    %1 = vector.shape_cast %0 : vector<1x64x128xf32> to vector<64x128xf32>
    %c0_2 = arith.constant 0 : index
    %c0_3 = arith.constant 0 : index
    %c0_4 = arith.constant 0 : index
    %2 = vector.load %arg3[%c0_2, %c0_3, %c0_4] : memref<1x32x128xf32, #tpu.memory_space<vmem>>, vector<1x32x128xf32>
    %3 = vector.shape_cast %2 : vector<1x32x128xf32> to vector<32x128xf32>
    %c0_5 = arith.constant 0 : index
    %c0_6 = arith.constant 0 : index
    %c0_7 = arith.constant 0 : index
    %4 = vector.load %arg4[%c0_5, %c0_6, %c0_7] : memref<1x1x128xf32, #tpu.memory_space<vmem>>, vector<1x1x128xf32>
    %5 = vector.shape_cast %4 : vector<1x1x128xf32> to vector<1x128xf32>
    %c0_i32 = arith.constant 0 : i32
    %6 = arith.cmpi eq, %arg0, %c0_i32 : i32
    %7 = arith.extui %6 : i1 to i32
    %c0_i32_8 = arith.constant 0 : i32
    %8 = arith.cmpi ne, %7, %c0_i32_8 : i32
    scf.if %8 {
      %cst = arith.constant 0.000000e+00 : f32
      %15 = vector.broadcast %cst : f32 to vector<8x32xf32>
      %c0_i32_12 = arith.constant 0 : i32
      %16 = arith.index_cast %c0_i32_12 : i32 to index
      %c0_13 = arith.constant 0 : index
      %c0_14 = arith.constant 0 : index
      %17 = vector.load %arg1[%16, %c0_13, %c0_14] : memref<8x8x64xf32, #tpu.memory_space<vmem>>, vector<1x8x64xf32>
      %18 = vector.shape_cast %17 : vector<1x8x64xf32> to vector<8x64xf32>
      %cst_15 = arith.constant dense<0.000000e+00> : vector<8x128xf32>
      %19 = tpu.matmul %18, %1, %cst_15 {dimension_numbers = #tpu.dot_dimension_numbers<[1], [0], [0], [1], [0, 0, 1, 1], [], []>} : vector<8x64xf32>, vector<64x128xf32>, vector<8x128xf32> -> vector<8x128xf32>
      %cst_16 = arith.constant dense<0.000000e+00> : vector<8x128xf32>
      %20 = tpu.matmul %15, %3, %cst_16 {dimension_numbers = #tpu.dot_dimension_numbers<[1], [0], [0], [1], [0, 0, 1, 1], [], []>} : vector<8x32xf32>, vector<32x128xf32>, vector<8x128xf32> -> vector<8x128xf32>
      %21 = arith.addf %19, %20 : vector<8x128xf32>
      %22 = vector.broadcast %5 : vector<1x128xf32> to vector<8x128xf32>
      %23 = arith.addf %21, %22 : vector<8x128xf32>
      %24 = vector.extract_strided_slice %23 {offsets = [0, 0], sizes = [8, 32], strides = [1, 1]} : vector<8x128xf32> to vector<8x32xf32>
      %25 = arith.negf %24 : vector<8x32xf32>
      %26 = math.exp %25 : vector<8x32xf32>
      %cst_17 = arith.constant 1.000000e+00 : f32
      %27 = vector.broadcast %cst_17 : f32 to vector<8x32xf32>
      %28 = arith.addf %27, %26 : vector<8x32xf32>
      %29 = arith.divf %27, %28 : vector<8x32xf32>
      %30 = vector.extract_strided_slice %23 {offsets = [0, 32], sizes = [8, 32], strides = [1, 1]} : vector<8x128xf32> to vector<8x32xf32>
      %31 = arith.negf %30 : vector<8x32xf32>
      %32 = math.exp %31 : vector<8x32xf32>
      %cst_18 = arith.constant 1.000000e+00 : f32
      %33 = vector.broadcast %cst_18 : f32 to vector<8x32xf32>
      %34 = arith.addf %33, %32 : vector<8x32xf32>
      %35 = arith.divf %33, %34 : vector<8x32xf32>
      %36 = vector.extract_strided_slice %23 {offsets = [0, 64], sizes = [8, 32], strides = [1, 1]} : vector<8x128xf32> to vector<8x32xf32>
      %37 = math.tanh %36 : vector<8x32xf32>
      %38 = vector.extract_strided_slice %23 {offsets = [0, 96], sizes = [8, 32], strides = [1, 1]} : vector<8x128xf32> to vector<8x32xf32>
      %39 = arith.negf %38 : vector<8x32xf32>
      %40 = math.exp %39 : vector<8x32xf32>
      %cst_19 = arith.constant 1.000000e+00 : f32
      %41 = vector.broadcast %cst_19 : f32 to vector<8x32xf32>
      %42 = arith.addf %41, %40 : vector<8x32xf32>
      %43 = arith.divf %41, %42 : vector<8x32xf32>
      %44 = arith.mulf %35, %15 : vector<8x32xf32>
      %45 = arith.mulf %29, %37 : vector<8x32xf32>
      %46 = arith.addf %44, %45 : vector<8x32xf32>
      %47 = math.tanh %46 : vector<8x32xf32>
      %48 = arith.mulf %43, %47 : vector<8x32xf32>
      %49 = vector.shape_cast %48 : vector<8x32xf32> to vector<1x8x32xf32>
      %50 = arith.index_cast %c0_i32_12 : i32 to index
      %c0_20 = arith.constant 0 : index
      %c0_21 = arith.constant 0 : index
      %51 = vector.load %arg7[%50, %c0_20, %c0_21] : memref<8x8x64xf32, #tpu.memory_space<vmem>>, vector<1x8x32xf32>
      tpu.vector_store %arg7[%50, %c0_20, %c0_21], %49 {strides = array<i32>} : memref<8x8x64xf32, #tpu.memory_space<vmem>>, vector<1x8x32xf32>,
      %c1_i32_22 = arith.constant 1 : i32
      %52 = arith.index_cast %c1_i32_22 : i32 to index
      %c0_23 = arith.constant 0 : index
      %c0_24 = arith.constant 0 : index
      %53 = vector.load %arg1[%52, %c0_23, %c0_24] : memref<8x8x64xf32, #tpu.memory_space<vmem>>, vector<1x8x64xf32>
      %54 = vector.shape_cast %53 : vector<1x8x64xf32> to vector<8x64xf32>
      %cst_25 = arith.constant dense<0.000000e+00> : vector<8x128xf32>
      %55 = tpu.matmul %54, %1, %cst_25 {dimension_numbers = #tpu.dot_dimension_numbers<[1], [0], [0], [1], [0, 0, 1, 1], [], []>} : vector<8x64xf32>, vector<64x128xf32>, vector<8x128xf32> -> vector<8x128xf32>
      %cst_26 = arith.constant dense<0.000000e+00> : vector<8x128xf32>
      %56 = tpu.matmul %48, %3, %cst_26 {dimension_numbers = #tpu.dot_dimension_numbers<[1], [0], [0], [1], [0, 0, 1, 1], [], []>} : vector<8x32xf32>, vector<32x128xf32>, vector<8x128xf32> -> vector<8x128xf32>
      %57 = arith.addf %55, %56 : vector<8x128xf32>
      %58 = vector.broadcast %5 : vector<1x128xf32> to vector<8x128xf32>
      %59 = arith.addf %57, %58 : vector<8x128xf32>
      %60 = vector.extract_strided_slice %59 {offsets = [0, 0], sizes = [8, 32], strides = [1, 1]} : vector<8x128xf32> to vector<8x32xf32>
      %61 = arith.negf %60 : vector<8x32xf32>
      %62 = math.exp %61 : vector<8x32xf32>
      %cst_27 = arith.constant 1.000000e+00 : f32
      %63 = vector.broadcast %cst_27 : f32 to vector<8x32xf32>
      %64 = arith.addf %63, %62 : vector<8x32xf32>
      %65 = arith.divf %63, %64 : vector<8x32xf32>
      %66 = vector.extract_strided_slice %59 {offsets = [0, 32], sizes = [8, 32], strides = [1, 1]} : vector<8x128xf32> to vector<8x32xf32>
      %67 = arith.negf %66 : vector<8x32xf32>
      %68 = math.exp %67 : vector<8x32xf32>
      %cst_28 = arith.constant 1.000000e+00 : f32
      %69 = vector.broadcast %cst_28 : f32 to vector<8x32xf32>
      %70 = arith.addf %69, %68 : vector<8x32xf32>
      %71 = arith.divf %69, %70 : vector<8x32xf32>
      %72 = vector.extract_strided_slice %59 {offsets = [0, 64], sizes = [8, 32], strides = [1, 1]} : vector<8x128xf32> to vector<8x32xf32>
      %73 = math.tanh %72 : vector<8x32xf32>
      %74 = vector.extract_strided_slice %59 {offsets = [0, 96], sizes = [8, 32], strides = [1, 1]} : vector<8x128xf32> to vector<8x32xf32>
      %75 = arith.negf %74 : vector<8x32xf32>
      %76 = math.exp %75 : vector<8x32xf32>
      %cst_29 = arith.constant 1.000000e+00 : f32
      %77 = vector.broadcast %cst_29 : f32 to vector<8x32xf32>
      %78 = arith.addf %77, %76 : vector<8x32xf32>
      %79 = arith.divf %77, %78 : vector<8x32xf32>
      %80 = arith.mulf %71, %46 : vector<8x32xf32>
      %81 = arith.mulf %65, %73 : vector<8x32xf32>
      %82 = arith.addf %80, %81 : vector<8x32xf32>
      %83 = math.tanh %82 : vector<8x32xf32>
      %84 = arith.mulf %79, %83 : vector<8x32xf32>
      %85 = vector.shape_cast %84 : vector<8x32xf32> to vector<1x8x32xf32>
      %86 = arith.index_cast %c1_i32_22 : i32 to index
      %c0_30 = arith.constant 0 : index
      %c0_31 = arith.constant 0 : index
      %87 = vector.load %arg7[%86, %c0_30, %c0_31] : memref<8x8x64xf32, #tpu.memory_space<vmem>>, vector<1x8x32xf32>
      tpu.vector_store %arg7[%86, %c0_30, %c0_31], %85 {strides = array<i32>} : memref<8x8x64xf32, #tpu.memory_space<vmem>>, vector<1x8x32xf32>,
      %c2_i32 = arith.constant 2 : i32
      %88 = arith.index_cast %c2_i32 : i32 to index
      %c0_32 = arith.constant 0 : index
      %c0_33 = arith.constant 0 : index
      %89 = vector.load %arg1[%88, %c0_32, %c0_33] : memref<8x8x64xf32, #tpu.memory_space<vmem>>, vector<1x8x64xf32>
      %90 = vector.shape_cast %89 : vector<1x8x64xf32> to vector<8x64xf32>
      %cst_34 = arith.constant dense<0.000000e+00> : vector<8x128xf32>
      %91 = tpu.matmul %90, %1, %cst_34 {dimension_numbers = #tpu.dot_dimension_numbers<[1], [0], [0], [1], [0, 0, 1, 1], [], []>} : vector<8x64xf32>, vector<64x128xf32>, vector<8x128xf32> -> vector<8x128xf32>
      %cst_35 = arith.constant dense<0.000000e+00> : vector<8x128xf32>
      %92 = tpu.matmul %84, %3, %cst_35 {dimension_numbers = #tpu.dot_dimension_numbers<[1], [0], [0], [1], [0, 0, 1, 1], [], []>} : vector<8x32xf32>, vector<32x128xf32>, vector<8x128xf32> -> vector<8x128xf32>
      %93 = arith.addf %91, %92 : vector<8x128xf32>
      %94 = vector.broadcast %5 : vector<1x128xf32> to vector<8x128xf32>
      %95 = arith.addf %93, %94 : vector<8x128xf32>
      %96 = vector.extract_strided_slice %95 {offsets = [0, 0], sizes = [8, 32], strides = [1, 1]} : vector<8x128xf32> to vector<8x32xf32>
      %97 = arith.negf %96 : vector<8x32xf32>
      %98 = math.exp %97 : vector<8x32xf32>
      %cst_36 = arith.constant 1.000000e+00 : f32
      %99 = vector.broadcast %cst_36 : f32 to vector<8x32xf32>
      %100 = arith.addf %99, %98 : vector<8x32xf32>
      %101 = arith.divf %99, %100 : vector<8x32xf32>
      %102 = vector.extract_strided_slice %95 {offsets = [0, 32], sizes = [8, 32], strides = [1, 1]} : vector<8x128xf32> to vector<8x32xf32>
      %103 = arith.negf %102 : vector<8x32xf32>
      %104 = math.exp %103 : vector<8x32xf32>
      %cst_37 = arith.constant 1.000000e+00 : f32
      %105 = vector.broadcast %cst_37 : f32 to vector<8x32xf32>
      %106 = arith.addf %105, %104 : vector<8x32xf32>
      %107 = arith.divf %105, %106 : vector<8x32xf32>
      %108 = vector.extract_strided_slice %95 {offsets = [0, 64], sizes = [8, 32], strides = [1, 1]} : vector<8x128xf32> to vector<8x32xf32>
      %109 = math.tanh %108 : vector<8x32xf32>
      %110 = vector.extract_strided_slice %95 {offsets = [0, 96], sizes = [8, 32], strides = [1, 1]} : vector<8x128xf32> to vector<8x32xf32>
      %111 = arith.negf %110 : vector<8x32xf32>
      %112 = math.exp %111 : vector<8x32xf32>
      %cst_38 = arith.constant 1.000000e+00 : f32
      %113 = vector.broadcast %cst_38 : f32 to vector<8x32xf32>
      %114 = arith.addf %113, %112 : vector<8x32xf32>
      %115 = arith.divf %113, %114 : vector<8x32xf32>
      %116 = arith.mulf %107, %82 : vector<8x32xf32>
      %117 = arith.mulf %101, %109 : vector<8x32xf32>
      %118 = arith.addf %116, %117 : vector<8x32xf32>
      %119 = math.tanh %118 : vector<8x32xf32>
      %120 = arith.mulf %115, %119 : vector<8x32xf32>
      %121 = vector.shape_cast %120 : vector<8x32xf32> to vector<1x8x32xf32>
      %122 = arith.index_cast %c2_i32 : i32 to index
      %c0_39 = arith.constant 0 : index
      %c0_40 = arith.constant 0 : index
      %123 = vector.load %arg7[%122, %c0_39, %c0_40] : memref<8x8x64xf32, #tpu.memory_space<vmem>>, vector<1x8x32xf32>
      tpu.vector_store %arg7[%122, %c0_39, %c0_40], %121 {strides = array<i32>} : memref<8x8x64xf32, #tpu.memory_space<vmem>>, vector<1x8x32xf32>,
      %c3_i32 = arith.constant 3 : i32
      %124 = arith.index_cast %c3_i32 : i32 to index
      %c0_41 = arith.constant 0 : index
      %c0_42 = arith.constant 0 : index
      %125 = vector.load %arg1[%124, %c0_41, %c0_42] : memref<8x8x64xf32, #tpu.memory_space<vmem>>, vector<1x8x64xf32>
      %126 = vector.shape_cast %125 : vector<1x8x64xf32> to vector<8x64xf32>
      %cst_43 = arith.constant dense<0.000000e+00> : vector<8x128xf32>
      %127 = tpu.matmul %126, %1, %cst_43 {dimension_numbers = #tpu.dot_dimension_numbers<[1], [0], [0], [1], [0, 0, 1, 1], [], []>} : vector<8x64xf32>, vector<64x128xf32>, vector<8x128xf32> -> vector<8x128xf32>
      %cst_44 = arith.constant dense<0.000000e+00> : vector<8x128xf32>
      %128 = tpu.matmul %120, %3, %cst_44 {dimension_numbers = #tpu.dot_dimension_numbers<[1], [0], [0], [1], [0, 0, 1, 1], [], []>} : vector<8x32xf32>, vector<32x128xf32>, vector<8x128xf32> -> vector<8x128xf32>
      %129 = arith.addf %127, %128 : vector<8x128xf32>
      %130 = vector.broadcast %5 : vector<1x128xf32> to vector<8x128xf32>
      %131 = arith.addf %129, %130 : vector<8x128xf32>
      %132 = vector.extract_strided_slice %131 {offsets = [0, 0], sizes = [8, 32], strides = [1, 1]} : vector<8x128xf32> to vector<8x32xf32>
      %133 = arith.negf %132 : vector<8x32xf32>
      %134 = math.exp %133 : vector<8x32xf32>
      %cst_45 = arith.constant 1.000000e+00 : f32
      %135 = vector.broadcast %cst_45 : f32 to vector<8x32xf32>
      %136 = arith.addf %135, %134 : vector<8x32xf32>
      %137 = arith.divf %135, %136 : vector<8x32xf32>
      %138 = vector.extract_strided_slice %131 {offsets = [0, 32], sizes = [8, 32], strides = [1, 1]} : vector<8x128xf32> to vector<8x32xf32>
      %139 = arith.negf %138 : vector<8x32xf32>
      %140 = math.exp %139 : vector<8x32xf32>
      %cst_46 = arith.constant 1.000000e+00 : f32
      %141 = vector.broadcast %cst_46 : f32 to vector<8x32xf32>
      %142 = arith.addf %141, %140 : vector<8x32xf32>
      %143 = arith.divf %141, %142 : vector<8x32xf32>
      %144 = vector.extract_strided_slice %131 {offsets = [0, 64], sizes = [8, 32], strides = [1, 1]} : vector<8x128xf32> to vector<8x32xf32>
      %145 = math.tanh %144 : vector<8x32xf32>
      %146 = vector.extract_strided_slice %131 {offsets = [0, 96], sizes = [8, 32], strides = [1, 1]} : vector<8x128xf32> to vector<8x32xf32>
      %147 = arith.negf %146 : vector<8x32xf32>
      %148 = math.exp %147 : vector<8x32xf32>
      %cst_47 = arith.constant 1.000000e+00 : f32
      %149 = vector.broadcast %cst_47 : f32 to vector<8x32xf32>
      %150 = arith.addf %149, %148 : vector<8x32xf32>
      %151 = arith.divf %149, %150 : vector<8x32xf32>
      %152 = arith.mulf %143, %118 : vector<8x32xf32>
      %153 = arith.mulf %137, %145 : vector<8x32xf32>
      %154 = arith.addf %152, %153 : vector<8x32xf32>
      %155 = math.tanh %154 : vector<8x32xf32>
      %156 = arith.mulf %151, %155 : vector<8x32xf32>
      %157 = vector.shape_cast %156 : vector<8x32xf32> to vector<1x8x32xf32>
      %158 = arith.index_cast %c3_i32 : i32 to index
      %c0_48 = arith.constant 0 : index
      %c0_49 = arith.constant 0 : index
      %159 = vector.load %arg7[%158, %c0_48, %c0_49] : memref<8x8x64xf32, #tpu.memory_space<vmem>>, vector<1x8x32xf32>
      tpu.vector_store %arg7[%158, %c0_48, %c0_49], %157 {strides = array<i32>} : memref<8x8x64xf32, #tpu.memory_space<vmem>>, vector<1x8x32xf32>,
      %c4_i32 = arith.constant 4 : i32
      %160 = arith.index_cast %c4_i32 : i32 to index
      %c0_50 = arith.constant 0 : index
      %c0_51 = arith.constant 0 : index
      %161 = vector.load %arg1[%160, %c0_50, %c0_51] : memref<8x8x64xf32, #tpu.memory_space<vmem>>, vector<1x8x64xf32>
      %162 = vector.shape_cast %161 : vector<1x8x64xf32> to vector<8x64xf32>
      %cst_52 = arith.constant dense<0.000000e+00> : vector<8x128xf32>
      %163 = tpu.matmul %162, %1, %cst_52 {dimension_numbers = #tpu.dot_dimension_numbers<[1], [0], [0], [1], [0, 0, 1, 1], [], []>} : vector<8x64xf32>, vector<64x128xf32>, vector<8x128xf32> -> vector<8x128xf32>
      %cst_53 = arith.constant dense<0.000000e+00> : vector<8x128xf32>
      %164 = tpu.matmul %156, %3, %cst_53 {dimension_numbers = #tpu.dot_dimension_numbers<[1], [0], [0], [1], [0, 0, 1, 1], [], []>} : vector<8x32xf32>, vector<32x128xf32>, vector<8x128xf32> -> vector<8x128xf32>
      %165 = arith.addf %163, %164 : vector<8x128xf32>
      %166 = vector.broadcast %5 : vector<1x128xf32> to vector<8x128xf32>
      %167 = arith.addf %165, %166 : vector<8x128xf32>
      %168 = vector.extract_strided_slice %167 {offsets = [0, 0], sizes = [8, 32], strides = [1, 1]} : vector<8x128xf32> to vector<8x32xf32>
      %169 = arith.negf %168 : vector<8x32xf32>
      %170 = math.exp %169 : vector<8x32xf32>
      %cst_54 = arith.constant 1.000000e+00 : f32
      %171 = vector.broadcast %cst_54 : f32 to vector<8x32xf32>
      %172 = arith.addf %171, %170 : vector<8x32xf32>
      %173 = arith.divf %171, %172 : vector<8x32xf32>
      %174 = vector.extract_strided_slice %167 {offsets = [0, 32], sizes = [8, 32], strides = [1, 1]} : vector<8x128xf32> to vector<8x32xf32>
      %175 = arith.negf %174 : vector<8x32xf32>
      %176 = math.exp %175 : vector<8x32xf32>
      %cst_55 = arith.constant 1.000000e+00 : f32
      %177 = vector.broadcast %cst_55 : f32 to vector<8x32xf32>
      %178 = arith.addf %177, %176 : vector<8x32xf32>
      %179 = arith.divf %177, %178 : vector<8x32xf32>
      %180 = vector.extract_strided_slice %167 {offsets = [0, 64], sizes = [8, 32], strides = [1, 1]} : vector<8x128xf32> to vector<8x32xf32>
      %181 = math.tanh %180 : vector<8x32xf32>
      %182 = vector.extract_strided_slice %167 {offsets = [0, 96], sizes = [8, 32], strides = [1, 1]} : vector<8x128xf32> to vector<8x32xf32>
      %183 = arith.negf %182 : vector<8x32xf32>
      %184 = math.exp %183 : vector<8x32xf32>
      %cst_56 = arith.constant 1.000000e+00 : f32
      %185 = vector.broadcast %cst_56 : f32 to vector<8x32xf32>
      %186 = arith.addf %185, %184 : vector<8x32xf32>
      %187 = arith.divf %185, %186 : vector<8x32xf32>
      %188 = arith.mulf %179, %154 : vector<8x32xf32>
      %189 = arith.mulf %173, %181 : vector<8x32xf32>
      %190 = arith.addf %188, %189 : vector<8x32xf32>
      %191 = math.tanh %190 : vector<8x32xf32>
      %192 = arith.mulf %187, %191 : vector<8x32xf32>
      %193 = vector.shape_cast %192 : vector<8x32xf32> to vector<1x8x32xf32>
      %194 = arith.index_cast %c4_i32 : i32 to index
      %c0_57 = arith.constant 0 : index
      %c0_58 = arith.constant 0 : index
      %195 = vector.load %arg7[%194, %c0_57, %c0_58] : memref<8x8x64xf32, #tpu.memory_space<vmem>>, vector<1x8x32xf32>
      tpu.vector_store %arg7[%194, %c0_57, %c0_58], %193 {strides = array<i32>} : memref<8x8x64xf32, #tpu.memory_space<vmem>>, vector<1x8x32xf32>,
      %c5_i32 = arith.constant 5 : i32
      %196 = arith.index_cast %c5_i32 : i32 to index
      %c0_59 = arith.constant 0 : index
      %c0_60 = arith.constant 0 : index
      %197 = vector.load %arg1[%196, %c0_59, %c0_60] : memref<8x8x64xf32, #tpu.memory_space<vmem>>, vector<1x8x64xf32>
      %198 = vector.shape_cast %197 : vector<1x8x64xf32> to vector<8x64xf32>
      %cst_61 = arith.constant dense<0.000000e+00> : vector<8x128xf32>
      %199 = tpu.matmul %198, %1, %cst_61 {dimension_numbers = #tpu.dot_dimension_numbers<[1], [0], [0], [1], [0, 0, 1, 1], [], []>} : vector<8x64xf32>, vector<64x128xf32>, vector<8x128xf32> -> vector<8x128xf32>
      %cst_62 = arith.constant dense<0.000000e+00> : vector<8x128xf32>
      %200 = tpu.matmul %192, %3, %cst_62 {dimension_numbers = #tpu.dot_dimension_numbers<[1], [0], [0], [1], [0, 0, 1, 1], [], []>} : vector<8x32xf32>, vector<32x128xf32>, vector<8x128xf32> -> vector<8x128xf32>
      %201 = arith.addf %199, %200 : vector<8x128xf32>
      %202 = vector.broadcast %5 : vector<1x128xf32> to vector<8x128xf32>
      %203 = arith.addf %201, %202 : vector<8x128xf32>
      %204 = vector.extract_strided_slice %203 {offsets = [0, 0], sizes = [8, 32], strides = [1, 1]} : vector<8x128xf32> to vector<8x32xf32>
      %205 = arith.negf %204 : vector<8x32xf32>
      %206 = math.exp %205 : vector<8x32xf32>
      %cst_63 = arith.constant 1.000000e+00 : f32
      %207 = vector.broadcast %cst_63 : f32 to vector<8x32xf32>
      %208 = arith.addf %207, %206 : vector<8x32xf32>
      %209 = arith.divf %207, %208 : vector<8x32xf32>
      %210 = vector.extract_strided_slice %203 {offsets = [0, 32], sizes = [8, 32], strides = [1, 1]} : vector<8x128xf32> to vector<8x32xf32>
      %211 = arith.negf %210 : vector<8x32xf32>
      %212 = math.exp %211 : vector<8x32xf32>
      %cst_64 = arith.constant 1.000000e+00 : f32
      %213 = vector.broadcast %cst_64 : f32 to vector<8x32xf32>
      %214 = arith.addf %213, %212 : vector<8x32xf32>
      %215 = arith.divf %213, %214 : vector<8x32xf32>
      %216 = vector.extract_strided_slice %203 {offsets = [0, 64], sizes = [8, 32], strides = [1, 1]} : vector<8x128xf32> to vector<8x32xf32>
      %217 = math.tanh %216 : vector<8x32xf32>
      %218 = vector.extract_strided_slice %203 {offsets = [0, 96], sizes = [8, 32], strides = [1, 1]} : vector<8x128xf32> to vector<8x32xf32>
      %219 = arith.negf %218 : vector<8x32xf32>
      %220 = math.exp %219 : vector<8x32xf32>
      %cst_65 = arith.constant 1.000000e+00 : f32
      %221 = vector.broadcast %cst_65 : f32 to vector<8x32xf32>
      %222 = arith.addf %221, %220 : vector<8x32xf32>
      %223 = arith.divf %221, %222 : vector<8x32xf32>
      %224 = arith.mulf %215, %190 : vector<8x32xf32>
      %225 = arith.mulf %209, %217 : vector<8x32xf32>
      %226 = arith.addf %224, %225 : vector<8x32xf32>
      %227 = math.tanh %226 : vector<8x32xf32>
      %228 = arith.mulf %223, %227 : vector<8x32xf32>
      %229 = vector.shape_cast %228 : vector<8x32xf32> to vector<1x8x32xf32>
      %230 = arith.index_cast %c5_i32 : i32 to index
      %c0_66 = arith.constant 0 : index
      %c0_67 = arith.constant 0 : index
      %231 = vector.load %arg7[%230, %c0_66, %c0_67] : memref<8x8x64xf32, #tpu.memory_space<vmem>>, vector<1x8x32xf32>
      tpu.vector_store %arg7[%230, %c0_66, %c0_67], %229 {strides = array<i32>} : memref<8x8x64xf32, #tpu.memory_space<vmem>>, vector<1x8x32xf32>,
      %c6_i32 = arith.constant 6 : i32
      %232 = arith.index_cast %c6_i32 : i32 to index
      %c0_68 = arith.constant 0 : index
      %c0_69 = arith.constant 0 : index
      %233 = vector.load %arg1[%232, %c0_68, %c0_69] : memref<8x8x64xf32, #tpu.memory_space<vmem>>, vector<1x8x64xf32>
      %234 = vector.shape_cast %233 : vector<1x8x64xf32> to vector<8x64xf32>
      %cst_70 = arith.constant dense<0.000000e+00> : vector<8x128xf32>
      %235 = tpu.matmul %234, %1, %cst_70 {dimension_numbers = #tpu.dot_dimension_numbers<[1], [0], [0], [1], [0, 0, 1, 1], [], []>} : vector<8x64xf32>, vector<64x128xf32>, vector<8x128xf32> -> vector<8x128xf32>
      %cst_71 = arith.constant dense<0.000000e+00> : vector<8x128xf32>
      %236 = tpu.matmul %228, %3, %cst_71 {dimension_numbers = #tpu.dot_dimension_numbers<[1], [0], [0], [1], [0, 0, 1, 1], [], []>} : vector<8x32xf32>, vector<32x128xf32>, vector<8x128xf32> -> vector<8x128xf32>
      %237 = arith.addf %235, %236 : vector<8x128xf32>
      %238 = vector.broadcast %5 : vector<1x128xf32> to vector<8x128xf32>
      %239 = arith.addf %237, %238 : vector<8x128xf32>
      %240 = vector.extract_strided_slice %239 {offsets = [0, 0], sizes = [8, 32], strides = [1, 1]} : vector<8x128xf32> to vector<8x32xf32>
      %241 = arith.negf %240 : vector<8x32xf32>
      %242 = math.exp %241 : vector<8x32xf32>
      %cst_72 = arith.constant 1.000000e+00 : f32
      %243 = vector.broadcast %cst_72 : f32 to vector<8x32xf32>
      %244 = arith.addf %243, %242 : vector<8x32xf32>
      %245 = arith.divf %243, %244 : vector<8x32xf32>
      %246 = vector.extract_strided_slice %239 {offsets = [0, 32], sizes = [8, 32], strides = [1, 1]} : vector<8x128xf32> to vector<8x32xf32>
      %247 = arith.negf %246 : vector<8x32xf32>
      %248 = math.exp %247 : vector<8x32xf32>
      %cst_73 = arith.constant 1.000000e+00 : f32
      %249 = vector.broadcast %cst_73 : f32 to vector<8x32xf32>
      %250 = arith.addf %249, %248 : vector<8x32xf32>
      %251 = arith.divf %249, %250 : vector<8x32xf32>
      %252 = vector.extract_strided_slice %239 {offsets = [0, 64], sizes = [8, 32], strides = [1, 1]} : vector<8x128xf32> to vector<8x32xf32>
      %253 = math.tanh %252 : vector<8x32xf32>
      %254 = vector.extract_strided_slice %239 {offsets = [0, 96], sizes = [8, 32], strides = [1, 1]} : vector<8x128xf32> to vector<8x32xf32>
      %255 = arith.negf %254 : vector<8x32xf32>
      %256 = math.exp %255 : vector<8x32xf32>
      %cst_74 = arith.constant 1.000000e+00 : f32
      %257 = vector.broadcast %cst_74 : f32 to vector<8x32xf32>
      %258 = arith.addf %257, %256 : vector<8x32xf32>
      %259 = arith.divf %257, %258 : vector<8x32xf32>
      %260 = arith.mulf %251, %226 : vector<8x32xf32>
      %261 = arith.mulf %245, %253 : vector<8x32xf32>
      %262 = arith.addf %260, %261 : vector<8x32xf32>
      %263 = math.tanh %262 : vector<8x32xf32>
      %264 = arith.mulf %259, %263 : vector<8x32xf32>
      %265 = vector.shape_cast %264 : vector<8x32xf32> to vector<1x8x32xf32>
      %266 = arith.index_cast %c6_i32 : i32 to index
      %c0_75 = arith.constant 0 : index
      %c0_76 = arith.constant 0 : index
      %267 = vector.load %arg7[%266, %c0_75, %c0_76] : memref<8x8x64xf32, #tpu.memory_space<vmem>>, vector<1x8x32xf32>
      tpu.vector_store %arg7[%266, %c0_75, %c0_76], %265 {strides = array<i32>} : memref<8x8x64xf32, #tpu.memory_space<vmem>>, vector<1x8x32xf32>,
      %c7_i32 = arith.constant 7 : i32
      %268 = arith.index_cast %c7_i32 : i32 to index
      %c0_77 = arith.constant 0 : index
      %c0_78 = arith.constant 0 : index
      %269 = vector.load %arg1[%268, %c0_77, %c0_78] : memref<8x8x64xf32, #tpu.memory_space<vmem>>, vector<1x8x64xf32>
      %270 = vector.shape_cast %269 : vector<1x8x64xf32> to vector<8x64xf32>
      %cst_79 = arith.constant dense<0.000000e+00> : vector<8x128xf32>
      %271 = tpu.matmul %270, %1, %cst_79 {dimension_numbers = #tpu.dot_dimension_numbers<[1], [0], [0], [1], [0, 0, 1, 1], [], []>} : vector<8x64xf32>, vector<64x128xf32>, vector<8x128xf32> -> vector<8x128xf32>
      %cst_80 = arith.constant dense<0.000000e+00> : vector<8x128xf32>
      %272 = tpu.matmul %264, %3, %cst_80 {dimension_numbers = #tpu.dot_dimension_numbers<[1], [0], [0], [1], [0, 0, 1, 1], [], []>} : vector<8x32xf32>, vector<32x128xf32>, vector<8x128xf32> -> vector<8x128xf32>
      %273 = arith.addf %271, %272 : vector<8x128xf32>
      %274 = vector.broadcast %5 : vector<1x128xf32> to vector<8x128xf32>
      %275 = arith.addf %273, %274 : vector<8x128xf32>
      %276 = vector.extract_strided_slice %275 {offsets = [0, 0], sizes = [8, 32], strides = [1, 1]} : vector<8x128xf32> to vector<8x32xf32>
      %277 = arith.negf %276 : vector<8x32xf32>
      %278 = math.exp %277 : vector<8x32xf32>
      %cst_81 = arith.constant 1.000000e+00 : f32
      %279 = vector.broadcast %cst_81 : f32 to vector<8x32xf32>
      %280 = arith.addf %279, %278 : vector<8x32xf32>
      %281 = arith.divf %279, %280 : vector<8x32xf32>
      %282 = vector.extract_strided_slice %275 {offsets = [0, 32], sizes = [8, 32], strides = [1, 1]} : vector<8x128xf32> to vector<8x32xf32>
      %283 = arith.negf %282 : vector<8x32xf32>
      %284 = math.exp %283 : vector<8x32xf32>
      %cst_82 = arith.constant 1.000000e+00 : f32
      %285 = vector.broadcast %cst_82 : f32 to vector<8x32xf32>
      %286 = arith.addf %285, %284 : vector<8x32xf32>
      %287 = arith.divf %285, %286 : vector<8x32xf32>
      %288 = vector.extract_strided_slice %275 {offsets = [0, 64], sizes = [8, 32], strides = [1, 1]} : vector<8x128xf32> to vector<8x32xf32>
      %289 = math.tanh %288 : vector<8x32xf32>
      %290 = vector.extract_strided_slice %275 {offsets = [0, 96], sizes = [8, 32], strides = [1, 1]} : vector<8x128xf32> to vector<8x32xf32>
      %291 = arith.negf %290 : vector<8x32xf32>
      %292 = math.exp %291 : vector<8x32xf32>
      %cst_83 = arith.constant 1.000000e+00 : f32
      %293 = vector.broadcast %cst_83 : f32 to vector<8x32xf32>
      %294 = arith.addf %293, %292 : vector<8x32xf32>
      %295 = arith.divf %293, %294 : vector<8x32xf32>
      %296 = arith.mulf %287, %262 : vector<8x32xf32>
      %297 = arith.mulf %281, %289 : vector<8x32xf32>
      %298 = arith.addf %296, %297 : vector<8x32xf32>
      %299 = math.tanh %298 : vector<8x32xf32>
      %300 = arith.mulf %295, %299 : vector<8x32xf32>
      %301 = vector.shape_cast %300 : vector<8x32xf32> to vector<1x8x32xf32>
      %302 = arith.index_cast %c7_i32 : i32 to index
      %c0_84 = arith.constant 0 : index
      %c0_85 = arith.constant 0 : index
      %303 = vector.load %arg7[%302, %c0_84, %c0_85] : memref<8x8x64xf32, #tpu.memory_space<vmem>>, vector<1x8x32xf32>
      tpu.vector_store %arg7[%302, %c0_84, %c0_85], %301 {strides = array<i32>} : memref<8x8x64xf32, #tpu.memory_space<vmem>>, vector<1x8x32xf32>,
      %c8_i32 = arith.constant 8 : i32
    } else {
    }
    %c1_i32 = arith.constant 1 : i32
    %9 = arith.cmpi eq, %arg0, %c1_i32 : i32
    %10 = arith.extui %9 : i1 to i32
    %c0_i32_9 = arith.constant 0 : i32
    %11 = arith.cmpi ne, %10, %c0_i32_9 : i32
    scf.if %11 {
      %cst = arith.constant 0.000000e+00 : f32
      %15 = vector.broadcast %cst : f32 to vector<8x32xf32>
      %c0_i32_12 = arith.constant 0 : i32
      %c7_i32 = arith.constant 7 : i32
      %16 = arith.subi %c7_i32, %c0_i32_12 : i32
      %17 = arith.index_cast %16 : i32 to index
      %c0_13 = arith.constant 0 : index
      %c0_14 = arith.constant 0 : index
      %18 = vector.load %arg1[%17, %c0_13, %c0_14] : memref<8x8x64xf32, #tpu.memory_space<vmem>>, vector<1x8x64xf32>
      %19 = vector.shape_cast %18 : vector<1x8x64xf32> to vector<8x64xf32>
      %cst_15 = arith.constant dense<0.000000e+00> : vector<8x128xf32>
      %20 = tpu.matmul %19, %1, %cst_15 {dimension_numbers = #tpu.dot_dimension_numbers<[1], [0], [0], [1], [0, 0, 1, 1], [], []>} : vector<8x64xf32>, vector<64x128xf32>, vector<8x128xf32> -> vector<8x128xf32>
      %cst_16 = arith.constant dense<0.000000e+00> : vector<8x128xf32>
      %21 = tpu.matmul %15, %3, %cst_16 {dimension_numbers = #tpu.dot_dimension_numbers<[1], [0], [0], [1], [0, 0, 1, 1], [], []>} : vector<8x32xf32>, vector<32x128xf32>, vector<8x128xf32> -> vector<8x128xf32>
      %22 = arith.addf %20, %21 : vector<8x128xf32>
      %23 = vector.broadcast %5 : vector<1x128xf32> to vector<8x128xf32>
      %24 = arith.addf %22, %23 : vector<8x128xf32>
      %25 = vector.extract_strided_slice %24 {offsets = [0, 0], sizes = [8, 32], strides = [1, 1]} : vector<8x128xf32> to vector<8x32xf32>
      %26 = arith.negf %25 : vector<8x32xf32>
      %27 = math.exp %26 : vector<8x32xf32>
      %cst_17 = arith.constant 1.000000e+00 : f32
      %28 = vector.broadcast %cst_17 : f32 to vector<8x32xf32>
      %29 = arith.addf %28, %27 : vector<8x32xf32>
      %30 = arith.divf %28, %29 : vector<8x32xf32>
      %31 = vector.extract_strided_slice %24 {offsets = [0, 32], sizes = [8, 32], strides = [1, 1]} : vector<8x128xf32> to vector<8x32xf32>
      %32 = arith.negf %31 : vector<8x32xf32>
      %33 = math.exp %32 : vector<8x32xf32>
      %cst_18 = arith.constant 1.000000e+00 : f32
      %34 = vector.broadcast %cst_18 : f32 to vector<8x32xf32>
      %35 = arith.addf %34, %33 : vector<8x32xf32>
      %36 = arith.divf %34, %35 : vector<8x32xf32>
      %37 = vector.extract_strided_slice %24 {offsets = [0, 64], sizes = [8, 32], strides = [1, 1]} : vector<8x128xf32> to vector<8x32xf32>
      %38 = math.tanh %37 : vector<8x32xf32>
      %39 = vector.extract_strided_slice %24 {offsets = [0, 96], sizes = [8, 32], strides = [1, 1]} : vector<8x128xf32> to vector<8x32xf32>
      %40 = arith.negf %39 : vector<8x32xf32>
      %41 = math.exp %40 : vector<8x32xf32>
      %cst_19 = arith.constant 1.000000e+00 : f32
      %42 = vector.broadcast %cst_19 : f32 to vector<8x32xf32>
      %43 = arith.addf %42, %41 : vector<8x32xf32>
      %44 = arith.divf %42, %43 : vector<8x32xf32>
      %45 = arith.mulf %36, %15 : vector<8x32xf32>
      %46 = arith.mulf %30, %38 : vector<8x32xf32>
      %47 = arith.addf %45, %46 : vector<8x32xf32>
      %48 = math.tanh %47 : vector<8x32xf32>
      %49 = arith.mulf %44, %48 : vector<8x32xf32>
      %50 = vector.shape_cast %49 : vector<8x32xf32> to vector<1x8x32xf32>
      %51 = arith.index_cast %16 : i32 to index
      %c0_20 = arith.constant 0 : index
      %c32 = arith.constant 32 : index
      %52 = vector.load %arg7[%51, %c0_20, %c32] : memref<8x8x64xf32, #tpu.memory_space<vmem>>, vector<1x8x32xf32>
      tpu.vector_store %arg7[%51, %c0_20, %c32], %50 {strides = array<i32>} : memref<8x8x64xf32, #tpu.memory_space<vmem>>, vector<1x8x32xf32>,
      %c1_i32_21 = arith.constant 1 : i32
      %c7_i32_22 = arith.constant 7 : i32
      %53 = arith.subi %c7_i32_22, %c1_i32_21 : i32
      %54 = arith.index_cast %53 : i32 to index
      %c0_23 = arith.constant 0 : index
      %c0_24 = arith.constant 0 : index
      %55 = vector.load %arg1[%54, %c0_23, %c0_24] : memref<8x8x64xf32, #tpu.memory_space<vmem>>, vector<1x8x64xf32>
      %56 = vector.shape_cast %55 : vector<1x8x64xf32> to vector<8x64xf32>
      %cst_25 = arith.constant dense<0.000000e+00> : vector<8x128xf32>
      %57 = tpu.matmul %56, %1, %cst_25 {dimension_numbers = #tpu.dot_dimension_numbers<[1], [0], [0], [1], [0, 0, 1, 1], [], []>} : vector<8x64xf32>, vector<64x128xf32>, vector<8x128xf32> -> vector<8x128xf32>
      %cst_26 = arith.constant dense<0.000000e+00> : vector<8x128xf32>
      %58 = tpu.matmul %49, %3, %cst_26 {dimension_numbers = #tpu.dot_dimension_numbers<[1], [0], [0], [1], [0, 0, 1, 1], [], []>} : vector<8x32xf32>, vector<32x128xf32>, vector<8x128xf32> -> vector<8x128xf32>
      %59 = arith.addf %57, %58 : vector<8x128xf32>
      %60 = vector.broadcast %5 : vector<1x128xf32> to vector<8x128xf32>
      %61 = arith.addf %59, %60 : vector<8x128xf32>
      %62 = vector.extract_strided_slice %61 {offsets = [0, 0], sizes = [8, 32], strides = [1, 1]} : vector<8x128xf32> to vector<8x32xf32>
      %63 = arith.negf %62 : vector<8x32xf32>
      %64 = math.exp %63 : vector<8x32xf32>
      %cst_27 = arith.constant 1.000000e+00 : f32
      %65 = vector.broadcast %cst_27 : f32 to vector<8x32xf32>
      %66 = arith.addf %65, %64 : vector<8x32xf32>
      %67 = arith.divf %65, %66 : vector<8x32xf32>
      %68 = vector.extract_strided_slice %61 {offsets = [0, 32], sizes = [8, 32], strides = [1, 1]} : vector<8x128xf32> to vector<8x32xf32>
      %69 = arith.negf %68 : vector<8x32xf32>
      %70 = math.exp %69 : vector<8x32xf32>
      %cst_28 = arith.constant 1.000000e+00 : f32
      %71 = vector.broadcast %cst_28 : f32 to vector<8x32xf32>
      %72 = arith.addf %71, %70 : vector<8x32xf32>
      %73 = arith.divf %71, %72 : vector<8x32xf32>
      %74 = vector.extract_strided_slice %61 {offsets = [0, 64], sizes = [8, 32], strides = [1, 1]} : vector<8x128xf32> to vector<8x32xf32>
      %75 = math.tanh %74 : vector<8x32xf32>
      %76 = vector.extract_strided_slice %61 {offsets = [0, 96], sizes = [8, 32], strides = [1, 1]} : vector<8x128xf32> to vector<8x32xf32>
      %77 = arith.negf %76 : vector<8x32xf32>
      %78 = math.exp %77 : vector<8x32xf32>
      %cst_29 = arith.constant 1.000000e+00 : f32
      %79 = vector.broadcast %cst_29 : f32 to vector<8x32xf32>
      %80 = arith.addf %79, %78 : vector<8x32xf32>
      %81 = arith.divf %79, %80 : vector<8x32xf32>
      %82 = arith.mulf %73, %47 : vector<8x32xf32>
      %83 = arith.mulf %67, %75 : vector<8x32xf32>
      %84 = arith.addf %82, %83 : vector<8x32xf32>
      %85 = math.tanh %84 : vector<8x32xf32>
      %86 = arith.mulf %81, %85 : vector<8x32xf32>
      %87 = vector.shape_cast %86 : vector<8x32xf32> to vector<1x8x32xf32>
      %88 = arith.index_cast %53 : i32 to index
      %c0_30 = arith.constant 0 : index
      %c32_31 = arith.constant 32 : index
      %89 = vector.load %arg7[%88, %c0_30, %c32_31] : memref<8x8x64xf32, #tpu.memory_space<vmem>>, vector<1x8x32xf32>
      tpu.vector_store %arg7[%88, %c0_30, %c32_31], %87 {strides = array<i32>} : memref<8x8x64xf32, #tpu.memory_space<vmem>>, vector<1x8x32xf32>,
      %c2_i32 = arith.constant 2 : i32
      %c7_i32_32 = arith.constant 7 : i32
      %90 = arith.subi %c7_i32_32, %c2_i32 : i32
      %91 = arith.index_cast %90 : i32 to index
      %c0_33 = arith.constant 0 : index
      %c0_34 = arith.constant 0 : index
      %92 = vector.load %arg1[%91, %c0_33, %c0_34] : memref<8x8x64xf32, #tpu.memory_space<vmem>>, vector<1x8x64xf32>
      %93 = vector.shape_cast %92 : vector<1x8x64xf32> to vector<8x64xf32>
      %cst_35 = arith.constant dense<0.000000e+00> : vector<8x128xf32>
      %94 = tpu.matmul %93, %1, %cst_35 {dimension_numbers = #tpu.dot_dimension_numbers<[1], [0], [0], [1], [0, 0, 1, 1], [], []>} : vector<8x64xf32>, vector<64x128xf32>, vector<8x128xf32> -> vector<8x128xf32>
      %cst_36 = arith.constant dense<0.000000e+00> : vector<8x128xf32>
      %95 = tpu.matmul %86, %3, %cst_36 {dimension_numbers = #tpu.dot_dimension_numbers<[1], [0], [0], [1], [0, 0, 1, 1], [], []>} : vector<8x32xf32>, vector<32x128xf32>, vector<8x128xf32> -> vector<8x128xf32>
      %96 = arith.addf %94, %95 : vector<8x128xf32>
      %97 = vector.broadcast %5 : vector<1x128xf32> to vector<8x128xf32>
      %98 = arith.addf %96, %97 : vector<8x128xf32>
      %99 = vector.extract_strided_slice %98 {offsets = [0, 0], sizes = [8, 32], strides = [1, 1]} : vector<8x128xf32> to vector<8x32xf32>
      %100 = arith.negf %99 : vector<8x32xf32>
      %101 = math.exp %100 : vector<8x32xf32>
      %cst_37 = arith.constant 1.000000e+00 : f32
      %102 = vector.broadcast %cst_37 : f32 to vector<8x32xf32>
      %103 = arith.addf %102, %101 : vector<8x32xf32>
      %104 = arith.divf %102, %103 : vector<8x32xf32>
      %105 = vector.extract_strided_slice %98 {offsets = [0, 32], sizes = [8, 32], strides = [1, 1]} : vector<8x128xf32> to vector<8x32xf32>
      %106 = arith.negf %105 : vector<8x32xf32>
      %107 = math.exp %106 : vector<8x32xf32>
      %cst_38 = arith.constant 1.000000e+00 : f32
      %108 = vector.broadcast %cst_38 : f32 to vector<8x32xf32>
      %109 = arith.addf %108, %107 : vector<8x32xf32>
      %110 = arith.divf %108, %109 : vector<8x32xf32>
      %111 = vector.extract_strided_slice %98 {offsets = [0, 64], sizes = [8, 32], strides = [1, 1]} : vector<8x128xf32> to vector<8x32xf32>
      %112 = math.tanh %111 : vector<8x32xf32>
      %113 = vector.extract_strided_slice %98 {offsets = [0, 96], sizes = [8, 32], strides = [1, 1]} : vector<8x128xf32> to vector<8x32xf32>
      %114 = arith.negf %113 : vector<8x32xf32>
      %115 = math.exp %114 : vector<8x32xf32>
      %cst_39 = arith.constant 1.000000e+00 : f32
      %116 = vector.broadcast %cst_39 : f32 to vector<8x32xf32>
      %117 = arith.addf %116, %115 : vector<8x32xf32>
      %118 = arith.divf %116, %117 : vector<8x32xf32>
      %119 = arith.mulf %110, %84 : vector<8x32xf32>
      %120 = arith.mulf %104, %112 : vector<8x32xf32>
      %121 = arith.addf %119, %120 : vector<8x32xf32>
      %122 = math.tanh %121 : vector<8x32xf32>
      %123 = arith.mulf %118, %122 : vector<8x32xf32>
      %124 = vector.shape_cast %123 : vector<8x32xf32> to vector<1x8x32xf32>
      %125 = arith.index_cast %90 : i32 to index
      %c0_40 = arith.constant 0 : index
      %c32_41 = arith.constant 32 : index
      %126 = vector.load %arg7[%125, %c0_40, %c32_41] : memref<8x8x64xf32, #tpu.memory_space<vmem>>, vector<1x8x32xf32>
      tpu.vector_store %arg7[%125, %c0_40, %c32_41], %124 {strides = array<i32>} : memref<8x8x64xf32, #tpu.memory_space<vmem>>, vector<1x8x32xf32>,
      %c3_i32 = arith.constant 3 : i32
      %c7_i32_42 = arith.constant 7 : i32
      %127 = arith.subi %c7_i32_42, %c3_i32 : i32
      %128 = arith.index_cast %127 : i32 to index
      %c0_43 = arith.constant 0 : index
      %c0_44 = arith.constant 0 : index
      %129 = vector.load %arg1[%128, %c0_43, %c0_44] : memref<8x8x64xf32, #tpu.memory_space<vmem>>, vector<1x8x64xf32>
      %130 = vector.shape_cast %129 : vector<1x8x64xf32> to vector<8x64xf32>
      %cst_45 = arith.constant dense<0.000000e+00> : vector<8x128xf32>
      %131 = tpu.matmul %130, %1, %cst_45 {dimension_numbers = #tpu.dot_dimension_numbers<[1], [0], [0], [1], [0, 0, 1, 1], [], []>} : vector<8x64xf32>, vector<64x128xf32>, vector<8x128xf32> -> vector<8x128xf32>
      %cst_46 = arith.constant dense<0.000000e+00> : vector<8x128xf32>
      %132 = tpu.matmul %123, %3, %cst_46 {dimension_numbers = #tpu.dot_dimension_numbers<[1], [0], [0], [1], [0, 0, 1, 1], [], []>} : vector<8x32xf32>, vector<32x128xf32>, vector<8x128xf32> -> vector<8x128xf32>
      %133 = arith.addf %131, %132 : vector<8x128xf32>
      %134 = vector.broadcast %5 : vector<1x128xf32> to vector<8x128xf32>
      %135 = arith.addf %133, %134 : vector<8x128xf32>
      %136 = vector.extract_strided_slice %135 {offsets = [0, 0], sizes = [8, 32], strides = [1, 1]} : vector<8x128xf32> to vector<8x32xf32>
      %137 = arith.negf %136 : vector<8x32xf32>
      %138 = math.exp %137 : vector<8x32xf32>
      %cst_47 = arith.constant 1.000000e+00 : f32
      %139 = vector.broadcast %cst_47 : f32 to vector<8x32xf32>
      %140 = arith.addf %139, %138 : vector<8x32xf32>
      %141 = arith.divf %139, %140 : vector<8x32xf32>
      %142 = vector.extract_strided_slice %135 {offsets = [0, 32], sizes = [8, 32], strides = [1, 1]} : vector<8x128xf32> to vector<8x32xf32>
      %143 = arith.negf %142 : vector<8x32xf32>
      %144 = math.exp %143 : vector<8x32xf32>
      %cst_48 = arith.constant 1.000000e+00 : f32
      %145 = vector.broadcast %cst_48 : f32 to vector<8x32xf32>
      %146 = arith.addf %145, %144 : vector<8x32xf32>
      %147 = arith.divf %145, %146 : vector<8x32xf32>
      %148 = vector.extract_strided_slice %135 {offsets = [0, 64], sizes = [8, 32], strides = [1, 1]} : vector<8x128xf32> to vector<8x32xf32>
      %149 = math.tanh %148 : vector<8x32xf32>
      %150 = vector.extract_strided_slice %135 {offsets = [0, 96], sizes = [8, 32], strides = [1, 1]} : vector<8x128xf32> to vector<8x32xf32>
      %151 = arith.negf %150 : vector<8x32xf32>
      %152 = math.exp %151 : vector<8x32xf32>
      %cst_49 = arith.constant 1.000000e+00 : f32
      %153 = vector.broadcast %cst_49 : f32 to vector<8x32xf32>
      %154 = arith.addf %153, %152 : vector<8x32xf32>
      %155 = arith.divf %153, %154 : vector<8x32xf32>
      %156 = arith.mulf %147, %121 : vector<8x32xf32>
      %157 = arith.mulf %141, %149 : vector<8x32xf32>
      %158 = arith.addf %156, %157 : vector<8x32xf32>
      %159 = math.tanh %158 : vector<8x32xf32>
      %160 = arith.mulf %155, %159 : vector<8x32xf32>
      %161 = vector.shape_cast %160 : vector<8x32xf32> to vector<1x8x32xf32>
      %162 = arith.index_cast %127 : i32 to index
      %c0_50 = arith.constant 0 : index
      %c32_51 = arith.constant 32 : index
      %163 = vector.load %arg7[%162, %c0_50, %c32_51] : memref<8x8x64xf32, #tpu.memory_space<vmem>>, vector<1x8x32xf32>
      tpu.vector_store %arg7[%162, %c0_50, %c32_51], %161 {strides = array<i32>} : memref<8x8x64xf32, #tpu.memory_space<vmem>>, vector<1x8x32xf32>,
      %c4_i32 = arith.constant 4 : i32
      %c7_i32_52 = arith.constant 7 : i32
      %164 = arith.subi %c7_i32_52, %c4_i32 : i32
      %165 = arith.index_cast %164 : i32 to index
      %c0_53 = arith.constant 0 : index
      %c0_54 = arith.constant 0 : index
      %166 = vector.load %arg1[%165, %c0_53, %c0_54] : memref<8x8x64xf32, #tpu.memory_space<vmem>>, vector<1x8x64xf32>
      %167 = vector.shape_cast %166 : vector<1x8x64xf32> to vector<8x64xf32>
      %cst_55 = arith.constant dense<0.000000e+00> : vector<8x128xf32>
      %168 = tpu.matmul %167, %1, %cst_55 {dimension_numbers = #tpu.dot_dimension_numbers<[1], [0], [0], [1], [0, 0, 1, 1], [], []>} : vector<8x64xf32>, vector<64x128xf32>, vector<8x128xf32> -> vector<8x128xf32>
      %cst_56 = arith.constant dense<0.000000e+00> : vector<8x128xf32>
      %169 = tpu.matmul %160, %3, %cst_56 {dimension_numbers = #tpu.dot_dimension_numbers<[1], [0], [0], [1], [0, 0, 1, 1], [], []>} : vector<8x32xf32>, vector<32x128xf32>, vector<8x128xf32> -> vector<8x128xf32>
      %170 = arith.addf %168, %169 : vector<8x128xf32>
      %171 = vector.broadcast %5 : vector<1x128xf32> to vector<8x128xf32>
      %172 = arith.addf %170, %171 : vector<8x128xf32>
      %173 = vector.extract_strided_slice %172 {offsets = [0, 0], sizes = [8, 32], strides = [1, 1]} : vector<8x128xf32> to vector<8x32xf32>
      %174 = arith.negf %173 : vector<8x32xf32>
      %175 = math.exp %174 : vector<8x32xf32>
      %cst_57 = arith.constant 1.000000e+00 : f32
      %176 = vector.broadcast %cst_57 : f32 to vector<8x32xf32>
      %177 = arith.addf %176, %175 : vector<8x32xf32>
      %178 = arith.divf %176, %177 : vector<8x32xf32>
      %179 = vector.extract_strided_slice %172 {offsets = [0, 32], sizes = [8, 32], strides = [1, 1]} : vector<8x128xf32> to vector<8x32xf32>
      %180 = arith.negf %179 : vector<8x32xf32>
      %181 = math.exp %180 : vector<8x32xf32>
      %cst_58 = arith.constant 1.000000e+00 : f32
      %182 = vector.broadcast %cst_58 : f32 to vector<8x32xf32>
      %183 = arith.addf %182, %181 : vector<8x32xf32>
      %184 = arith.divf %182, %183 : vector<8x32xf32>
      %185 = vector.extract_strided_slice %172 {offsets = [0, 64], sizes = [8, 32], strides = [1, 1]} : vector<8x128xf32> to vector<8x32xf32>
      %186 = math.tanh %185 : vector<8x32xf32>
      %187 = vector.extract_strided_slice %172 {offsets = [0, 96], sizes = [8, 32], strides = [1, 1]} : vector<8x128xf32> to vector<8x32xf32>
      %188 = arith.negf %187 : vector<8x32xf32>
      %189 = math.exp %188 : vector<8x32xf32>
      %cst_59 = arith.constant 1.000000e+00 : f32
      %190 = vector.broadcast %cst_59 : f32 to vector<8x32xf32>
      %191 = arith.addf %190, %189 : vector<8x32xf32>
      %192 = arith.divf %190, %191 : vector<8x32xf32>
      %193 = arith.mulf %184, %158 : vector<8x32xf32>
      %194 = arith.mulf %178, %186 : vector<8x32xf32>
      %195 = arith.addf %193, %194 : vector<8x32xf32>
      %196 = math.tanh %195 : vector<8x32xf32>
      %197 = arith.mulf %192, %196 : vector<8x32xf32>
      %198 = vector.shape_cast %197 : vector<8x32xf32> to vector<1x8x32xf32>
      %199 = arith.index_cast %164 : i32 to index
      %c0_60 = arith.constant 0 : index
      %c32_61 = arith.constant 32 : index
      %200 = vector.load %arg7[%199, %c0_60, %c32_61] : memref<8x8x64xf32, #tpu.memory_space<vmem>>, vector<1x8x32xf32>
      tpu.vector_store %arg7[%199, %c0_60, %c32_61], %198 {strides = array<i32>} : memref<8x8x64xf32, #tpu.memory_space<vmem>>, vector<1x8x32xf32>,
      %c5_i32 = arith.constant 5 : i32
      %c7_i32_62 = arith.constant 7 : i32
      %201 = arith.subi %c7_i32_62, %c5_i32 : i32
      %202 = arith.index_cast %201 : i32 to index
      %c0_63 = arith.constant 0 : index
      %c0_64 = arith.constant 0 : index
      %203 = vector.load %arg1[%202, %c0_63, %c0_64] : memref<8x8x64xf32, #tpu.memory_space<vmem>>, vector<1x8x64xf32>
      %204 = vector.shape_cast %203 : vector<1x8x64xf32> to vector<8x64xf32>
      %cst_65 = arith.constant dense<0.000000e+00> : vector<8x128xf32>
      %205 = tpu.matmul %204, %1, %cst_65 {dimension_numbers = #tpu.dot_dimension_numbers<[1], [0], [0], [1], [0, 0, 1, 1], [], []>} : vector<8x64xf32>, vector<64x128xf32>, vector<8x128xf32> -> vector<8x128xf32>
      %cst_66 = arith.constant dense<0.000000e+00> : vector<8x128xf32>
      %206 = tpu.matmul %197, %3, %cst_66 {dimension_numbers = #tpu.dot_dimension_numbers<[1], [0], [0], [1], [0, 0, 1, 1], [], []>} : vector<8x32xf32>, vector<32x128xf32>, vector<8x128xf32> -> vector<8x128xf32>
      %207 = arith.addf %205, %206 : vector<8x128xf32>
      %208 = vector.broadcast %5 : vector<1x128xf32> to vector<8x128xf32>
      %209 = arith.addf %207, %208 : vector<8x128xf32>
      %210 = vector.extract_strided_slice %209 {offsets = [0, 0], sizes = [8, 32], strides = [1, 1]} : vector<8x128xf32> to vector<8x32xf32>
      %211 = arith.negf %210 : vector<8x32xf32>
      %212 = math.exp %211 : vector<8x32xf32>
      %cst_67 = arith.constant 1.000000e+00 : f32
      %213 = vector.broadcast %cst_67 : f32 to vector<8x32xf32>
      %214 = arith.addf %213, %212 : vector<8x32xf32>
      %215 = arith.divf %213, %214 : vector<8x32xf32>
      %216 = vector.extract_strided_slice %209 {offsets = [0, 32], sizes = [8, 32], strides = [1, 1]} : vector<8x128xf32> to vector<8x32xf32>
      %217 = arith.negf %216 : vector<8x32xf32>
      %218 = math.exp %217 : vector<8x32xf32>
      %cst_68 = arith.constant 1.000000e+00 : f32
      %219 = vector.broadcast %cst_68 : f32 to vector<8x32xf32>
      %220 = arith.addf %219, %218 : vector<8x32xf32>
      %221 = arith.divf %219, %220 : vector<8x32xf32>
      %222 = vector.extract_strided_slice %209 {offsets = [0, 64], sizes = [8, 32], strides = [1, 1]} : vector<8x128xf32> to vector<8x32xf32>
      %223 = math.tanh %222 : vector<8x32xf32>
      %224 = vector.extract_strided_slice %209 {offsets = [0, 96], sizes = [8, 32], strides = [1, 1]} : vector<8x128xf32> to vector<8x32xf32>
      %225 = arith.negf %224 : vector<8x32xf32>
      %226 = math.exp %225 : vector<8x32xf32>
      %cst_69 = arith.constant 1.000000e+00 : f32
      %227 = vector.broadcast %cst_69 : f32 to vector<8x32xf32>
      %228 = arith.addf %227, %226 : vector<8x32xf32>
      %229 = arith.divf %227, %228 : vector<8x32xf32>
      %230 = arith.mulf %221, %195 : vector<8x32xf32>
      %231 = arith.mulf %215, %223 : vector<8x32xf32>
      %232 = arith.addf %230, %231 : vector<8x32xf32>
      %233 = math.tanh %232 : vector<8x32xf32>
      %234 = arith.mulf %229, %233 : vector<8x32xf32>
      %235 = vector.shape_cast %234 : vector<8x32xf32> to vector<1x8x32xf32>
      %236 = arith.index_cast %201 : i32 to index
      %c0_70 = arith.constant 0 : index
      %c32_71 = arith.constant 32 : index
      %237 = vector.load %arg7[%236, %c0_70, %c32_71] : memref<8x8x64xf32, #tpu.memory_space<vmem>>, vector<1x8x32xf32>
      tpu.vector_store %arg7[%236, %c0_70, %c32_71], %235 {strides = array<i32>} : memref<8x8x64xf32, #tpu.memory_space<vmem>>, vector<1x8x32xf32>,
      %c6_i32 = arith.constant 6 : i32
      %c7_i32_72 = arith.constant 7 : i32
      %238 = arith.subi %c7_i32_72, %c6_i32 : i32
      %239 = arith.index_cast %238 : i32 to index
      %c0_73 = arith.constant 0 : index
      %c0_74 = arith.constant 0 : index
      %240 = vector.load %arg1[%239, %c0_73, %c0_74] : memref<8x8x64xf32, #tpu.memory_space<vmem>>, vector<1x8x64xf32>
      %241 = vector.shape_cast %240 : vector<1x8x64xf32> to vector<8x64xf32>
      %cst_75 = arith.constant dense<0.000000e+00> : vector<8x128xf32>
      %242 = tpu.matmul %241, %1, %cst_75 {dimension_numbers = #tpu.dot_dimension_numbers<[1], [0], [0], [1], [0, 0, 1, 1], [], []>} : vector<8x64xf32>, vector<64x128xf32>, vector<8x128xf32> -> vector<8x128xf32>
      %cst_76 = arith.constant dense<0.000000e+00> : vector<8x128xf32>
      %243 = tpu.matmul %234, %3, %cst_76 {dimension_numbers = #tpu.dot_dimension_numbers<[1], [0], [0], [1], [0, 0, 1, 1], [], []>} : vector<8x32xf32>, vector<32x128xf32>, vector<8x128xf32> -> vector<8x128xf32>
      %244 = arith.addf %242, %243 : vector<8x128xf32>
      %245 = vector.broadcast %5 : vector<1x128xf32> to vector<8x128xf32>
      %246 = arith.addf %244, %245 : vector<8x128xf32>
      %247 = vector.extract_strided_slice %246 {offsets = [0, 0], sizes = [8, 32], strides = [1, 1]} : vector<8x128xf32> to vector<8x32xf32>
      %248 = arith.negf %247 : vector<8x32xf32>
      %249 = math.exp %248 : vector<8x32xf32>
      %cst_77 = arith.constant 1.000000e+00 : f32
      %250 = vector.broadcast %cst_77 : f32 to vector<8x32xf32>
      %251 = arith.addf %250, %249 : vector<8x32xf32>
      %252 = arith.divf %250, %251 : vector<8x32xf32>
      %253 = vector.extract_strided_slice %246 {offsets = [0, 32], sizes = [8, 32], strides = [1, 1]} : vector<8x128xf32> to vector<8x32xf32>
      %254 = arith.negf %253 : vector<8x32xf32>
      %255 = math.exp %254 : vector<8x32xf32>
      %cst_78 = arith.constant 1.000000e+00 : f32
      %256 = vector.broadcast %cst_78 : f32 to vector<8x32xf32>
      %257 = arith.addf %256, %255 : vector<8x32xf32>
      %258 = arith.divf %256, %257 : vector<8x32xf32>
      %259 = vector.extract_strided_slice %246 {offsets = [0, 64], sizes = [8, 32], strides = [1, 1]} : vector<8x128xf32> to vector<8x32xf32>
      %260 = math.tanh %259 : vector<8x32xf32>
      %261 = vector.extract_strided_slice %246 {offsets = [0, 96], sizes = [8, 32], strides = [1, 1]} : vector<8x128xf32> to vector<8x32xf32>
      %262 = arith.negf %261 : vector<8x32xf32>
      %263 = math.exp %262 : vector<8x32xf32>
      %cst_79 = arith.constant 1.000000e+00 : f32
      %264 = vector.broadcast %cst_79 : f32 to vector<8x32xf32>
      %265 = arith.addf %264, %263 : vector<8x32xf32>
      %266 = arith.divf %264, %265 : vector<8x32xf32>
      %267 = arith.mulf %258, %232 : vector<8x32xf32>
      %268 = arith.mulf %252, %260 : vector<8x32xf32>
      %269 = arith.addf %267, %268 : vector<8x32xf32>
      %270 = math.tanh %269 : vector<8x32xf32>
      %271 = arith.mulf %266, %270 : vector<8x32xf32>
      %272 = vector.shape_cast %271 : vector<8x32xf32> to vector<1x8x32xf32>
      %273 = arith.index_cast %238 : i32 to index
      %c0_80 = arith.constant 0 : index
      %c32_81 = arith.constant 32 : index
      %274 = vector.load %arg7[%273, %c0_80, %c32_81] : memref<8x8x64xf32, #tpu.memory_space<vmem>>, vector<1x8x32xf32>
      tpu.vector_store %arg7[%273, %c0_80, %c32_81], %272 {strides = array<i32>} : memref<8x8x64xf32, #tpu.memory_space<vmem>>, vector<1x8x32xf32>,
      %c7_i32_82 = arith.constant 7 : i32
      %c7_i32_83 = arith.constant 7 : i32
      %275 = arith.subi %c7_i32_83, %c7_i32_82 : i32
      %276 = arith.index_cast %275 : i32 to index
      %c0_84 = arith.constant 0 : index
      %c0_85 = arith.constant 0 : index
      %277 = vector.load %arg1[%276, %c0_84, %c0_85] : memref<8x8x64xf32, #tpu.memory_space<vmem>>, vector<1x8x64xf32>
      %278 = vector.shape_cast %277 : vector<1x8x64xf32> to vector<8x64xf32>
      %cst_86 = arith.constant dense<0.000000e+00> : vector<8x128xf32>
      %279 = tpu.matmul %278, %1, %cst_86 {dimension_numbers = #tpu.dot_dimension_numbers<[1], [0], [0], [1], [0, 0, 1, 1], [], []>} : vector<8x64xf32>, vector<64x128xf32>, vector<8x128xf32> -> vector<8x128xf32>
      %cst_87 = arith.constant dense<0.000000e+00> : vector<8x128xf32>
      %280 = tpu.matmul %271, %3, %cst_87 {dimension_numbers = #tpu.dot_dimension_numbers<[1], [0], [0], [1], [0, 0, 1, 1], [], []>} : vector<8x32xf32>, vector<32x128xf32>, vector<8x128xf32> -> vector<8x128xf32>
      %281 = arith.addf %279, %280 : vector<8x128xf32>
      %282 = vector.broadcast %5 : vector<1x128xf32> to vector<8x128xf32>
      %283 = arith.addf %281, %282 : vector<8x128xf32>
      %284 = vector.extract_strided_slice %283 {offsets = [0, 0], sizes = [8, 32], strides = [1, 1]} : vector<8x128xf32> to vector<8x32xf32>
      %285 = arith.negf %284 : vector<8x32xf32>
      %286 = math.exp %285 : vector<8x32xf32>
      %cst_88 = arith.constant 1.000000e+00 : f32
      %287 = vector.broadcast %cst_88 : f32 to vector<8x32xf32>
      %288 = arith.addf %287, %286 : vector<8x32xf32>
      %289 = arith.divf %287, %288 : vector<8x32xf32>
      %290 = vector.extract_strided_slice %283 {offsets = [0, 32], sizes = [8, 32], strides = [1, 1]} : vector<8x128xf32> to vector<8x32xf32>
      %291 = arith.negf %290 : vector<8x32xf32>
      %292 = math.exp %291 : vector<8x32xf32>
      %cst_89 = arith.constant 1.000000e+00 : f32
      %293 = vector.broadcast %cst_89 : f32 to vector<8x32xf32>
      %294 = arith.addf %293, %292 : vector<8x32xf32>
      %295 = arith.divf %293, %294 : vector<8x32xf32>
      %296 = vector.extract_strided_slice %283 {offsets = [0, 64], sizes = [8, 32], strides = [1, 1]} : vector<8x128xf32> to vector<8x32xf32>
      %297 = math.tanh %296 : vector<8x32xf32>
      %298 = vector.extract_strided_slice %283 {offsets = [0, 96], sizes = [8, 32], strides = [1, 1]} : vector<8x128xf32> to vector<8x32xf32>
      %299 = arith.negf %298 : vector<8x32xf32>
      %300 = math.exp %299 : vector<8x32xf32>
      %cst_90 = arith.constant 1.000000e+00 : f32
      %301 = vector.broadcast %cst_90 : f32 to vector<8x32xf32>
      %302 = arith.addf %301, %300 : vector<8x32xf32>
      %303 = arith.divf %301, %302 : vector<8x32xf32>
      %304 = arith.mulf %295, %269 : vector<8x32xf32>
      %305 = arith.mulf %289, %297 : vector<8x32xf32>
      %306 = arith.addf %304, %305 : vector<8x32xf32>
      %307 = math.tanh %306 : vector<8x32xf32>
      %308 = arith.mulf %303, %307 : vector<8x32xf32>
      %309 = vector.shape_cast %308 : vector<8x32xf32> to vector<1x8x32xf32>
      %310 = arith.index_cast %275 : i32 to index
      %c0_91 = arith.constant 0 : index
      %c32_92 = arith.constant 32 : index
      %311 = vector.load %arg7[%310, %c0_91, %c32_92] : memref<8x8x64xf32, #tpu.memory_space<vmem>>, vector<1x8x32xf32>
      tpu.vector_store %arg7[%310, %c0_91, %c32_92], %309 {strides = array<i32>} : memref<8x8x64xf32, #tpu.memory_space<vmem>>, vector<1x8x32xf32>,
      %c8_i32 = arith.constant 8 : i32
    } else {
    }
    %c1_i32_10 = arith.constant 1 : i32
    %12 = arith.cmpi eq, %arg0, %c1_i32_10 : i32
    %13 = arith.extui %12 : i1 to i32
    %c0_i32_11 = arith.constant 0 : i32
    %14 = arith.cmpi ne, %13, %c0_i32_11 : i32
    scf.if %14 {
      %c0_12 = arith.constant 0 : index
      %c0_13 = arith.constant 0 : index
      %c0_14 = arith.constant 0 : index
      %15 = vector.load %arg7[%c0_12, %c0_13, %c0_14] : memref<8x8x64xf32, #tpu.memory_space<vmem>>, vector<1x8x64xf32>
      %16 = vector.shape_cast %15 : vector<1x8x64xf32> to vector<8x64xf32>
      %c7 = arith.constant 7 : index
      %c0_15 = arith.constant 0 : index
      %c0_16 = arith.constant 0 : index
      %17 = vector.load %arg7[%c7, %c0_15, %c0_16] : memref<8x8x64xf32, #tpu.memory_space<vmem>>, vector<1x8x64xf32>
      %18 = vector.shape_cast %17 : vector<1x8x64xf32> to vector<8x64xf32>
      %19 = tpu.concatenate %16, %18 in 1 : vector<8x64xf32>, vector<8x64xf32> -> vector<8x128xf32>
      %c0_17 = arith.constant 0 : index
      %c0_18 = arith.constant 0 : index
      %20 = vector.load %arg5[%c0_17, %c0_18] : memref<128x2xf32, #tpu.memory_space<vmem>>, vector<128x2xf32>
      %cst = arith.constant dense<0.000000e+00> : vector<8x2xf32>
      %21 = tpu.matmul %19, %20, %cst {dimension_numbers = #tpu.dot_dimension_numbers<[1], [0], [0], [1], [0, 0, 1, 1], [], []>} : vector<8x128xf32>, vector<128x2xf32>, vector<8x2xf32> -> vector<8x2xf32>
      %c0_19 = arith.constant 0 : index
      %c0_20 = arith.constant 0 : index
      %22 = vector.load %arg6[%c0_19, %c0_20] : memref<1x2xf32, #tpu.memory_space<vmem>>, vector<1x2xf32>
      %23 = vector.broadcast %22 : vector<1x2xf32> to vector<8x2xf32>
      %24 = arith.addf %21, %23 : vector<8x2xf32>
      %c0_21 = arith.constant 0 : index
      %c0_22 = arith.constant 0 : index
      %25 = vector.load %arg8[%c0_21, %c0_22] : memref<8x2xf32, #tpu.memory_space<vmem>>, vector<8x2xf32>
      tpu.vector_store %arg8[%c0_21, %c0_22], %24 {strides = array<i32>} : memref<8x2xf32, #tpu.memory_space<vmem>>, vector<8x2xf32>,
    } else {
    }
    return
  }
  func.func @transform_0(%arg0: i32) -> (i32, i32, i32) {
    %c0_i32 = arith.constant 0 : i32
    %c0_i32_0 = arith.constant 0 : i32
    %c0_i32_1 = arith.constant 0 : i32
    %c0_i32_2 = arith.constant 0 : i32
    return %c0_i32, %c0_i32_0, %c0_i32_1 : i32, i32, i32
  }
  func.func @transform_1(%arg0: i32) -> (i32, i32, i32) {
    %c0_i32 = arith.constant 0 : i32
    %c0_i32_0 = arith.constant 0 : i32
    %c0_i32_1 = arith.constant 0 : i32
    return %arg0, %c0_i32, %c0_i32_0 : i32, i32, i32
  }
  func.func @transform_2(%arg0: i32) -> (i32, i32, i32) {
    %c0_i32 = arith.constant 0 : i32
    %c0_i32_0 = arith.constant 0 : i32
    %c0_i32_1 = arith.constant 0 : i32
    return %arg0, %c0_i32, %c0_i32_0 : i32, i32, i32
  }
  func.func @transform_3(%arg0: i32) -> (i32, i32, i32) {
    %c0_i32 = arith.constant 0 : i32
    %c0_i32_0 = arith.constant 0 : i32
    %c0_i32_1 = arith.constant 0 : i32
    return %arg0, %c0_i32, %c0_i32_0 : i32, i32, i32
  }
  func.func @transform_4(%arg0: i32) -> (i32, i32) {
    %c0_i32 = arith.constant 0 : i32
    %c0_i32_0 = arith.constant 0 : i32
    %c0_i32_1 = arith.constant 0 : i32
    return %c0_i32, %c0_i32_0 : i32, i32
  }
  func.func @transform_5(%arg0: i32) -> (i32, i32) {
    %c0_i32 = arith.constant 0 : i32
    %c0_i32_0 = arith.constant 0 : i32
    %c0_i32_1 = arith.constant 0 : i32
    return %c0_i32, %c0_i32_0 : i32, i32
  }
  func.func @transform_6(%arg0: i32) -> (i32, i32, i32) {
    %c0_i32 = arith.constant 0 : i32
    %c0_i32_0 = arith.constant 0 : i32
    %c0_i32_1 = arith.constant 0 : i32
    %c0_i32_2 = arith.constant 0 : i32
    return %c0_i32, %c0_i32_0, %c0_i32_1 : i32, i32, i32
  }
  func.func @transform_7(%arg0: i32) -> (i32, i32) {
    %c0_i32 = arith.constant 0 : i32
    %c0_i32_0 = arith.constant 0 : i32
    %c0_i32_1 = arith.constant 0 : i32
    return %c0_i32, %c0_i32_0 : i32, i32
  }
}

module attributes {stable_mosaic.version = 11 : i64} {
  func.func @_bilstm_layer_kernel(%arg0: i32, %arg1: memref<8x8x32xf32, #tpu.memory_space<vmem>>, %arg2: memref<1x32x128xf32, #tpu.memory_space<vmem>>, %arg3: memref<1x32x128xf32, #tpu.memory_space<vmem>>, %arg4: memref<1x1x128xf32, #tpu.memory_space<vmem>>, %arg5: memref<8x8x64xf32, #tpu.memory_space<vmem>>) attributes {dimension_semantics = [#tpu.dimension_semantics<arbitrary>], iteration_bounds = array<i64: 2>, scalar_prefetch = 0 : i64, scratch_operands = 0 : i64, tpu.core_type = #tpu.core_type<tc>, window_params = [{pipeline_mode = #tpu.pipeline_mode<synchronous>, transform_indices = @transform_0, window_bounds = array<i64: 8, 8, 32>}, {transform_indices = @transform_1, window_bounds = array<i64: 1, 32, 128>}, {transform_indices = @transform_2, window_bounds = array<i64: 1, 32, 128>}, {transform_indices = @transform_3, window_bounds = array<i64: 1, 1, 128>}, {pipeline_mode = #tpu.pipeline_mode<synchronous>, transform_indices = @transform_4, window_bounds = array<i64: 8, 8, 64>}]} {
    %c0 = arith.constant 0 : index
    %c0_0 = arith.constant 0 : index
    %c0_1 = arith.constant 0 : index
    %0 = vector.load %arg2[%c0, %c0_0, %c0_1] : memref<1x32x128xf32, #tpu.memory_space<vmem>>, vector<1x32x128xf32>
    %1 = vector.shape_cast %0 : vector<1x32x128xf32> to vector<32x128xf32>
    %c0_2 = arith.constant 0 : index
    %c0_3 = arith.constant 0 : index
    %c0_4 = arith.constant 0 : index
    %2 = vector.load %arg3[%c0_2, %c0_3, %c0_4] : memref<1x32x128xf32, #tpu.memory_space<vmem>>, vector<1x32x128xf32>
    %3 = vector.shape_cast %2 : vector<1x32x128xf32> to vector<32x128xf32>
    %c0_5 = arith.constant 0 : index
    %c0_6 = arith.constant 0 : index
    %c0_7 = arith.constant 0 : index
    %4 = vector.load %arg4[%c0_5, %c0_6, %c0_7] : memref<1x1x128xf32, #tpu.memory_space<vmem>>, vector<1x1x128xf32>
    %5 = vector.shape_cast %4 : vector<1x1x128xf32> to vector<1x128xf32>
    %c0_i32 = arith.constant 0 : i32
    %6 = arith.cmpi eq, %arg0, %c0_i32 : i32
    %7 = arith.extui %6 : i1 to i32
    %c0_i32_8 = arith.constant 0 : i32
    %8 = arith.cmpi ne, %7, %c0_i32_8 : i32
    scf.if %8 {
      %cst = arith.constant 0.000000e+00 : f32
      %12 = vector.broadcast %cst : f32 to vector<8x32xf32>
      %c0_i32_10 = arith.constant 0 : i32
      %13 = arith.index_cast %c0_i32_10 : i32 to index
      %c0_11 = arith.constant 0 : index
      %c0_12 = arith.constant 0 : index
      %14 = vector.load %arg1[%13, %c0_11, %c0_12] : memref<8x8x32xf32, #tpu.memory_space<vmem>>, vector<1x8x32xf32>
      %15 = vector.shape_cast %14 : vector<1x8x32xf32> to vector<8x32xf32>
      %cst_13 = arith.constant dense<0.000000e+00> : vector<8x128xf32>
      %16 = tpu.matmul %15, %1, %cst_13 {dimension_numbers = #tpu.dot_dimension_numbers<[1], [0], [0], [1], [0, 0, 1, 1], [], []>} : vector<8x32xf32>, vector<32x128xf32>, vector<8x128xf32> -> vector<8x128xf32>
      %cst_14 = arith.constant dense<0.000000e+00> : vector<8x128xf32>
      %17 = tpu.matmul %12, %3, %cst_14 {dimension_numbers = #tpu.dot_dimension_numbers<[1], [0], [0], [1], [0, 0, 1, 1], [], []>} : vector<8x32xf32>, vector<32x128xf32>, vector<8x128xf32> -> vector<8x128xf32>
      %18 = arith.addf %16, %17 : vector<8x128xf32>
      %19 = vector.broadcast %5 : vector<1x128xf32> to vector<8x128xf32>
      %20 = arith.addf %18, %19 : vector<8x128xf32>
      %21 = vector.extract_strided_slice %20 {offsets = [0, 0], sizes = [8, 32], strides = [1, 1]} : vector<8x128xf32> to vector<8x32xf32>
      %22 = arith.negf %21 : vector<8x32xf32>
      %23 = math.exp %22 : vector<8x32xf32>
      %cst_15 = arith.constant 1.000000e+00 : f32
      %24 = vector.broadcast %cst_15 : f32 to vector<8x32xf32>
      %25 = arith.addf %24, %23 : vector<8x32xf32>
      %26 = arith.divf %24, %25 : vector<8x32xf32>
      %27 = vector.extract_strided_slice %20 {offsets = [0, 32], sizes = [8, 32], strides = [1, 1]} : vector<8x128xf32> to vector<8x32xf32>
      %28 = arith.negf %27 : vector<8x32xf32>
      %29 = math.exp %28 : vector<8x32xf32>
      %cst_16 = arith.constant 1.000000e+00 : f32
      %30 = vector.broadcast %cst_16 : f32 to vector<8x32xf32>
      %31 = arith.addf %30, %29 : vector<8x32xf32>
      %32 = arith.divf %30, %31 : vector<8x32xf32>
      %33 = vector.extract_strided_slice %20 {offsets = [0, 64], sizes = [8, 32], strides = [1, 1]} : vector<8x128xf32> to vector<8x32xf32>
      %34 = math.tanh %33 : vector<8x32xf32>
      %35 = vector.extract_strided_slice %20 {offsets = [0, 96], sizes = [8, 32], strides = [1, 1]} : vector<8x128xf32> to vector<8x32xf32>
      %36 = arith.negf %35 : vector<8x32xf32>
      %37 = math.exp %36 : vector<8x32xf32>
      %cst_17 = arith.constant 1.000000e+00 : f32
      %38 = vector.broadcast %cst_17 : f32 to vector<8x32xf32>
      %39 = arith.addf %38, %37 : vector<8x32xf32>
      %40 = arith.divf %38, %39 : vector<8x32xf32>
      %41 = arith.mulf %32, %12 : vector<8x32xf32>
      %42 = arith.mulf %26, %34 : vector<8x32xf32>
      %43 = arith.addf %41, %42 : vector<8x32xf32>
      %44 = math.tanh %43 : vector<8x32xf32>
      %45 = arith.mulf %40, %44 : vector<8x32xf32>
      %46 = vector.shape_cast %45 : vector<8x32xf32> to vector<1x8x32xf32>
      %47 = arith.index_cast %c0_i32_10 : i32 to index
      %c0_18 = arith.constant 0 : index
      %c0_19 = arith.constant 0 : index
      %48 = vector.load %arg5[%47, %c0_18, %c0_19] : memref<8x8x64xf32, #tpu.memory_space<vmem>>, vector<1x8x32xf32>
      tpu.vector_store %arg5[%47, %c0_18, %c0_19], %46 {strides = array<i32>} : memref<8x8x64xf32, #tpu.memory_space<vmem>>, vector<1x8x32xf32>,
      %c1_i32_20 = arith.constant 1 : i32
      %49 = arith.index_cast %c1_i32_20 : i32 to index
      %c0_21 = arith.constant 0 : index
      %c0_22 = arith.constant 0 : index
      %50 = vector.load %arg1[%49, %c0_21, %c0_22] : memref<8x8x32xf32, #tpu.memory_space<vmem>>, vector<1x8x32xf32>
      %51 = vector.shape_cast %50 : vector<1x8x32xf32> to vector<8x32xf32>
      %cst_23 = arith.constant dense<0.000000e+00> : vector<8x128xf32>
      %52 = tpu.matmul %51, %1, %cst_23 {dimension_numbers = #tpu.dot_dimension_numbers<[1], [0], [0], [1], [0, 0, 1, 1], [], []>} : vector<8x32xf32>, vector<32x128xf32>, vector<8x128xf32> -> vector<8x128xf32>
      %cst_24 = arith.constant dense<0.000000e+00> : vector<8x128xf32>
      %53 = tpu.matmul %45, %3, %cst_24 {dimension_numbers = #tpu.dot_dimension_numbers<[1], [0], [0], [1], [0, 0, 1, 1], [], []>} : vector<8x32xf32>, vector<32x128xf32>, vector<8x128xf32> -> vector<8x128xf32>
      %54 = arith.addf %52, %53 : vector<8x128xf32>
      %55 = vector.broadcast %5 : vector<1x128xf32> to vector<8x128xf32>
      %56 = arith.addf %54, %55 : vector<8x128xf32>
      %57 = vector.extract_strided_slice %56 {offsets = [0, 0], sizes = [8, 32], strides = [1, 1]} : vector<8x128xf32> to vector<8x32xf32>
      %58 = arith.negf %57 : vector<8x32xf32>
      %59 = math.exp %58 : vector<8x32xf32>
      %cst_25 = arith.constant 1.000000e+00 : f32
      %60 = vector.broadcast %cst_25 : f32 to vector<8x32xf32>
      %61 = arith.addf %60, %59 : vector<8x32xf32>
      %62 = arith.divf %60, %61 : vector<8x32xf32>
      %63 = vector.extract_strided_slice %56 {offsets = [0, 32], sizes = [8, 32], strides = [1, 1]} : vector<8x128xf32> to vector<8x32xf32>
      %64 = arith.negf %63 : vector<8x32xf32>
      %65 = math.exp %64 : vector<8x32xf32>
      %cst_26 = arith.constant 1.000000e+00 : f32
      %66 = vector.broadcast %cst_26 : f32 to vector<8x32xf32>
      %67 = arith.addf %66, %65 : vector<8x32xf32>
      %68 = arith.divf %66, %67 : vector<8x32xf32>
      %69 = vector.extract_strided_slice %56 {offsets = [0, 64], sizes = [8, 32], strides = [1, 1]} : vector<8x128xf32> to vector<8x32xf32>
      %70 = math.tanh %69 : vector<8x32xf32>
      %71 = vector.extract_strided_slice %56 {offsets = [0, 96], sizes = [8, 32], strides = [1, 1]} : vector<8x128xf32> to vector<8x32xf32>
      %72 = arith.negf %71 : vector<8x32xf32>
      %73 = math.exp %72 : vector<8x32xf32>
      %cst_27 = arith.constant 1.000000e+00 : f32
      %74 = vector.broadcast %cst_27 : f32 to vector<8x32xf32>
      %75 = arith.addf %74, %73 : vector<8x32xf32>
      %76 = arith.divf %74, %75 : vector<8x32xf32>
      %77 = arith.mulf %68, %43 : vector<8x32xf32>
      %78 = arith.mulf %62, %70 : vector<8x32xf32>
      %79 = arith.addf %77, %78 : vector<8x32xf32>
      %80 = math.tanh %79 : vector<8x32xf32>
      %81 = arith.mulf %76, %80 : vector<8x32xf32>
      %82 = vector.shape_cast %81 : vector<8x32xf32> to vector<1x8x32xf32>
      %83 = arith.index_cast %c1_i32_20 : i32 to index
      %c0_28 = arith.constant 0 : index
      %c0_29 = arith.constant 0 : index
      %84 = vector.load %arg5[%83, %c0_28, %c0_29] : memref<8x8x64xf32, #tpu.memory_space<vmem>>, vector<1x8x32xf32>
      tpu.vector_store %arg5[%83, %c0_28, %c0_29], %82 {strides = array<i32>} : memref<8x8x64xf32, #tpu.memory_space<vmem>>, vector<1x8x32xf32>,
      %c2_i32 = arith.constant 2 : i32
      %85 = arith.index_cast %c2_i32 : i32 to index
      %c0_30 = arith.constant 0 : index
      %c0_31 = arith.constant 0 : index
      %86 = vector.load %arg1[%85, %c0_30, %c0_31] : memref<8x8x32xf32, #tpu.memory_space<vmem>>, vector<1x8x32xf32>
      %87 = vector.shape_cast %86 : vector<1x8x32xf32> to vector<8x32xf32>
      %cst_32 = arith.constant dense<0.000000e+00> : vector<8x128xf32>
      %88 = tpu.matmul %87, %1, %cst_32 {dimension_numbers = #tpu.dot_dimension_numbers<[1], [0], [0], [1], [0, 0, 1, 1], [], []>} : vector<8x32xf32>, vector<32x128xf32>, vector<8x128xf32> -> vector<8x128xf32>
      %cst_33 = arith.constant dense<0.000000e+00> : vector<8x128xf32>
      %89 = tpu.matmul %81, %3, %cst_33 {dimension_numbers = #tpu.dot_dimension_numbers<[1], [0], [0], [1], [0, 0, 1, 1], [], []>} : vector<8x32xf32>, vector<32x128xf32>, vector<8x128xf32> -> vector<8x128xf32>
      %90 = arith.addf %88, %89 : vector<8x128xf32>
      %91 = vector.broadcast %5 : vector<1x128xf32> to vector<8x128xf32>
      %92 = arith.addf %90, %91 : vector<8x128xf32>
      %93 = vector.extract_strided_slice %92 {offsets = [0, 0], sizes = [8, 32], strides = [1, 1]} : vector<8x128xf32> to vector<8x32xf32>
      %94 = arith.negf %93 : vector<8x32xf32>
      %95 = math.exp %94 : vector<8x32xf32>
      %cst_34 = arith.constant 1.000000e+00 : f32
      %96 = vector.broadcast %cst_34 : f32 to vector<8x32xf32>
      %97 = arith.addf %96, %95 : vector<8x32xf32>
      %98 = arith.divf %96, %97 : vector<8x32xf32>
      %99 = vector.extract_strided_slice %92 {offsets = [0, 32], sizes = [8, 32], strides = [1, 1]} : vector<8x128xf32> to vector<8x32xf32>
      %100 = arith.negf %99 : vector<8x32xf32>
      %101 = math.exp %100 : vector<8x32xf32>
      %cst_35 = arith.constant 1.000000e+00 : f32
      %102 = vector.broadcast %cst_35 : f32 to vector<8x32xf32>
      %103 = arith.addf %102, %101 : vector<8x32xf32>
      %104 = arith.divf %102, %103 : vector<8x32xf32>
      %105 = vector.extract_strided_slice %92 {offsets = [0, 64], sizes = [8, 32], strides = [1, 1]} : vector<8x128xf32> to vector<8x32xf32>
      %106 = math.tanh %105 : vector<8x32xf32>
      %107 = vector.extract_strided_slice %92 {offsets = [0, 96], sizes = [8, 32], strides = [1, 1]} : vector<8x128xf32> to vector<8x32xf32>
      %108 = arith.negf %107 : vector<8x32xf32>
      %109 = math.exp %108 : vector<8x32xf32>
      %cst_36 = arith.constant 1.000000e+00 : f32
      %110 = vector.broadcast %cst_36 : f32 to vector<8x32xf32>
      %111 = arith.addf %110, %109 : vector<8x32xf32>
      %112 = arith.divf %110, %111 : vector<8x32xf32>
      %113 = arith.mulf %104, %79 : vector<8x32xf32>
      %114 = arith.mulf %98, %106 : vector<8x32xf32>
      %115 = arith.addf %113, %114 : vector<8x32xf32>
      %116 = math.tanh %115 : vector<8x32xf32>
      %117 = arith.mulf %112, %116 : vector<8x32xf32>
      %118 = vector.shape_cast %117 : vector<8x32xf32> to vector<1x8x32xf32>
      %119 = arith.index_cast %c2_i32 : i32 to index
      %c0_37 = arith.constant 0 : index
      %c0_38 = arith.constant 0 : index
      %120 = vector.load %arg5[%119, %c0_37, %c0_38] : memref<8x8x64xf32, #tpu.memory_space<vmem>>, vector<1x8x32xf32>
      tpu.vector_store %arg5[%119, %c0_37, %c0_38], %118 {strides = array<i32>} : memref<8x8x64xf32, #tpu.memory_space<vmem>>, vector<1x8x32xf32>,
      %c3_i32 = arith.constant 3 : i32
      %121 = arith.index_cast %c3_i32 : i32 to index
      %c0_39 = arith.constant 0 : index
      %c0_40 = arith.constant 0 : index
      %122 = vector.load %arg1[%121, %c0_39, %c0_40] : memref<8x8x32xf32, #tpu.memory_space<vmem>>, vector<1x8x32xf32>
      %123 = vector.shape_cast %122 : vector<1x8x32xf32> to vector<8x32xf32>
      %cst_41 = arith.constant dense<0.000000e+00> : vector<8x128xf32>
      %124 = tpu.matmul %123, %1, %cst_41 {dimension_numbers = #tpu.dot_dimension_numbers<[1], [0], [0], [1], [0, 0, 1, 1], [], []>} : vector<8x32xf32>, vector<32x128xf32>, vector<8x128xf32> -> vector<8x128xf32>
      %cst_42 = arith.constant dense<0.000000e+00> : vector<8x128xf32>
      %125 = tpu.matmul %117, %3, %cst_42 {dimension_numbers = #tpu.dot_dimension_numbers<[1], [0], [0], [1], [0, 0, 1, 1], [], []>} : vector<8x32xf32>, vector<32x128xf32>, vector<8x128xf32> -> vector<8x128xf32>
      %126 = arith.addf %124, %125 : vector<8x128xf32>
      %127 = vector.broadcast %5 : vector<1x128xf32> to vector<8x128xf32>
      %128 = arith.addf %126, %127 : vector<8x128xf32>
      %129 = vector.extract_strided_slice %128 {offsets = [0, 0], sizes = [8, 32], strides = [1, 1]} : vector<8x128xf32> to vector<8x32xf32>
      %130 = arith.negf %129 : vector<8x32xf32>
      %131 = math.exp %130 : vector<8x32xf32>
      %cst_43 = arith.constant 1.000000e+00 : f32
      %132 = vector.broadcast %cst_43 : f32 to vector<8x32xf32>
      %133 = arith.addf %132, %131 : vector<8x32xf32>
      %134 = arith.divf %132, %133 : vector<8x32xf32>
      %135 = vector.extract_strided_slice %128 {offsets = [0, 32], sizes = [8, 32], strides = [1, 1]} : vector<8x128xf32> to vector<8x32xf32>
      %136 = arith.negf %135 : vector<8x32xf32>
      %137 = math.exp %136 : vector<8x32xf32>
      %cst_44 = arith.constant 1.000000e+00 : f32
      %138 = vector.broadcast %cst_44 : f32 to vector<8x32xf32>
      %139 = arith.addf %138, %137 : vector<8x32xf32>
      %140 = arith.divf %138, %139 : vector<8x32xf32>
      %141 = vector.extract_strided_slice %128 {offsets = [0, 64], sizes = [8, 32], strides = [1, 1]} : vector<8x128xf32> to vector<8x32xf32>
      %142 = math.tanh %141 : vector<8x32xf32>
      %143 = vector.extract_strided_slice %128 {offsets = [0, 96], sizes = [8, 32], strides = [1, 1]} : vector<8x128xf32> to vector<8x32xf32>
      %144 = arith.negf %143 : vector<8x32xf32>
      %145 = math.exp %144 : vector<8x32xf32>
      %cst_45 = arith.constant 1.000000e+00 : f32
      %146 = vector.broadcast %cst_45 : f32 to vector<8x32xf32>
      %147 = arith.addf %146, %145 : vector<8x32xf32>
      %148 = arith.divf %146, %147 : vector<8x32xf32>
      %149 = arith.mulf %140, %115 : vector<8x32xf32>
      %150 = arith.mulf %134, %142 : vector<8x32xf32>
      %151 = arith.addf %149, %150 : vector<8x32xf32>
      %152 = math.tanh %151 : vector<8x32xf32>
      %153 = arith.mulf %148, %152 : vector<8x32xf32>
      %154 = vector.shape_cast %153 : vector<8x32xf32> to vector<1x8x32xf32>
      %155 = arith.index_cast %c3_i32 : i32 to index
      %c0_46 = arith.constant 0 : index
      %c0_47 = arith.constant 0 : index
      %156 = vector.load %arg5[%155, %c0_46, %c0_47] : memref<8x8x64xf32, #tpu.memory_space<vmem>>, vector<1x8x32xf32>
      tpu.vector_store %arg5[%155, %c0_46, %c0_47], %154 {strides = array<i32>} : memref<8x8x64xf32, #tpu.memory_space<vmem>>, vector<1x8x32xf32>,
      %c4_i32 = arith.constant 4 : i32
      %157 = arith.index_cast %c4_i32 : i32 to index
      %c0_48 = arith.constant 0 : index
      %c0_49 = arith.constant 0 : index
      %158 = vector.load %arg1[%157, %c0_48, %c0_49] : memref<8x8x32xf32, #tpu.memory_space<vmem>>, vector<1x8x32xf32>
      %159 = vector.shape_cast %158 : vector<1x8x32xf32> to vector<8x32xf32>
      %cst_50 = arith.constant dense<0.000000e+00> : vector<8x128xf32>
      %160 = tpu.matmul %159, %1, %cst_50 {dimension_numbers = #tpu.dot_dimension_numbers<[1], [0], [0], [1], [0, 0, 1, 1], [], []>} : vector<8x32xf32>, vector<32x128xf32>, vector<8x128xf32> -> vector<8x128xf32>
      %cst_51 = arith.constant dense<0.000000e+00> : vector<8x128xf32>
      %161 = tpu.matmul %153, %3, %cst_51 {dimension_numbers = #tpu.dot_dimension_numbers<[1], [0], [0], [1], [0, 0, 1, 1], [], []>} : vector<8x32xf32>, vector<32x128xf32>, vector<8x128xf32> -> vector<8x128xf32>
      %162 = arith.addf %160, %161 : vector<8x128xf32>
      %163 = vector.broadcast %5 : vector<1x128xf32> to vector<8x128xf32>
      %164 = arith.addf %162, %163 : vector<8x128xf32>
      %165 = vector.extract_strided_slice %164 {offsets = [0, 0], sizes = [8, 32], strides = [1, 1]} : vector<8x128xf32> to vector<8x32xf32>
      %166 = arith.negf %165 : vector<8x32xf32>
      %167 = math.exp %166 : vector<8x32xf32>
      %cst_52 = arith.constant 1.000000e+00 : f32
      %168 = vector.broadcast %cst_52 : f32 to vector<8x32xf32>
      %169 = arith.addf %168, %167 : vector<8x32xf32>
      %170 = arith.divf %168, %169 : vector<8x32xf32>
      %171 = vector.extract_strided_slice %164 {offsets = [0, 32], sizes = [8, 32], strides = [1, 1]} : vector<8x128xf32> to vector<8x32xf32>
      %172 = arith.negf %171 : vector<8x32xf32>
      %173 = math.exp %172 : vector<8x32xf32>
      %cst_53 = arith.constant 1.000000e+00 : f32
      %174 = vector.broadcast %cst_53 : f32 to vector<8x32xf32>
      %175 = arith.addf %174, %173 : vector<8x32xf32>
      %176 = arith.divf %174, %175 : vector<8x32xf32>
      %177 = vector.extract_strided_slice %164 {offsets = [0, 64], sizes = [8, 32], strides = [1, 1]} : vector<8x128xf32> to vector<8x32xf32>
      %178 = math.tanh %177 : vector<8x32xf32>
      %179 = vector.extract_strided_slice %164 {offsets = [0, 96], sizes = [8, 32], strides = [1, 1]} : vector<8x128xf32> to vector<8x32xf32>
      %180 = arith.negf %179 : vector<8x32xf32>
      %181 = math.exp %180 : vector<8x32xf32>
      %cst_54 = arith.constant 1.000000e+00 : f32
      %182 = vector.broadcast %cst_54 : f32 to vector<8x32xf32>
      %183 = arith.addf %182, %181 : vector<8x32xf32>
      %184 = arith.divf %182, %183 : vector<8x32xf32>
      %185 = arith.mulf %176, %151 : vector<8x32xf32>
      %186 = arith.mulf %170, %178 : vector<8x32xf32>
      %187 = arith.addf %185, %186 : vector<8x32xf32>
      %188 = math.tanh %187 : vector<8x32xf32>
      %189 = arith.mulf %184, %188 : vector<8x32xf32>
      %190 = vector.shape_cast %189 : vector<8x32xf32> to vector<1x8x32xf32>
      %191 = arith.index_cast %c4_i32 : i32 to index
      %c0_55 = arith.constant 0 : index
      %c0_56 = arith.constant 0 : index
      %192 = vector.load %arg5[%191, %c0_55, %c0_56] : memref<8x8x64xf32, #tpu.memory_space<vmem>>, vector<1x8x32xf32>
      tpu.vector_store %arg5[%191, %c0_55, %c0_56], %190 {strides = array<i32>} : memref<8x8x64xf32, #tpu.memory_space<vmem>>, vector<1x8x32xf32>,
      %c5_i32 = arith.constant 5 : i32
      %193 = arith.index_cast %c5_i32 : i32 to index
      %c0_57 = arith.constant 0 : index
      %c0_58 = arith.constant 0 : index
      %194 = vector.load %arg1[%193, %c0_57, %c0_58] : memref<8x8x32xf32, #tpu.memory_space<vmem>>, vector<1x8x32xf32>
      %195 = vector.shape_cast %194 : vector<1x8x32xf32> to vector<8x32xf32>
      %cst_59 = arith.constant dense<0.000000e+00> : vector<8x128xf32>
      %196 = tpu.matmul %195, %1, %cst_59 {dimension_numbers = #tpu.dot_dimension_numbers<[1], [0], [0], [1], [0, 0, 1, 1], [], []>} : vector<8x32xf32>, vector<32x128xf32>, vector<8x128xf32> -> vector<8x128xf32>
      %cst_60 = arith.constant dense<0.000000e+00> : vector<8x128xf32>
      %197 = tpu.matmul %189, %3, %cst_60 {dimension_numbers = #tpu.dot_dimension_numbers<[1], [0], [0], [1], [0, 0, 1, 1], [], []>} : vector<8x32xf32>, vector<32x128xf32>, vector<8x128xf32> -> vector<8x128xf32>
      %198 = arith.addf %196, %197 : vector<8x128xf32>
      %199 = vector.broadcast %5 : vector<1x128xf32> to vector<8x128xf32>
      %200 = arith.addf %198, %199 : vector<8x128xf32>
      %201 = vector.extract_strided_slice %200 {offsets = [0, 0], sizes = [8, 32], strides = [1, 1]} : vector<8x128xf32> to vector<8x32xf32>
      %202 = arith.negf %201 : vector<8x32xf32>
      %203 = math.exp %202 : vector<8x32xf32>
      %cst_61 = arith.constant 1.000000e+00 : f32
      %204 = vector.broadcast %cst_61 : f32 to vector<8x32xf32>
      %205 = arith.addf %204, %203 : vector<8x32xf32>
      %206 = arith.divf %204, %205 : vector<8x32xf32>
      %207 = vector.extract_strided_slice %200 {offsets = [0, 32], sizes = [8, 32], strides = [1, 1]} : vector<8x128xf32> to vector<8x32xf32>
      %208 = arith.negf %207 : vector<8x32xf32>
      %209 = math.exp %208 : vector<8x32xf32>
      %cst_62 = arith.constant 1.000000e+00 : f32
      %210 = vector.broadcast %cst_62 : f32 to vector<8x32xf32>
      %211 = arith.addf %210, %209 : vector<8x32xf32>
      %212 = arith.divf %210, %211 : vector<8x32xf32>
      %213 = vector.extract_strided_slice %200 {offsets = [0, 64], sizes = [8, 32], strides = [1, 1]} : vector<8x128xf32> to vector<8x32xf32>
      %214 = math.tanh %213 : vector<8x32xf32>
      %215 = vector.extract_strided_slice %200 {offsets = [0, 96], sizes = [8, 32], strides = [1, 1]} : vector<8x128xf32> to vector<8x32xf32>
      %216 = arith.negf %215 : vector<8x32xf32>
      %217 = math.exp %216 : vector<8x32xf32>
      %cst_63 = arith.constant 1.000000e+00 : f32
      %218 = vector.broadcast %cst_63 : f32 to vector<8x32xf32>
      %219 = arith.addf %218, %217 : vector<8x32xf32>
      %220 = arith.divf %218, %219 : vector<8x32xf32>
      %221 = arith.mulf %212, %187 : vector<8x32xf32>
      %222 = arith.mulf %206, %214 : vector<8x32xf32>
      %223 = arith.addf %221, %222 : vector<8x32xf32>
      %224 = math.tanh %223 : vector<8x32xf32>
      %225 = arith.mulf %220, %224 : vector<8x32xf32>
      %226 = vector.shape_cast %225 : vector<8x32xf32> to vector<1x8x32xf32>
      %227 = arith.index_cast %c5_i32 : i32 to index
      %c0_64 = arith.constant 0 : index
      %c0_65 = arith.constant 0 : index
      %228 = vector.load %arg5[%227, %c0_64, %c0_65] : memref<8x8x64xf32, #tpu.memory_space<vmem>>, vector<1x8x32xf32>
      tpu.vector_store %arg5[%227, %c0_64, %c0_65], %226 {strides = array<i32>} : memref<8x8x64xf32, #tpu.memory_space<vmem>>, vector<1x8x32xf32>,
      %c6_i32 = arith.constant 6 : i32
      %229 = arith.index_cast %c6_i32 : i32 to index
      %c0_66 = arith.constant 0 : index
      %c0_67 = arith.constant 0 : index
      %230 = vector.load %arg1[%229, %c0_66, %c0_67] : memref<8x8x32xf32, #tpu.memory_space<vmem>>, vector<1x8x32xf32>
      %231 = vector.shape_cast %230 : vector<1x8x32xf32> to vector<8x32xf32>
      %cst_68 = arith.constant dense<0.000000e+00> : vector<8x128xf32>
      %232 = tpu.matmul %231, %1, %cst_68 {dimension_numbers = #tpu.dot_dimension_numbers<[1], [0], [0], [1], [0, 0, 1, 1], [], []>} : vector<8x32xf32>, vector<32x128xf32>, vector<8x128xf32> -> vector<8x128xf32>
      %cst_69 = arith.constant dense<0.000000e+00> : vector<8x128xf32>
      %233 = tpu.matmul %225, %3, %cst_69 {dimension_numbers = #tpu.dot_dimension_numbers<[1], [0], [0], [1], [0, 0, 1, 1], [], []>} : vector<8x32xf32>, vector<32x128xf32>, vector<8x128xf32> -> vector<8x128xf32>
      %234 = arith.addf %232, %233 : vector<8x128xf32>
      %235 = vector.broadcast %5 : vector<1x128xf32> to vector<8x128xf32>
      %236 = arith.addf %234, %235 : vector<8x128xf32>
      %237 = vector.extract_strided_slice %236 {offsets = [0, 0], sizes = [8, 32], strides = [1, 1]} : vector<8x128xf32> to vector<8x32xf32>
      %238 = arith.negf %237 : vector<8x32xf32>
      %239 = math.exp %238 : vector<8x32xf32>
      %cst_70 = arith.constant 1.000000e+00 : f32
      %240 = vector.broadcast %cst_70 : f32 to vector<8x32xf32>
      %241 = arith.addf %240, %239 : vector<8x32xf32>
      %242 = arith.divf %240, %241 : vector<8x32xf32>
      %243 = vector.extract_strided_slice %236 {offsets = [0, 32], sizes = [8, 32], strides = [1, 1]} : vector<8x128xf32> to vector<8x32xf32>
      %244 = arith.negf %243 : vector<8x32xf32>
      %245 = math.exp %244 : vector<8x32xf32>
      %cst_71 = arith.constant 1.000000e+00 : f32
      %246 = vector.broadcast %cst_71 : f32 to vector<8x32xf32>
      %247 = arith.addf %246, %245 : vector<8x32xf32>
      %248 = arith.divf %246, %247 : vector<8x32xf32>
      %249 = vector.extract_strided_slice %236 {offsets = [0, 64], sizes = [8, 32], strides = [1, 1]} : vector<8x128xf32> to vector<8x32xf32>
      %250 = math.tanh %249 : vector<8x32xf32>
      %251 = vector.extract_strided_slice %236 {offsets = [0, 96], sizes = [8, 32], strides = [1, 1]} : vector<8x128xf32> to vector<8x32xf32>
      %252 = arith.negf %251 : vector<8x32xf32>
      %253 = math.exp %252 : vector<8x32xf32>
      %cst_72 = arith.constant 1.000000e+00 : f32
      %254 = vector.broadcast %cst_72 : f32 to vector<8x32xf32>
      %255 = arith.addf %254, %253 : vector<8x32xf32>
      %256 = arith.divf %254, %255 : vector<8x32xf32>
      %257 = arith.mulf %248, %223 : vector<8x32xf32>
      %258 = arith.mulf %242, %250 : vector<8x32xf32>
      %259 = arith.addf %257, %258 : vector<8x32xf32>
      %260 = math.tanh %259 : vector<8x32xf32>
      %261 = arith.mulf %256, %260 : vector<8x32xf32>
      %262 = vector.shape_cast %261 : vector<8x32xf32> to vector<1x8x32xf32>
      %263 = arith.index_cast %c6_i32 : i32 to index
      %c0_73 = arith.constant 0 : index
      %c0_74 = arith.constant 0 : index
      %264 = vector.load %arg5[%263, %c0_73, %c0_74] : memref<8x8x64xf32, #tpu.memory_space<vmem>>, vector<1x8x32xf32>
      tpu.vector_store %arg5[%263, %c0_73, %c0_74], %262 {strides = array<i32>} : memref<8x8x64xf32, #tpu.memory_space<vmem>>, vector<1x8x32xf32>,
      %c7_i32 = arith.constant 7 : i32
      %265 = arith.index_cast %c7_i32 : i32 to index
      %c0_75 = arith.constant 0 : index
      %c0_76 = arith.constant 0 : index
      %266 = vector.load %arg1[%265, %c0_75, %c0_76] : memref<8x8x32xf32, #tpu.memory_space<vmem>>, vector<1x8x32xf32>
      %267 = vector.shape_cast %266 : vector<1x8x32xf32> to vector<8x32xf32>
      %cst_77 = arith.constant dense<0.000000e+00> : vector<8x128xf32>
      %268 = tpu.matmul %267, %1, %cst_77 {dimension_numbers = #tpu.dot_dimension_numbers<[1], [0], [0], [1], [0, 0, 1, 1], [], []>} : vector<8x32xf32>, vector<32x128xf32>, vector<8x128xf32> -> vector<8x128xf32>
      %cst_78 = arith.constant dense<0.000000e+00> : vector<8x128xf32>
      %269 = tpu.matmul %261, %3, %cst_78 {dimension_numbers = #tpu.dot_dimension_numbers<[1], [0], [0], [1], [0, 0, 1, 1], [], []>} : vector<8x32xf32>, vector<32x128xf32>, vector<8x128xf32> -> vector<8x128xf32>
      %270 = arith.addf %268, %269 : vector<8x128xf32>
      %271 = vector.broadcast %5 : vector<1x128xf32> to vector<8x128xf32>
      %272 = arith.addf %270, %271 : vector<8x128xf32>
      %273 = vector.extract_strided_slice %272 {offsets = [0, 0], sizes = [8, 32], strides = [1, 1]} : vector<8x128xf32> to vector<8x32xf32>
      %274 = arith.negf %273 : vector<8x32xf32>
      %275 = math.exp %274 : vector<8x32xf32>
      %cst_79 = arith.constant 1.000000e+00 : f32
      %276 = vector.broadcast %cst_79 : f32 to vector<8x32xf32>
      %277 = arith.addf %276, %275 : vector<8x32xf32>
      %278 = arith.divf %276, %277 : vector<8x32xf32>
      %279 = vector.extract_strided_slice %272 {offsets = [0, 32], sizes = [8, 32], strides = [1, 1]} : vector<8x128xf32> to vector<8x32xf32>
      %280 = arith.negf %279 : vector<8x32xf32>
      %281 = math.exp %280 : vector<8x32xf32>
      %cst_80 = arith.constant 1.000000e+00 : f32
      %282 = vector.broadcast %cst_80 : f32 to vector<8x32xf32>
      %283 = arith.addf %282, %281 : vector<8x32xf32>
      %284 = arith.divf %282, %283 : vector<8x32xf32>
      %285 = vector.extract_strided_slice %272 {offsets = [0, 64], sizes = [8, 32], strides = [1, 1]} : vector<8x128xf32> to vector<8x32xf32>
      %286 = math.tanh %285 : vector<8x32xf32>
      %287 = vector.extract_strided_slice %272 {offsets = [0, 96], sizes = [8, 32], strides = [1, 1]} : vector<8x128xf32> to vector<8x32xf32>
      %288 = arith.negf %287 : vector<8x32xf32>
      %289 = math.exp %288 : vector<8x32xf32>
      %cst_81 = arith.constant 1.000000e+00 : f32
      %290 = vector.broadcast %cst_81 : f32 to vector<8x32xf32>
      %291 = arith.addf %290, %289 : vector<8x32xf32>
      %292 = arith.divf %290, %291 : vector<8x32xf32>
      %293 = arith.mulf %284, %259 : vector<8x32xf32>
      %294 = arith.mulf %278, %286 : vector<8x32xf32>
      %295 = arith.addf %293, %294 : vector<8x32xf32>
      %296 = math.tanh %295 : vector<8x32xf32>
      %297 = arith.mulf %292, %296 : vector<8x32xf32>
      %298 = vector.shape_cast %297 : vector<8x32xf32> to vector<1x8x32xf32>
      %299 = arith.index_cast %c7_i32 : i32 to index
      %c0_82 = arith.constant 0 : index
      %c0_83 = arith.constant 0 : index
      %300 = vector.load %arg5[%299, %c0_82, %c0_83] : memref<8x8x64xf32, #tpu.memory_space<vmem>>, vector<1x8x32xf32>
      tpu.vector_store %arg5[%299, %c0_82, %c0_83], %298 {strides = array<i32>} : memref<8x8x64xf32, #tpu.memory_space<vmem>>, vector<1x8x32xf32>,
      %c8_i32 = arith.constant 8 : i32
    } else {
    }
    %c1_i32 = arith.constant 1 : i32
    %9 = arith.cmpi eq, %arg0, %c1_i32 : i32
    %10 = arith.extui %9 : i1 to i32
    %c0_i32_9 = arith.constant 0 : i32
    %11 = arith.cmpi ne, %10, %c0_i32_9 : i32
    scf.if %11 {
      %cst = arith.constant 0.000000e+00 : f32
      %12 = vector.broadcast %cst : f32 to vector<8x32xf32>
      %c0_i32_10 = arith.constant 0 : i32
      %c7_i32 = arith.constant 7 : i32
      %13 = arith.subi %c7_i32, %c0_i32_10 : i32
      %14 = arith.index_cast %13 : i32 to index
      %c0_11 = arith.constant 0 : index
      %c0_12 = arith.constant 0 : index
      %15 = vector.load %arg1[%14, %c0_11, %c0_12] : memref<8x8x32xf32, #tpu.memory_space<vmem>>, vector<1x8x32xf32>
      %16 = vector.shape_cast %15 : vector<1x8x32xf32> to vector<8x32xf32>
      %cst_13 = arith.constant dense<0.000000e+00> : vector<8x128xf32>
      %17 = tpu.matmul %16, %1, %cst_13 {dimension_numbers = #tpu.dot_dimension_numbers<[1], [0], [0], [1], [0, 0, 1, 1], [], []>} : vector<8x32xf32>, vector<32x128xf32>, vector<8x128xf32> -> vector<8x128xf32>
      %cst_14 = arith.constant dense<0.000000e+00> : vector<8x128xf32>
      %18 = tpu.matmul %12, %3, %cst_14 {dimension_numbers = #tpu.dot_dimension_numbers<[1], [0], [0], [1], [0, 0, 1, 1], [], []>} : vector<8x32xf32>, vector<32x128xf32>, vector<8x128xf32> -> vector<8x128xf32>
      %19 = arith.addf %17, %18 : vector<8x128xf32>
      %20 = vector.broadcast %5 : vector<1x128xf32> to vector<8x128xf32>
      %21 = arith.addf %19, %20 : vector<8x128xf32>
      %22 = vector.extract_strided_slice %21 {offsets = [0, 0], sizes = [8, 32], strides = [1, 1]} : vector<8x128xf32> to vector<8x32xf32>
      %23 = arith.negf %22 : vector<8x32xf32>
      %24 = math.exp %23 : vector<8x32xf32>
      %cst_15 = arith.constant 1.000000e+00 : f32
      %25 = vector.broadcast %cst_15 : f32 to vector<8x32xf32>
      %26 = arith.addf %25, %24 : vector<8x32xf32>
      %27 = arith.divf %25, %26 : vector<8x32xf32>
      %28 = vector.extract_strided_slice %21 {offsets = [0, 32], sizes = [8, 32], strides = [1, 1]} : vector<8x128xf32> to vector<8x32xf32>
      %29 = arith.negf %28 : vector<8x32xf32>
      %30 = math.exp %29 : vector<8x32xf32>
      %cst_16 = arith.constant 1.000000e+00 : f32
      %31 = vector.broadcast %cst_16 : f32 to vector<8x32xf32>
      %32 = arith.addf %31, %30 : vector<8x32xf32>
      %33 = arith.divf %31, %32 : vector<8x32xf32>
      %34 = vector.extract_strided_slice %21 {offsets = [0, 64], sizes = [8, 32], strides = [1, 1]} : vector<8x128xf32> to vector<8x32xf32>
      %35 = math.tanh %34 : vector<8x32xf32>
      %36 = vector.extract_strided_slice %21 {offsets = [0, 96], sizes = [8, 32], strides = [1, 1]} : vector<8x128xf32> to vector<8x32xf32>
      %37 = arith.negf %36 : vector<8x32xf32>
      %38 = math.exp %37 : vector<8x32xf32>
      %cst_17 = arith.constant 1.000000e+00 : f32
      %39 = vector.broadcast %cst_17 : f32 to vector<8x32xf32>
      %40 = arith.addf %39, %38 : vector<8x32xf32>
      %41 = arith.divf %39, %40 : vector<8x32xf32>
      %42 = arith.mulf %33, %12 : vector<8x32xf32>
      %43 = arith.mulf %27, %35 : vector<8x32xf32>
      %44 = arith.addf %42, %43 : vector<8x32xf32>
      %45 = math.tanh %44 : vector<8x32xf32>
      %46 = arith.mulf %41, %45 : vector<8x32xf32>
      %47 = vector.shape_cast %46 : vector<8x32xf32> to vector<1x8x32xf32>
      %48 = arith.index_cast %13 : i32 to index
      %c0_18 = arith.constant 0 : index
      %c32 = arith.constant 32 : index
      %49 = vector.load %arg5[%48, %c0_18, %c32] : memref<8x8x64xf32, #tpu.memory_space<vmem>>, vector<1x8x32xf32>
      tpu.vector_store %arg5[%48, %c0_18, %c32], %47 {strides = array<i32>} : memref<8x8x64xf32, #tpu.memory_space<vmem>>, vector<1x8x32xf32>,
      %c1_i32_19 = arith.constant 1 : i32
      %c7_i32_20 = arith.constant 7 : i32
      %50 = arith.subi %c7_i32_20, %c1_i32_19 : i32
      %51 = arith.index_cast %50 : i32 to index
      %c0_21 = arith.constant 0 : index
      %c0_22 = arith.constant 0 : index
      %52 = vector.load %arg1[%51, %c0_21, %c0_22] : memref<8x8x32xf32, #tpu.memory_space<vmem>>, vector<1x8x32xf32>
      %53 = vector.shape_cast %52 : vector<1x8x32xf32> to vector<8x32xf32>
      %cst_23 = arith.constant dense<0.000000e+00> : vector<8x128xf32>
      %54 = tpu.matmul %53, %1, %cst_23 {dimension_numbers = #tpu.dot_dimension_numbers<[1], [0], [0], [1], [0, 0, 1, 1], [], []>} : vector<8x32xf32>, vector<32x128xf32>, vector<8x128xf32> -> vector<8x128xf32>
      %cst_24 = arith.constant dense<0.000000e+00> : vector<8x128xf32>
      %55 = tpu.matmul %46, %3, %cst_24 {dimension_numbers = #tpu.dot_dimension_numbers<[1], [0], [0], [1], [0, 0, 1, 1], [], []>} : vector<8x32xf32>, vector<32x128xf32>, vector<8x128xf32> -> vector<8x128xf32>
      %56 = arith.addf %54, %55 : vector<8x128xf32>
      %57 = vector.broadcast %5 : vector<1x128xf32> to vector<8x128xf32>
      %58 = arith.addf %56, %57 : vector<8x128xf32>
      %59 = vector.extract_strided_slice %58 {offsets = [0, 0], sizes = [8, 32], strides = [1, 1]} : vector<8x128xf32> to vector<8x32xf32>
      %60 = arith.negf %59 : vector<8x32xf32>
      %61 = math.exp %60 : vector<8x32xf32>
      %cst_25 = arith.constant 1.000000e+00 : f32
      %62 = vector.broadcast %cst_25 : f32 to vector<8x32xf32>
      %63 = arith.addf %62, %61 : vector<8x32xf32>
      %64 = arith.divf %62, %63 : vector<8x32xf32>
      %65 = vector.extract_strided_slice %58 {offsets = [0, 32], sizes = [8, 32], strides = [1, 1]} : vector<8x128xf32> to vector<8x32xf32>
      %66 = arith.negf %65 : vector<8x32xf32>
      %67 = math.exp %66 : vector<8x32xf32>
      %cst_26 = arith.constant 1.000000e+00 : f32
      %68 = vector.broadcast %cst_26 : f32 to vector<8x32xf32>
      %69 = arith.addf %68, %67 : vector<8x32xf32>
      %70 = arith.divf %68, %69 : vector<8x32xf32>
      %71 = vector.extract_strided_slice %58 {offsets = [0, 64], sizes = [8, 32], strides = [1, 1]} : vector<8x128xf32> to vector<8x32xf32>
      %72 = math.tanh %71 : vector<8x32xf32>
      %73 = vector.extract_strided_slice %58 {offsets = [0, 96], sizes = [8, 32], strides = [1, 1]} : vector<8x128xf32> to vector<8x32xf32>
      %74 = arith.negf %73 : vector<8x32xf32>
      %75 = math.exp %74 : vector<8x32xf32>
      %cst_27 = arith.constant 1.000000e+00 : f32
      %76 = vector.broadcast %cst_27 : f32 to vector<8x32xf32>
      %77 = arith.addf %76, %75 : vector<8x32xf32>
      %78 = arith.divf %76, %77 : vector<8x32xf32>
      %79 = arith.mulf %70, %44 : vector<8x32xf32>
      %80 = arith.mulf %64, %72 : vector<8x32xf32>
      %81 = arith.addf %79, %80 : vector<8x32xf32>
      %82 = math.tanh %81 : vector<8x32xf32>
      %83 = arith.mulf %78, %82 : vector<8x32xf32>
      %84 = vector.shape_cast %83 : vector<8x32xf32> to vector<1x8x32xf32>
      %85 = arith.index_cast %50 : i32 to index
      %c0_28 = arith.constant 0 : index
      %c32_29 = arith.constant 32 : index
      %86 = vector.load %arg5[%85, %c0_28, %c32_29] : memref<8x8x64xf32, #tpu.memory_space<vmem>>, vector<1x8x32xf32>
      tpu.vector_store %arg5[%85, %c0_28, %c32_29], %84 {strides = array<i32>} : memref<8x8x64xf32, #tpu.memory_space<vmem>>, vector<1x8x32xf32>,
      %c2_i32 = arith.constant 2 : i32
      %c7_i32_30 = arith.constant 7 : i32
      %87 = arith.subi %c7_i32_30, %c2_i32 : i32
      %88 = arith.index_cast %87 : i32 to index
      %c0_31 = arith.constant 0 : index
      %c0_32 = arith.constant 0 : index
      %89 = vector.load %arg1[%88, %c0_31, %c0_32] : memref<8x8x32xf32, #tpu.memory_space<vmem>>, vector<1x8x32xf32>
      %90 = vector.shape_cast %89 : vector<1x8x32xf32> to vector<8x32xf32>
      %cst_33 = arith.constant dense<0.000000e+00> : vector<8x128xf32>
      %91 = tpu.matmul %90, %1, %cst_33 {dimension_numbers = #tpu.dot_dimension_numbers<[1], [0], [0], [1], [0, 0, 1, 1], [], []>} : vector<8x32xf32>, vector<32x128xf32>, vector<8x128xf32> -> vector<8x128xf32>
      %cst_34 = arith.constant dense<0.000000e+00> : vector<8x128xf32>
      %92 = tpu.matmul %83, %3, %cst_34 {dimension_numbers = #tpu.dot_dimension_numbers<[1], [0], [0], [1], [0, 0, 1, 1], [], []>} : vector<8x32xf32>, vector<32x128xf32>, vector<8x128xf32> -> vector<8x128xf32>
      %93 = arith.addf %91, %92 : vector<8x128xf32>
      %94 = vector.broadcast %5 : vector<1x128xf32> to vector<8x128xf32>
      %95 = arith.addf %93, %94 : vector<8x128xf32>
      %96 = vector.extract_strided_slice %95 {offsets = [0, 0], sizes = [8, 32], strides = [1, 1]} : vector<8x128xf32> to vector<8x32xf32>
      %97 = arith.negf %96 : vector<8x32xf32>
      %98 = math.exp %97 : vector<8x32xf32>
      %cst_35 = arith.constant 1.000000e+00 : f32
      %99 = vector.broadcast %cst_35 : f32 to vector<8x32xf32>
      %100 = arith.addf %99, %98 : vector<8x32xf32>
      %101 = arith.divf %99, %100 : vector<8x32xf32>
      %102 = vector.extract_strided_slice %95 {offsets = [0, 32], sizes = [8, 32], strides = [1, 1]} : vector<8x128xf32> to vector<8x32xf32>
      %103 = arith.negf %102 : vector<8x32xf32>
      %104 = math.exp %103 : vector<8x32xf32>
      %cst_36 = arith.constant 1.000000e+00 : f32
      %105 = vector.broadcast %cst_36 : f32 to vector<8x32xf32>
      %106 = arith.addf %105, %104 : vector<8x32xf32>
      %107 = arith.divf %105, %106 : vector<8x32xf32>
      %108 = vector.extract_strided_slice %95 {offsets = [0, 64], sizes = [8, 32], strides = [1, 1]} : vector<8x128xf32> to vector<8x32xf32>
      %109 = math.tanh %108 : vector<8x32xf32>
      %110 = vector.extract_strided_slice %95 {offsets = [0, 96], sizes = [8, 32], strides = [1, 1]} : vector<8x128xf32> to vector<8x32xf32>
      %111 = arith.negf %110 : vector<8x32xf32>
      %112 = math.exp %111 : vector<8x32xf32>
      %cst_37 = arith.constant 1.000000e+00 : f32
      %113 = vector.broadcast %cst_37 : f32 to vector<8x32xf32>
      %114 = arith.addf %113, %112 : vector<8x32xf32>
      %115 = arith.divf %113, %114 : vector<8x32xf32>
      %116 = arith.mulf %107, %81 : vector<8x32xf32>
      %117 = arith.mulf %101, %109 : vector<8x32xf32>
      %118 = arith.addf %116, %117 : vector<8x32xf32>
      %119 = math.tanh %118 : vector<8x32xf32>
      %120 = arith.mulf %115, %119 : vector<8x32xf32>
      %121 = vector.shape_cast %120 : vector<8x32xf32> to vector<1x8x32xf32>
      %122 = arith.index_cast %87 : i32 to index
      %c0_38 = arith.constant 0 : index
      %c32_39 = arith.constant 32 : index
      %123 = vector.load %arg5[%122, %c0_38, %c32_39] : memref<8x8x64xf32, #tpu.memory_space<vmem>>, vector<1x8x32xf32>
      tpu.vector_store %arg5[%122, %c0_38, %c32_39], %121 {strides = array<i32>} : memref<8x8x64xf32, #tpu.memory_space<vmem>>, vector<1x8x32xf32>,
      %c3_i32 = arith.constant 3 : i32
      %c7_i32_40 = arith.constant 7 : i32
      %124 = arith.subi %c7_i32_40, %c3_i32 : i32
      %125 = arith.index_cast %124 : i32 to index
      %c0_41 = arith.constant 0 : index
      %c0_42 = arith.constant 0 : index
      %126 = vector.load %arg1[%125, %c0_41, %c0_42] : memref<8x8x32xf32, #tpu.memory_space<vmem>>, vector<1x8x32xf32>
      %127 = vector.shape_cast %126 : vector<1x8x32xf32> to vector<8x32xf32>
      %cst_43 = arith.constant dense<0.000000e+00> : vector<8x128xf32>
      %128 = tpu.matmul %127, %1, %cst_43 {dimension_numbers = #tpu.dot_dimension_numbers<[1], [0], [0], [1], [0, 0, 1, 1], [], []>} : vector<8x32xf32>, vector<32x128xf32>, vector<8x128xf32> -> vector<8x128xf32>
      %cst_44 = arith.constant dense<0.000000e+00> : vector<8x128xf32>
      %129 = tpu.matmul %120, %3, %cst_44 {dimension_numbers = #tpu.dot_dimension_numbers<[1], [0], [0], [1], [0, 0, 1, 1], [], []>} : vector<8x32xf32>, vector<32x128xf32>, vector<8x128xf32> -> vector<8x128xf32>
      %130 = arith.addf %128, %129 : vector<8x128xf32>
      %131 = vector.broadcast %5 : vector<1x128xf32> to vector<8x128xf32>
      %132 = arith.addf %130, %131 : vector<8x128xf32>
      %133 = vector.extract_strided_slice %132 {offsets = [0, 0], sizes = [8, 32], strides = [1, 1]} : vector<8x128xf32> to vector<8x32xf32>
      %134 = arith.negf %133 : vector<8x32xf32>
      %135 = math.exp %134 : vector<8x32xf32>
      %cst_45 = arith.constant 1.000000e+00 : f32
      %136 = vector.broadcast %cst_45 : f32 to vector<8x32xf32>
      %137 = arith.addf %136, %135 : vector<8x32xf32>
      %138 = arith.divf %136, %137 : vector<8x32xf32>
      %139 = vector.extract_strided_slice %132 {offsets = [0, 32], sizes = [8, 32], strides = [1, 1]} : vector<8x128xf32> to vector<8x32xf32>
      %140 = arith.negf %139 : vector<8x32xf32>
      %141 = math.exp %140 : vector<8x32xf32>
      %cst_46 = arith.constant 1.000000e+00 : f32
      %142 = vector.broadcast %cst_46 : f32 to vector<8x32xf32>
      %143 = arith.addf %142, %141 : vector<8x32xf32>
      %144 = arith.divf %142, %143 : vector<8x32xf32>
      %145 = vector.extract_strided_slice %132 {offsets = [0, 64], sizes = [8, 32], strides = [1, 1]} : vector<8x128xf32> to vector<8x32xf32>
      %146 = math.tanh %145 : vector<8x32xf32>
      %147 = vector.extract_strided_slice %132 {offsets = [0, 96], sizes = [8, 32], strides = [1, 1]} : vector<8x128xf32> to vector<8x32xf32>
      %148 = arith.negf %147 : vector<8x32xf32>
      %149 = math.exp %148 : vector<8x32xf32>
      %cst_47 = arith.constant 1.000000e+00 : f32
      %150 = vector.broadcast %cst_47 : f32 to vector<8x32xf32>
      %151 = arith.addf %150, %149 : vector<8x32xf32>
      %152 = arith.divf %150, %151 : vector<8x32xf32>
      %153 = arith.mulf %144, %118 : vector<8x32xf32>
      %154 = arith.mulf %138, %146 : vector<8x32xf32>
      %155 = arith.addf %153, %154 : vector<8x32xf32>
      %156 = math.tanh %155 : vector<8x32xf32>
      %157 = arith.mulf %152, %156 : vector<8x32xf32>
      %158 = vector.shape_cast %157 : vector<8x32xf32> to vector<1x8x32xf32>
      %159 = arith.index_cast %124 : i32 to index
      %c0_48 = arith.constant 0 : index
      %c32_49 = arith.constant 32 : index
      %160 = vector.load %arg5[%159, %c0_48, %c32_49] : memref<8x8x64xf32, #tpu.memory_space<vmem>>, vector<1x8x32xf32>
      tpu.vector_store %arg5[%159, %c0_48, %c32_49], %158 {strides = array<i32>} : memref<8x8x64xf32, #tpu.memory_space<vmem>>, vector<1x8x32xf32>,
      %c4_i32 = arith.constant 4 : i32
      %c7_i32_50 = arith.constant 7 : i32
      %161 = arith.subi %c7_i32_50, %c4_i32 : i32
      %162 = arith.index_cast %161 : i32 to index
      %c0_51 = arith.constant 0 : index
      %c0_52 = arith.constant 0 : index
      %163 = vector.load %arg1[%162, %c0_51, %c0_52] : memref<8x8x32xf32, #tpu.memory_space<vmem>>, vector<1x8x32xf32>
      %164 = vector.shape_cast %163 : vector<1x8x32xf32> to vector<8x32xf32>
      %cst_53 = arith.constant dense<0.000000e+00> : vector<8x128xf32>
      %165 = tpu.matmul %164, %1, %cst_53 {dimension_numbers = #tpu.dot_dimension_numbers<[1], [0], [0], [1], [0, 0, 1, 1], [], []>} : vector<8x32xf32>, vector<32x128xf32>, vector<8x128xf32> -> vector<8x128xf32>
      %cst_54 = arith.constant dense<0.000000e+00> : vector<8x128xf32>
      %166 = tpu.matmul %157, %3, %cst_54 {dimension_numbers = #tpu.dot_dimension_numbers<[1], [0], [0], [1], [0, 0, 1, 1], [], []>} : vector<8x32xf32>, vector<32x128xf32>, vector<8x128xf32> -> vector<8x128xf32>
      %167 = arith.addf %165, %166 : vector<8x128xf32>
      %168 = vector.broadcast %5 : vector<1x128xf32> to vector<8x128xf32>
      %169 = arith.addf %167, %168 : vector<8x128xf32>
      %170 = vector.extract_strided_slice %169 {offsets = [0, 0], sizes = [8, 32], strides = [1, 1]} : vector<8x128xf32> to vector<8x32xf32>
      %171 = arith.negf %170 : vector<8x32xf32>
      %172 = math.exp %171 : vector<8x32xf32>
      %cst_55 = arith.constant 1.000000e+00 : f32
      %173 = vector.broadcast %cst_55 : f32 to vector<8x32xf32>
      %174 = arith.addf %173, %172 : vector<8x32xf32>
      %175 = arith.divf %173, %174 : vector<8x32xf32>
      %176 = vector.extract_strided_slice %169 {offsets = [0, 32], sizes = [8, 32], strides = [1, 1]} : vector<8x128xf32> to vector<8x32xf32>
      %177 = arith.negf %176 : vector<8x32xf32>
      %178 = math.exp %177 : vector<8x32xf32>
      %cst_56 = arith.constant 1.000000e+00 : f32
      %179 = vector.broadcast %cst_56 : f32 to vector<8x32xf32>
      %180 = arith.addf %179, %178 : vector<8x32xf32>
      %181 = arith.divf %179, %180 : vector<8x32xf32>
      %182 = vector.extract_strided_slice %169 {offsets = [0, 64], sizes = [8, 32], strides = [1, 1]} : vector<8x128xf32> to vector<8x32xf32>
      %183 = math.tanh %182 : vector<8x32xf32>
      %184 = vector.extract_strided_slice %169 {offsets = [0, 96], sizes = [8, 32], strides = [1, 1]} : vector<8x128xf32> to vector<8x32xf32>
      %185 = arith.negf %184 : vector<8x32xf32>
      %186 = math.exp %185 : vector<8x32xf32>
      %cst_57 = arith.constant 1.000000e+00 : f32
      %187 = vector.broadcast %cst_57 : f32 to vector<8x32xf32>
      %188 = arith.addf %187, %186 : vector<8x32xf32>
      %189 = arith.divf %187, %188 : vector<8x32xf32>
      %190 = arith.mulf %181, %155 : vector<8x32xf32>
      %191 = arith.mulf %175, %183 : vector<8x32xf32>
      %192 = arith.addf %190, %191 : vector<8x32xf32>
      %193 = math.tanh %192 : vector<8x32xf32>
      %194 = arith.mulf %189, %193 : vector<8x32xf32>
      %195 = vector.shape_cast %194 : vector<8x32xf32> to vector<1x8x32xf32>
      %196 = arith.index_cast %161 : i32 to index
      %c0_58 = arith.constant 0 : index
      %c32_59 = arith.constant 32 : index
      %197 = vector.load %arg5[%196, %c0_58, %c32_59] : memref<8x8x64xf32, #tpu.memory_space<vmem>>, vector<1x8x32xf32>
      tpu.vector_store %arg5[%196, %c0_58, %c32_59], %195 {strides = array<i32>} : memref<8x8x64xf32, #tpu.memory_space<vmem>>, vector<1x8x32xf32>,
      %c5_i32 = arith.constant 5 : i32
      %c7_i32_60 = arith.constant 7 : i32
      %198 = arith.subi %c7_i32_60, %c5_i32 : i32
      %199 = arith.index_cast %198 : i32 to index
      %c0_61 = arith.constant 0 : index
      %c0_62 = arith.constant 0 : index
      %200 = vector.load %arg1[%199, %c0_61, %c0_62] : memref<8x8x32xf32, #tpu.memory_space<vmem>>, vector<1x8x32xf32>
      %201 = vector.shape_cast %200 : vector<1x8x32xf32> to vector<8x32xf32>
      %cst_63 = arith.constant dense<0.000000e+00> : vector<8x128xf32>
      %202 = tpu.matmul %201, %1, %cst_63 {dimension_numbers = #tpu.dot_dimension_numbers<[1], [0], [0], [1], [0, 0, 1, 1], [], []>} : vector<8x32xf32>, vector<32x128xf32>, vector<8x128xf32> -> vector<8x128xf32>
      %cst_64 = arith.constant dense<0.000000e+00> : vector<8x128xf32>
      %203 = tpu.matmul %194, %3, %cst_64 {dimension_numbers = #tpu.dot_dimension_numbers<[1], [0], [0], [1], [0, 0, 1, 1], [], []>} : vector<8x32xf32>, vector<32x128xf32>, vector<8x128xf32> -> vector<8x128xf32>
      %204 = arith.addf %202, %203 : vector<8x128xf32>
      %205 = vector.broadcast %5 : vector<1x128xf32> to vector<8x128xf32>
      %206 = arith.addf %204, %205 : vector<8x128xf32>
      %207 = vector.extract_strided_slice %206 {offsets = [0, 0], sizes = [8, 32], strides = [1, 1]} : vector<8x128xf32> to vector<8x32xf32>
      %208 = arith.negf %207 : vector<8x32xf32>
      %209 = math.exp %208 : vector<8x32xf32>
      %cst_65 = arith.constant 1.000000e+00 : f32
      %210 = vector.broadcast %cst_65 : f32 to vector<8x32xf32>
      %211 = arith.addf %210, %209 : vector<8x32xf32>
      %212 = arith.divf %210, %211 : vector<8x32xf32>
      %213 = vector.extract_strided_slice %206 {offsets = [0, 32], sizes = [8, 32], strides = [1, 1]} : vector<8x128xf32> to vector<8x32xf32>
      %214 = arith.negf %213 : vector<8x32xf32>
      %215 = math.exp %214 : vector<8x32xf32>
      %cst_66 = arith.constant 1.000000e+00 : f32
      %216 = vector.broadcast %cst_66 : f32 to vector<8x32xf32>
      %217 = arith.addf %216, %215 : vector<8x32xf32>
      %218 = arith.divf %216, %217 : vector<8x32xf32>
      %219 = vector.extract_strided_slice %206 {offsets = [0, 64], sizes = [8, 32], strides = [1, 1]} : vector<8x128xf32> to vector<8x32xf32>
      %220 = math.tanh %219 : vector<8x32xf32>
      %221 = vector.extract_strided_slice %206 {offsets = [0, 96], sizes = [8, 32], strides = [1, 1]} : vector<8x128xf32> to vector<8x32xf32>
      %222 = arith.negf %221 : vector<8x32xf32>
      %223 = math.exp %222 : vector<8x32xf32>
      %cst_67 = arith.constant 1.000000e+00 : f32
      %224 = vector.broadcast %cst_67 : f32 to vector<8x32xf32>
      %225 = arith.addf %224, %223 : vector<8x32xf32>
      %226 = arith.divf %224, %225 : vector<8x32xf32>
      %227 = arith.mulf %218, %192 : vector<8x32xf32>
      %228 = arith.mulf %212, %220 : vector<8x32xf32>
      %229 = arith.addf %227, %228 : vector<8x32xf32>
      %230 = math.tanh %229 : vector<8x32xf32>
      %231 = arith.mulf %226, %230 : vector<8x32xf32>
      %232 = vector.shape_cast %231 : vector<8x32xf32> to vector<1x8x32xf32>
      %233 = arith.index_cast %198 : i32 to index
      %c0_68 = arith.constant 0 : index
      %c32_69 = arith.constant 32 : index
      %234 = vector.load %arg5[%233, %c0_68, %c32_69] : memref<8x8x64xf32, #tpu.memory_space<vmem>>, vector<1x8x32xf32>
      tpu.vector_store %arg5[%233, %c0_68, %c32_69], %232 {strides = array<i32>} : memref<8x8x64xf32, #tpu.memory_space<vmem>>, vector<1x8x32xf32>,
      %c6_i32 = arith.constant 6 : i32
      %c7_i32_70 = arith.constant 7 : i32
      %235 = arith.subi %c7_i32_70, %c6_i32 : i32
      %236 = arith.index_cast %235 : i32 to index
      %c0_71 = arith.constant 0 : index
      %c0_72 = arith.constant 0 : index
      %237 = vector.load %arg1[%236, %c0_71, %c0_72] : memref<8x8x32xf32, #tpu.memory_space<vmem>>, vector<1x8x32xf32>
      %238 = vector.shape_cast %237 : vector<1x8x32xf32> to vector<8x32xf32>
      %cst_73 = arith.constant dense<0.000000e+00> : vector<8x128xf32>
      %239 = tpu.matmul %238, %1, %cst_73 {dimension_numbers = #tpu.dot_dimension_numbers<[1], [0], [0], [1], [0, 0, 1, 1], [], []>} : vector<8x32xf32>, vector<32x128xf32>, vector<8x128xf32> -> vector<8x128xf32>
      %cst_74 = arith.constant dense<0.000000e+00> : vector<8x128xf32>
      %240 = tpu.matmul %231, %3, %cst_74 {dimension_numbers = #tpu.dot_dimension_numbers<[1], [0], [0], [1], [0, 0, 1, 1], [], []>} : vector<8x32xf32>, vector<32x128xf32>, vector<8x128xf32> -> vector<8x128xf32>
      %241 = arith.addf %239, %240 : vector<8x128xf32>
      %242 = vector.broadcast %5 : vector<1x128xf32> to vector<8x128xf32>
      %243 = arith.addf %241, %242 : vector<8x128xf32>
      %244 = vector.extract_strided_slice %243 {offsets = [0, 0], sizes = [8, 32], strides = [1, 1]} : vector<8x128xf32> to vector<8x32xf32>
      %245 = arith.negf %244 : vector<8x32xf32>
      %246 = math.exp %245 : vector<8x32xf32>
      %cst_75 = arith.constant 1.000000e+00 : f32
      %247 = vector.broadcast %cst_75 : f32 to vector<8x32xf32>
      %248 = arith.addf %247, %246 : vector<8x32xf32>
      %249 = arith.divf %247, %248 : vector<8x32xf32>
      %250 = vector.extract_strided_slice %243 {offsets = [0, 32], sizes = [8, 32], strides = [1, 1]} : vector<8x128xf32> to vector<8x32xf32>
      %251 = arith.negf %250 : vector<8x32xf32>
      %252 = math.exp %251 : vector<8x32xf32>
      %cst_76 = arith.constant 1.000000e+00 : f32
      %253 = vector.broadcast %cst_76 : f32 to vector<8x32xf32>
      %254 = arith.addf %253, %252 : vector<8x32xf32>
      %255 = arith.divf %253, %254 : vector<8x32xf32>
      %256 = vector.extract_strided_slice %243 {offsets = [0, 64], sizes = [8, 32], strides = [1, 1]} : vector<8x128xf32> to vector<8x32xf32>
      %257 = math.tanh %256 : vector<8x32xf32>
      %258 = vector.extract_strided_slice %243 {offsets = [0, 96], sizes = [8, 32], strides = [1, 1]} : vector<8x128xf32> to vector<8x32xf32>
      %259 = arith.negf %258 : vector<8x32xf32>
      %260 = math.exp %259 : vector<8x32xf32>
      %cst_77 = arith.constant 1.000000e+00 : f32
      %261 = vector.broadcast %cst_77 : f32 to vector<8x32xf32>
      %262 = arith.addf %261, %260 : vector<8x32xf32>
      %263 = arith.divf %261, %262 : vector<8x32xf32>
      %264 = arith.mulf %255, %229 : vector<8x32xf32>
      %265 = arith.mulf %249, %257 : vector<8x32xf32>
      %266 = arith.addf %264, %265 : vector<8x32xf32>
      %267 = math.tanh %266 : vector<8x32xf32>
      %268 = arith.mulf %263, %267 : vector<8x32xf32>
      %269 = vector.shape_cast %268 : vector<8x32xf32> to vector<1x8x32xf32>
      %270 = arith.index_cast %235 : i32 to index
      %c0_78 = arith.constant 0 : index
      %c32_79 = arith.constant 32 : index
      %271 = vector.load %arg5[%270, %c0_78, %c32_79] : memref<8x8x64xf32, #tpu.memory_space<vmem>>, vector<1x8x32xf32>
      tpu.vector_store %arg5[%270, %c0_78, %c32_79], %269 {strides = array<i32>} : memref<8x8x64xf32, #tpu.memory_space<vmem>>, vector<1x8x32xf32>,
      %c7_i32_80 = arith.constant 7 : i32
      %c7_i32_81 = arith.constant 7 : i32
      %272 = arith.subi %c7_i32_81, %c7_i32_80 : i32
      %273 = arith.index_cast %272 : i32 to index
      %c0_82 = arith.constant 0 : index
      %c0_83 = arith.constant 0 : index
      %274 = vector.load %arg1[%273, %c0_82, %c0_83] : memref<8x8x32xf32, #tpu.memory_space<vmem>>, vector<1x8x32xf32>
      %275 = vector.shape_cast %274 : vector<1x8x32xf32> to vector<8x32xf32>
      %cst_84 = arith.constant dense<0.000000e+00> : vector<8x128xf32>
      %276 = tpu.matmul %275, %1, %cst_84 {dimension_numbers = #tpu.dot_dimension_numbers<[1], [0], [0], [1], [0, 0, 1, 1], [], []>} : vector<8x32xf32>, vector<32x128xf32>, vector<8x128xf32> -> vector<8x128xf32>
      %cst_85 = arith.constant dense<0.000000e+00> : vector<8x128xf32>
      %277 = tpu.matmul %268, %3, %cst_85 {dimension_numbers = #tpu.dot_dimension_numbers<[1], [0], [0], [1], [0, 0, 1, 1], [], []>} : vector<8x32xf32>, vector<32x128xf32>, vector<8x128xf32> -> vector<8x128xf32>
      %278 = arith.addf %276, %277 : vector<8x128xf32>
      %279 = vector.broadcast %5 : vector<1x128xf32> to vector<8x128xf32>
      %280 = arith.addf %278, %279 : vector<8x128xf32>
      %281 = vector.extract_strided_slice %280 {offsets = [0, 0], sizes = [8, 32], strides = [1, 1]} : vector<8x128xf32> to vector<8x32xf32>
      %282 = arith.negf %281 : vector<8x32xf32>
      %283 = math.exp %282 : vector<8x32xf32>
      %cst_86 = arith.constant 1.000000e+00 : f32
      %284 = vector.broadcast %cst_86 : f32 to vector<8x32xf32>
      %285 = arith.addf %284, %283 : vector<8x32xf32>
      %286 = arith.divf %284, %285 : vector<8x32xf32>
      %287 = vector.extract_strided_slice %280 {offsets = [0, 32], sizes = [8, 32], strides = [1, 1]} : vector<8x128xf32> to vector<8x32xf32>
      %288 = arith.negf %287 : vector<8x32xf32>
      %289 = math.exp %288 : vector<8x32xf32>
      %cst_87 = arith.constant 1.000000e+00 : f32
      %290 = vector.broadcast %cst_87 : f32 to vector<8x32xf32>
      %291 = arith.addf %290, %289 : vector<8x32xf32>
      %292 = arith.divf %290, %291 : vector<8x32xf32>
      %293 = vector.extract_strided_slice %280 {offsets = [0, 64], sizes = [8, 32], strides = [1, 1]} : vector<8x128xf32> to vector<8x32xf32>
      %294 = math.tanh %293 : vector<8x32xf32>
      %295 = vector.extract_strided_slice %280 {offsets = [0, 96], sizes = [8, 32], strides = [1, 1]} : vector<8x128xf32> to vector<8x32xf32>
      %296 = arith.negf %295 : vector<8x32xf32>
      %297 = math.exp %296 : vector<8x32xf32>
      %cst_88 = arith.constant 1.000000e+00 : f32
      %298 = vector.broadcast %cst_88 : f32 to vector<8x32xf32>
      %299 = arith.addf %298, %297 : vector<8x32xf32>
      %300 = arith.divf %298, %299 : vector<8x32xf32>
      %301 = arith.mulf %292, %266 : vector<8x32xf32>
      %302 = arith.mulf %286, %294 : vector<8x32xf32>
      %303 = arith.addf %301, %302 : vector<8x32xf32>
      %304 = math.tanh %303 : vector<8x32xf32>
      %305 = arith.mulf %300, %304 : vector<8x32xf32>
      %306 = vector.shape_cast %305 : vector<8x32xf32> to vector<1x8x32xf32>
      %307 = arith.index_cast %272 : i32 to index
      %c0_89 = arith.constant 0 : index
      %c32_90 = arith.constant 32 : index
      %308 = vector.load %arg5[%307, %c0_89, %c32_90] : memref<8x8x64xf32, #tpu.memory_space<vmem>>, vector<1x8x32xf32>
      tpu.vector_store %arg5[%307, %c0_89, %c32_90], %306 {strides = array<i32>} : memref<8x8x64xf32, #tpu.memory_space<vmem>>, vector<1x8x32xf32>,
      %c8_i32 = arith.constant 8 : i32
    } else {
    }
    return
  }
  func.func @transform_0(%arg0: i32) -> (i32, i32, i32) {
    %c0_i32 = arith.constant 0 : i32
    %c0_i32_0 = arith.constant 0 : i32
    %c0_i32_1 = arith.constant 0 : i32
    %c0_i32_2 = arith.constant 0 : i32
    return %c0_i32, %c0_i32_0, %c0_i32_1 : i32, i32, i32
  }
  func.func @transform_1(%arg0: i32) -> (i32, i32, i32) {
    %c0_i32 = arith.constant 0 : i32
    %c0_i32_0 = arith.constant 0 : i32
    %c0_i32_1 = arith.constant 0 : i32
    return %arg0, %c0_i32, %c0_i32_0 : i32, i32, i32
  }
  func.func @transform_2(%arg0: i32) -> (i32, i32, i32) {
    %c0_i32 = arith.constant 0 : i32
    %c0_i32_0 = arith.constant 0 : i32
    %c0_i32_1 = arith.constant 0 : i32
    return %arg0, %c0_i32, %c0_i32_0 : i32, i32, i32
  }
  func.func @transform_3(%arg0: i32) -> (i32, i32, i32) {
    %c0_i32 = arith.constant 0 : i32
    %c0_i32_0 = arith.constant 0 : i32
    %c0_i32_1 = arith.constant 0 : i32
    return %arg0, %c0_i32, %c0_i32_0 : i32, i32, i32
  }
  func.func @transform_4(%arg0: i32) -> (i32, i32, i32) {
    %c0_i32 = arith.constant 0 : i32
    %c0_i32_0 = arith.constant 0 : i32
    %c0_i32_1 = arith.constant 0 : i32
    %c0_i32_2 = arith.constant 0 : i32
    return %c0_i32, %c0_i32_0, %c0_i32_1 : i32, i32, i32
  }
}

</mosaic_0001>

<llo_original>
// kernel: birnn_forward.2
$region0: #{birnn_forward.2}
  #allocation0 [shape = 'u32[]', space=smem, size = 0x4, offset = 0x4, fixed_abs, tag = 'smem constant byte address 0x4 - core index']
  #allocation1 [shape = 'u32[72,128]{1,0:T(1,128)}', space=vmem, size = 0x9000, scoped, tag = 'internal scratch']
  %s0 = inlined_call_operand.vmem [shape: f32[8,8,32], index: 0, kind: input, shape index: {}]
  %s1 = inlined_call_operand.vmem [shape: f32[2,32,128], index: 1, kind: input, shape index: {}]
  %s2 = inlined_call_operand.vmem [shape: f32[2,32,128], index: 2, kind: input, shape index: {}]
  %s3 = inlined_call_operand.vmem [shape: f32[2,1,128], index: 3, kind: input, shape index: {}]
  %s4 = inlined_call_operand.vmem [shape: f32[8,8,64], index: 4, kind: output, shape index: {}]
  %s5 = sld [smem:[#allocation0]]
  $region57: #{birnn_forward.2} parent=0
    _
  %s7 = ssub.s32 1, %s5
  %s8 = scalar_select 0, %s7, %s5
  loop: start=0, step=1, limit=4
  $region2: #{birnn_forward.2} parent=0 // loop_pre_header
    _
  $region3: #{birnn_forward.2} parent=0 // loop_header
    %s10 = sphi 0, %s14
    %p11 = scmp.ge.s32.totalorder %s10, 4
    %s18 = sphi 0, %s18
    %s20 = sphi 0, %s18
    %s21 = sphi 0, %s20
    %s35 = sphi 0, %s21
    %s41 = sphi 0, %s43
    %s44 = sphi 0, %s41
    %s45 = sphi 0, %s44
    %s61 = sphi 0, %s45
    %s67 = sphi 0, %s69
    %s70 = sphi 0, %s67
    %s71 = sphi 0, %s70
    %s87 = sphi 0, %s71
    %s93 = sphi 0, %s95
    %s96 = sphi 0, %s93
    %s97 = sphi 0, %s96
    %s113 = sphi 0, %s97
    %s117 = sphi 0, %s117
    %s119 = sphi 0, %s117
    %s120 = sphi 0, %s119
    %s134 = sphi 0, %s120
  $region4: #{birnn_forward.2} parent=0 // loop_header_branch
    %13 = sbr.rel (%p11) target = $region8
  $region5: #{birnn_forward.2} parent=0 // loop_body
    %s15 = ssub.s32 %s10, 1
    %s16 = ssub.s32 %s10, 2
    %s17 = sadd.s32 %s10, 1
    %s19 = sadd.s32 %s18, 1
    %p22 = scmp.eq.s32.totalorder %s10, 1
    %p23 = scmp.ne.s32.totalorder %s18, %s20
    %p24 = scmp.eq.s32.totalorder %s10, 0
    %p25 = por %p23, %p24
    %p26 = scmp.ne.s32.totalorder %s18, %s20
    %p27 = scmp.eq.s32.totalorder %s15, 1
    %p28 = por %p26, %p27
    %p29 = scmp.ne.s32.totalorder %s20, %s21
    %p30 = scmp.eq.s32.totalorder %s15, 0
    %p31 = por %p29, %p30
    %p32 = scmp.ne.s32.totalorder %s20, %s21
    %p33 = scmp.eq.s32.totalorder %s16, 1
    %p34 = por %p32, %p33
    %p36 = scmp.ne.s32.totalorder %s21, %s35
    %p37 = scmp.eq.s32.totalorder %s16, 0
    %p38 = por %p36, %p37
    %s39 = ssub.s32 %s10, %s17
    %p40 = scmp.eq.s32.totalorder %s39, 0
    %s42 = sadd.s32 %s41, 1
    %s43 = scalar_select %p40, %s41, %s42
    %p46 = pneg %p40
    %p47 = scmp.eq.s32.totalorder %s10, 1
    %p48 = por %p46, %p47
    %p49 = scmp.ne.s32.totalorder %s41, %s44
    %p50 = scmp.eq.s32.totalorder %s10, 0
    %p51 = por %p49, %p50
    %p52 = scmp.ne.s32.totalorder %s41, %s44
    %p53 = scmp.eq.s32.totalorder %s15, 1
    %p54 = por %p52, %p53
    %p55 = scmp.ne.s32.totalorder %s44, %s45
    %p56 = scmp.eq.s32.totalorder %s15, 0
    %p57 = por %p55, %p56
    %p58 = scmp.ne.s32.totalorder %s44, %s45
    %p59 = scmp.eq.s32.totalorder %s16, 1
    %p60 = por %p58, %p59
    %p62 = scmp.ne.s32.totalorder %s45, %s61
    %p63 = scmp.eq.s32.totalorder %s16, 0
    %p64 = por %p62, %p63
    %s65 = ssub.s32 %s10, %s17
    %p66 = scmp.eq.s32.totalorder %s65, 0
    %s68 = sadd.s32 %s67, 1
    %s69 = scalar_select %p66, %s67, %s68
    %p72 = pneg %p66
    %p73 = scmp.eq.s32.totalorder %s10, 1
    %p74 = por %p72, %p73
    %p75 = scmp.ne.s32.totalorder %s67, %s70
    %p76 = scmp.eq.s32.totalorder %s10, 0
    %p77 = por %p75, %p76
    %p78 = scmp.ne.s32.totalorder %s67, %s70
    %p79 = scmp.eq.s32.totalorder %s15, 1
    %p80 = por %p78, %p79
    %p81 = scmp.ne.s32.totalorder %s70, %s71
    %p82 = scmp.eq.s32.totalorder %s15, 0
    %p83 = por %p81, %p82
    %p84 = scmp.ne.s32.totalorder %s70, %s71
    %p85 = scmp.eq.s32.totalorder %s16, 1
    %p86 = por %p84, %p85
    %p88 = scmp.ne.s32.totalorder %s71, %s87
    %p89 = scmp.eq.s32.totalorder %s16, 0
    %p90 = por %p88, %p89
    %s91 = ssub.s32 %s10, %s17
    %p92 = scmp.eq.s32.totalorder %s91, 0
    %s94 = sadd.s32 %s93, 1
    %s95 = scalar_select %p92, %s93, %s94
    %p98 = pneg %p92
    %p99 = scmp.eq.s32.totalorder %s10, 1
    %p100 = por %p98, %p99
    %p101 = scmp.ne.s32.totalorder %s93, %s96
    %p102 = scmp.eq.s32.totalorder %s10, 0
    %p103 = por %p101, %p102
    %p104 = scmp.ne.s32.totalorder %s93, %s96
    %p105 = scmp.eq.s32.totalorder %s15, 1
    %p106 = por %p104, %p105
    %p107 = scmp.ne.s32.totalorder %s96, %s97
    %p108 = scmp.eq.s32.totalorder %s15, 0
    %p109 = por %p107, %p108
    %p110 = scmp.ne.s32.totalorder %s96, %s97
    %p111 = scmp.eq.s32.totalorder %s16, 1
    %p112 = por %p110, %p111
    %p114 = scmp.ne.s32.totalorder %s97, %s113
    %p115 = scmp.eq.s32.totalorder %s16, 0
    %p116 = por %p114, %p115
    %s118 = sadd.s32 %s117, 1
    %p121 = scmp.eq.s32.totalorder %s10, 1
    %p122 = scmp.ne.s32.totalorder %s117, %s119
    %p123 = scmp.eq.s32.totalorder %s10, 0
    %p124 = por %p122, %p123
    %p125 = scmp.ne.s32.totalorder %s117, %s119
    %p126 = scmp.eq.s32.totalorder %s15, 1
    %p127 = por %p125, %p126
    %p128 = scmp.ne.s32.totalorder %s119, %s120
    %p129 = scmp.eq.s32.totalorder %s15, 0
    %p130 = por %p128, %p129
    %p131 = scmp.ne.s32.totalorder %s119, %s120
    %p132 = scmp.eq.s32.totalorder %s16, 1
    %p133 = por %p131, %p132
    %p135 = scmp.ne.s32.totalorder %s120, %s134
    %p136 = scmp.eq.s32.totalorder %s16, 0
    %p137 = por %p135, %p136
    %p138 = scmp.le.s32.totalorder 1, %s10
    %p139 = scmp.lt.s32.totalorder %s10, 3
    %p140 = pnand %p138, %p139
    %p141 = pneg %p140
    // Predicated region
    $region9: #{birnn_forward.2} parent=5 // pred_check
      _
    $region10: #{birnn_forward.2} parent=5 // pred_check_branch
      %143 = sbr.rel (%p140) target = $region12
    $region11: #{birnn_forward.2} parent=5 // pred_region
      %s144 = ssub.s32 %s10, 1
      // Predicated region
      $region13: #{birnn_forward.2} parent=11 // pred_check
        %p145 = pneg %p31
      $region14: #{birnn_forward.2} parent=11 // pred_check_branch
        %147 = sbr.rel (%p145) target = $region16
      $region15: #{birnn_forward.2} parent=11 // pred_region
        _
      $region16: #{birnn_forward.2} parent=11 // pred_fallthru
        _
    $region12: #{birnn_forward.2} parent=5 // pred_fallthru
      _
    %p148 = scmp.lt.s32.totalorder %s10, 2
    // Predicated region
    $region17: #{birnn_forward.2} parent=5 // pred_check
      %p149 = pneg %p148
    $region18: #{birnn_forward.2} parent=5 // pred_check_branch
      %151 = sbr.rel (%p149) target = $region20
    $region19: #{birnn_forward.2} parent=5 // pred_region
      // Predicated region
      $region21: #{birnn_forward.2} parent=19 // pred_check
        %p152 = pneg %p51
      $region22: #{birnn_forward.2} parent=19 // pred_check_branch
        %154 = sbr.rel (%p152) target = $region24
      $region23: #{birnn_forward.2} parent=19 // pred_region
        %p155 = scmp.lt.s32.totalorder %s10, 1
        %s156 = scalar_select %p155, %s10, 1
        %s157 = smul.addr %s156, 4
        %s158 = smul.addr %s157, 8
        %s159 = scalar_lea.vmem %s1, %s158
      $region24: #{birnn_forward.2} parent=19 // pred_fallthru
        _
      // Predicated region
      $region25: #{birnn_forward.2} parent=19 // pred_check
        %p160 = pneg %p77
      $region26: #{birnn_forward.2} parent=19 // pred_check_branch
        %162 = sbr.rel (%p160) target = $region28
      $region27: #{birnn_forward.2} parent=19 // pred_region
        %p163 = scmp.lt.s32.totalorder %s10, 1
        %s164 = scalar_select %p163, %s10, 1
        %s165 = smul.addr %s164, 4
        %s166 = smul.addr %s165, 8
        %s167 = scalar_lea.vmem %s2, %s166
      $region28: #{birnn_forward.2} parent=19 // pred_fallthru
        _
      // Predicated region
      $region29: #{birnn_forward.2} parent=19 // pred_check
        %p168 = pneg %p103
      $region30: #{birnn_forward.2} parent=19 // pred_check_branch
        %170 = sbr.rel (%p168) target = $region32
      $region31: #{birnn_forward.2} parent=19 // pred_region
        %p171 = scmp.lt.s32.totalorder %s10, 1
        %s172 = scalar_select %p171, %s10, 1
        %s173 = scalar_lea.vmem %s3, %s172
      $region32: #{birnn_forward.2} parent=19 // pred_fallthru
        _
    $region20: #{birnn_forward.2} parent=5 // pred_fallthru
      _
    %p174 = scmp.le.s32.totalorder 1, %s10
    %p175 = scmp.lt.s32.totalorder %s10, 3
    %p176 = pnand %p174, %p175
    %p177 = pneg %p176
    // Predicated region
    $region33: #{birnn_forward.2} parent=5 // pred_check
      _
    $region34: #{birnn_forward.2} parent=5 // pred_check_branch
      %179 = sbr.rel (%p176) target = $region36
    $region35: #{birnn_forward.2} parent=5 // pred_region
      %s180 = ssub.s32 %s10, 1
      %p181 = pneg %p31
      %p182 = pneg %p28
      %p183 = scmp.lt.s32.totalorder %s15, 1
      %s184 = scalar_select %p183, %s15, 1
      %s185 = smul.addr %s184, 4
      %s186 = smul.addr %s185, 8
      %s187 = scalar_lea.vmem %s1, %s186
      %p188 = pneg %p57
      %p189 = pneg %p54
      %p190 = scmp.lt.s32.totalorder %s15, 1
      %s191 = scalar_select %p190, %s15, 1
      %s192 = smul.addr %s191, 4
      %s193 = smul.addr %s192, 8
      %s194 = scalar_lea.vmem %s2, %s193
      %p195 = pneg %p83
      %p196 = pneg %p80
      %p197 = scmp.lt.s32.totalorder %s15, 1
      %s198 = scalar_select %p197, %s15, 1
      %s199 = scalar_lea.vmem %s3, %s198
      %p200 = pneg %p109
      %p201 = pneg %p106
      %p202 = pneg %p130
      %p203 = pneg %p127
      %p204 = scmp.lt.s32.totalorder %s15, 1
      %s205 = scalar_select %p204, %s15, 1
      %s206 = smul.addr %s205, 4
      %s207 = smul.addr %s206, 8
      %s208 = scalar_lea.vmem %s1, %s207
      %p209 = scmp.lt.s32.totalorder %s15, 1
      %s210 = scalar_select %p209, %s15, 1
      %s211 = smul.addr %s210, 4
      %s212 = smul.addr %s211, 8
      %s213 = scalar_lea.vmem %s2, %s212
      %p214 = scmp.lt.s32.totalorder %s15, 1
      %s215 = scalar_select %p214, %s15, 1
      %s216 = scalar_lea.vmem %s3, %s215
      %v217 = vld [vmem:[%s208] sm:$0xff]
      %v218 = vld [vmem:[%s208 + $0x8] sm:$0xff]
      %v219 = vld [vmem:[%s208 + $0x10] sm:$0xff]
      %v220 = vld [vmem:[%s208 + $0x18] sm:$0xff]
      %v221 = vld [vmem:[%s213] sm:$0xff]
      %v222 = vld [vmem:[%s213 + $0x8] sm:$0xff]
      %v223 = vld [vmem:[%s213 + $0x10] sm:$0xff]
      %v224 = vld [vmem:[%s213 + $0x18] sm:$0xff]
      %v225 = vld [vmem:[%s216] sm:$0x1]
      %p226 = scmp.eq.s32.totalorder %s15, 0
      // Predicated region
      $region37: #{birnn_forward.2} parent=35 // pred_check
        %p227 = pneg %p226
      $region38: #{birnn_forward.2} parent=35 // pred_check_branch
        %229 = sbr.rel (%p227) target = $region40
      $region39: #{birnn_forward.2} parent=35 // pred_region
        %v230 = vld [vmem:[%s0] sm:$0xff]
        %vm231 = vcmask 261120
        %v233 = vsel %vm231, 0.0, 0
        %235 = vmatpush.msra.mxu0 0.0
        %236 = vmatpush.msra.mxu0 0.0
        %237 = vmatpush.msra.mxu0 0.0
        %238 = vmatpush.msra.mxu0 0.0
        %239 = vmatpush.msra.mxu0 0.0
        %240 = vmatpush.msra.mxu0 0.0
        %241 = vmatpush.msra.mxu0 0.0
        %242 = vmatpush.msra.mxu0 0.0
        %243 = vmatpush.msra.mxu0 0.0
        %244 = vmatpush.msra.mxu0 0.0
        %245 = vmatpush.msra.mxu0 0.0
        %246 = vmatpush.msra.mxu0 0.0
        %247 = vmatpush.msra.mxu0 %v224
        %248 = vmatpush.msra.mxu0 %v223
        %249 = vmatpush.msra.mxu0 %v222
        %250 = vmatpush.msra.mxu0 %v221
        %251 = vmatmul.f32.gmra.mxu0 %v233
        %v252 = vpop.f32.mrf.mxu0
        %v253 = vadd.f32 0.0, %v252
        %254 = vdwg.mxu0
        %v256 = vsel %vm231, %v230, 0
        %258 = vmatpush.msra.mxu0 0.0
        %259 = vmatpush.msra.mxu0 0.0
        %260 = vmatpush.msra.mxu0 0.0
        %261 = vmatpush.msra.mxu0 0.0
        %262 = vmatpush.msra.mxu0 0.0
        %263 = vmatpush.msra.mxu0 0.0
        %264 = vmatpush.msra.mxu0 0.0
        %265 = vmatpush.msra.mxu0 0.0
        %266 = vmatpush.msra.mxu0 0.0
        %267 = vmatpush.msra.mxu0 0.0
        %268 = vmatpush.msra.mxu0 0.0
        %269 = vmatpush.msra.mxu0 0.0
        %270 = vmatpush.msra.mxu0 %v220
        %271 = vmatpush.msra.mxu0 %v219
        %272 = vmatpush.msra.mxu0 %v218
        %273 = vmatpush.msra.mxu0 %v217
        %274 = vmatmul.f32.gmra.mxu0 %v256
        %v275 = vpop.f32.mrf.mxu0
        %v276 = vadd.f32 %v253, %v275
        %277 = vdwg.mxu0
        %v279 = vperm.slane %v225, 0
        %v281 = vadd.f32 %v276, %v279
        %v282 = vxor.u32 %v281, 2147483648
        %v283 = vmul.f32 %v282, 1.442695
        %v284 = vpow.pop %v283
        %v285 = vadd.f32 %v284, 1.0
        %v286 = vrcp.pop %v285
        %v287 = vmul.f32 %v285, %v286
        %v288 = vsub.f32 1.0, %v287
        %v289 = vmul.f32 %v286, %v288
        %v290 = vadd.f32 %v286, %v289
        %vm291 = vweird.f32 %v285
        %vm292 = vweird.f32 %v286
        %vm293 = vmor %vm291, %vm292
        %v294 = vsel %vm293, %v286, %v290
        %v295 = vand.u32 2147483647, %v285
        %vm296 = vcmp.eq.f32.partialorder %v295, 8.507059e+37
        %v297 = vand.u32 %v285, 2147483648
        %v298 = vor.u32 1.1754944e-38, %v297
        %v299 = vsel %vm296, %v298, %v294
        %v300 = vmul.f32 1.0, %v299
        %v301 = vtanh.pop %v281
        %v302 = vmul.f32 %v300, 0.0
        %304 = vrot.lane.b32.xlu0 %v301, 64
        %v305 = vpop.permute.xlu0 %304
        %v307 = vmul.f32 %v300, %v305
        %309 = vrot.lane.b32.xlu0 %v307, 32
        %v310 = vpop.permute.xlu0 %309
        %v312 = vadd.f32 %v302, %v310
        %v313 = vtanh.pop %v312
        %315 = vrot.lane.b32.xlu0 %v313, 64
        %v316 = vpop.permute.xlu0 %315
        %v318 = vmul.f32 %v300, %v316
        %320 = vrot.lane.b32.xlu0 %v318, 32
        %v321 = vpop.permute.xlu0 %320
        %323 = vst.msk [vmem:[%s4] sm:$0xff] %vm231, %v321
        %s324 = scalar_lea.vmem %s0, 8
        %v325 = vld [vmem:[%s324] sm:$0xff]
        %v326 = vsel %vm231, %v321, 0
        %328 = vmatpush.msra.mxu0 0.0
        %329 = vmatpush.msra.mxu0 0.0
        %330 = vmatpush.msra.mxu0 0.0
        %331 = vmatpush.msra.mxu0 0.0
        %332 = vmatpush.msra.mxu0 0.0
        %333 = vmatpush.msra.mxu0 0.0
        %334 = vmatpush.msra.mxu0 0.0
        %335 = vmatpush.msra.mxu0 0.0
        %336 = vmatpush.msra.mxu0 0.0
        %337 = vmatpush.msra.mxu0 0.0
        %338 = vmatpush.msra.mxu0 0.0
        %339 = vmatpush.msra.mxu0 0.0
        %340 = vmatpush.msra.mxu0 %v224
        %341 = vmatpush.msra.mxu0 %v223
        %342 = vmatpush.msra.mxu0 %v222
        %343 = vmatpush.msra.mxu0 %v221
        %344 = vmatmul.f32.gmra.mxu0 %v326
        %v345 = vpop.f32.mrf.mxu0
        %v346 = vadd.f32 0.0, %v345
        %347 = vdwg.mxu0
        %v349 = vsel %vm231, %v325, 0
        %351 = vmatpush.msra.mxu0 0.0
        %352 = vmatpush.msra.mxu0 0.0
        %353 = vmatpush.msra.mxu0 0.0
        %354 = vmatpush.msra.mxu0 0.0
        %355 = vmatpush.msra.mxu0 0.0
        %356 = vmatpush.msra.mxu0 0.0
        %357 = vmatpush.msra.mxu0 0.0
        %358 = vmatpush.msra.mxu0 0.0
        %359 = vmatpush.msra.mxu0 0.0
        %360 = vmatpush.msra.mxu0 0.0
        %361 = vmatpush.msra.mxu0 0.0
        %362 = vmatpush.msra.mxu0 0.0
        %363 = vmatpush.msra.mxu0 %v220
        %364 = vmatpush.msra.mxu0 %v219
        %365 = vmatpush.msra.mxu0 %v218
        %366 = vmatpush.msra.mxu0 %v217
        %367 = vmatmul.f32.gmra.mxu0 %v349
        %v368 = vpop.f32.mrf.mxu0
        %v369 = vadd.f32 %v346, %v368
        %370 = vdwg.mxu0
        %v371 = vadd.f32 %v369, %v279
        %v372 = vxor.u32 %v371, 2147483648
        %v373 = vmul.f32 %v372, 1.442695
        %v374 = vpow.pop %v373
        %v375 = vadd.f32 %v374, 1.0
        %v376 = vrcp.pop %v375
        %v377 = vmul.f32 %v375, %v376
        %v378 = vsub.f32 1.0, %v377
        %v379 = vmul.f32 %v376, %v378
        %v380 = vadd.f32 %v376, %v379
        %vm381 = vweird.f32 %v375
        %vm382 = vweird.f32 %v376
        %vm383 = vmor %vm381, %vm382
        %v384 = vsel %vm383, %v376, %v380
        %v385 = vand.u32 2147483647, %v375
        %vm386 = vcmp.eq.f32.partialorder %v385, 8.507059e+37
        %v387 = vand.u32 %v375, 2147483648
        %v388 = vor.u32 1.1754944e-38, %v387
        %v389 = vsel %vm386, %v388, %v384
        %v390 = vmul.f32 1.0, %v389
        %v391 = vtanh.pop %v371
        %v392 = vmul.f32 %v390, %v312
        %394 = vrot.lane.b32.xlu0 %v391, 64
        %v395 = vpop.permute.xlu0 %394
        %v397 = vmul.f32 %v390, %v395
        %399 = vrot.lane.b32.xlu0 %v397, 32
        %v400 = vpop.permute.xlu0 %399
        %v402 = vadd.f32 %v392, %v400
        %v403 = vtanh.pop %v402
        %405 = vrot.lane.b32.xlu0 %v403, 64
        %v406 = vpop.permute.xlu0 %405
        %v408 = vmul.f32 %v390, %v406
        %410 = vrot.lane.b32.xlu0 %v408, 32
        %v411 = vpop.permute.xlu0 %410
        %s413 = scalar_lea.vmem %s4, 8
        %414 = vst.msk [vmem:[%s413] sm:$0xff] %vm231, %v411
        %s415 = scalar_lea.vmem %s0, 16
        %v416 = vld [vmem:[%s415] sm:$0xff]
        %v417 = vsel %vm231, %v411, 0
        %419 = vmatpush.msra.mxu0 0.0
        %420 = vmatpush.msra.mxu0 0.0
        %421 = vmatpush.msra.mxu0 0.0
        %422 = vmatpush.msra.mxu0 0.0
        %423 = vmatpush.msra.mxu0 0.0
        %424 = vmatpush.msra.mxu0 0.0
        %425 = vmatpush.msra.mxu0 0.0
        %426 = vmatpush.msra.mxu0 0.0
        %427 = vmatpush.msra.mxu0 0.0
        %428 = vmatpush.msra.mxu0 0.0
        %429 = vmatpush.msra.mxu0 0.0
        %430 = vmatpush.msra.mxu0 0.0
        %431 = vmatpush.msra.mxu0 %v224
        %432 = vmatpush.msra.mxu0 %v223
        %433 = vmatpush.msra.mxu0 %v222
        %434 = vmatpush.msra.mxu0 %v221
        %435 = vmatmul.f32.gmra.mxu0 %v417
        %v436 = vpop.f32.mrf.mxu0
        %v437 = vadd.f32 0.0, %v436
        %438 = vdwg.mxu0
        %v440 = vsel %vm231, %v416, 0
        %442 = vmatpush.msra.mxu0 0.0
        %443 = vmatpush.msra.mxu0 0.0
        %444 = vmatpush.msra.mxu0 0.0
        %445 = vmatpush.msra.mxu0 0.0
        %446 = vmatpush.msra.mxu0 0.0
        %447 = vmatpush.msra.mxu0 0.0
        %448 = vmatpush.msra.mxu0 0.0
        %449 = vmatpush.msra.mxu0 0.0
        %450 = vmatpush.msra.mxu0 0.0
        %451 = vmatpush.msra.mxu0 0.0
        %452 = vmatpush.msra.mxu0 0.0
        %453 = vmatpush.msra.mxu0 0.0
        %454 = vmatpush.msra.mxu0 %v220
        %455 = vmatpush.msra.mxu0 %v219
        %456 = vmatpush.msra.mxu0 %v218
        %457 = vmatpush.msra.mxu0 %v217
        %458 = vmatmul.f32.gmra.mxu0 %v440
        %v459 = vpop.f32.mrf.mxu0
        %v460 = vadd.f32 %v437, %v459
        %461 = vdwg.mxu0
        %v462 = vadd.f32 %v460, %v279
        %v463 = vxor.u32 %v462, 2147483648
        %v464 = vmul.f32 %v463, 1.442695
        %v465 = vpow.pop %v464
        %v466 = vadd.f32 %v465, 1.0
        %v467 = vrcp.pop %v466
        %v468 = vmul.f32 %v466, %v467
        %v469 = vsub.f32 1.0, %v468
        %v470 = vmul.f32 %v467, %v469
        %v471 = vadd.f32 %v467, %v470
        %vm472 = vweird.f32 %v466
        %vm473 = vweird.f32 %v467
        %vm474 = vmor %vm472, %vm473
        %v475 = vsel %vm474, %v467, %v471
        %v476 = vand.u32 2147483647, %v466
        %vm477 = vcmp.eq.f32.partialorder %v476, 8.507059e+37
        %v478 = vand.u32 %v466, 2147483648
        %v479 = vor.u32 1.1754944e-38, %v478
        %v480 = vsel %vm477, %v479, %v475
        %v481 = vmul.f32 1.0, %v480
        %v482 = vtanh.pop %v462
        %v483 = vmul.f32 %v481, %v402
        %485 = vrot.lane.b32.xlu0 %v482, 64
        %v486 = vpop.permute.xlu0 %485
        %v488 = vmul.f32 %v481, %v486
        %490 = vrot.lane.b32.xlu0 %v488, 32
        %v491 = vpop.permute.xlu0 %490
        %v493 = vadd.f32 %v483, %v491
        %v494 = vtanh.pop %v493
        %496 = vrot.lane.b32.xlu0 %v494, 64
        %v497 = vpop.permute.xlu0 %496
        %v499 = vmul.f32 %v481, %v497
        %501 = vrot.lane.b32.xlu0 %v499, 32
        %v502 = vpop.permute.xlu0 %501
        %s504 = scalar_lea.vmem %s4, 16
        %505 = vst.msk [vmem:[%s504] sm:$0xff] %vm231, %v502
        %s506 = scalar_lea.vmem %s0, 24
        %v507 = vld [vmem:[%s506] sm:$0xff]
        %v508 = vsel %vm231, %v502, 0
        %510 = vmatpush.msra.mxu0 0.0
        %511 = vmatpush.msra.mxu0 0.0
        %512 = vmatpush.msra.mxu0 0.0
        %513 = vmatpush.msra.mxu0 0.0
        %514 = vmatpush.msra.mxu0 0.0
        %515 = vmatpush.msra.mxu0 0.0
        %516 = vmatpush.msra.mxu0 0.0
        %517 = vmatpush.msra.mxu0 0.0
        %518 = vmatpush.msra.mxu0 0.0
        %519 = vmatpush.msra.mxu0 0.0
        %520 = vmatpush.msra.mxu0 0.0
        %521 = vmatpush.msra.mxu0 0.0
        %522 = vmatpush.msra.mxu0 %v224
        %523 = vmatpush.msra.mxu0 %v223
        %524 = vmatpush.msra.mxu0 %v222
        %525 = vmatpush.msra.mxu0 %v221
        %526 = vmatmul.f32.gmra.mxu0 %v508
        %v527 = vpop.f32.mrf.mxu0
        %v528 = vadd.f32 0.0, %v527
        %529 = vdwg.mxu0
        %v531 = vsel %vm231, %v507, 0
        %533 = vmatpush.msra.mxu0 0.0
        %534 = vmatpush.msra.mxu0 0.0
        %535 = vmatpush.msra.mxu0 0.0
        %536 = vmatpush.msra.mxu0 0.0
        %537 = vmatpush.msra.mxu0 0.0
        %538 = vmatpush.msra.mxu0 0.0
        %539 = vmatpush.msra.mxu0 0.0
        %540 = vmatpush.msra.mxu0 0.0
        %541 = vmatpush.msra.mxu0 0.0
        %542 = vmatpush.msra.mxu0 0.0
        %543 = vmatpush.msra.mxu0 0.0
        %544 = vmatpush.msra.mxu0 0.0
        %545 = vmatpush.msra.mxu0 %v220
        %546 = vmatpush.msra.mxu0 %v219
        %547 = vmatpush.msra.mxu0 %v218
        %548 = vmatpush.msra.mxu0 %v217
        %549 = vmatmul.f32.gmra.mxu0 %v531
        %v550 = vpop.f32.mrf.mxu0
        %v551 = vadd.f32 %v528, %v550
        %552 = vdwg.mxu0
        %v553 = vadd.f32 %v551, %v279
        %v554 = vxor.u32 %v553, 2147483648
        %v555 = vmul.f32 %v554, 1.442695
        %v556 = vpow.pop %v555
        %v557 = vadd.f32 %v556, 1.0
        %v558 = vrcp.pop %v557
        %v559 = vmul.f32 %v557, %v558
        %v560 = vsub.f32 1.0, %v559
        %v561 = vmul.f32 %v558, %v560
        %v562 = vadd.f32 %v558, %v561
        %vm563 = vweird.f32 %v557
        %vm564 = vweird.f32 %v558
        %vm565 = vmor %vm563, %vm564
        %v566 = vsel %vm565, %v558, %v562
        %v567 = vand.u32 2147483647, %v557
        %vm568 = vcmp.eq.f32.partialorder %v567, 8.507059e+37
        %v569 = vand.u32 %v557, 2147483648
        %v570 = vor.u32 1.1754944e-38, %v569
        %v571 = vsel %vm568, %v570, %v566
        %v572 = vmul.f32 1.0, %v571
        %v573 = vtanh.pop %v553
        %v574 = vmul.f32 %v572, %v493
        %576 = vrot.lane.b32.xlu0 %v573, 64
        %v577 = vpop.permute.xlu0 %576
        %v579 = vmul.f32 %v572, %v577
        %581 = vrot.lane.b32.xlu0 %v579, 32
        %v582 = vpop.permute.xlu0 %581
        %v584 = vadd.f32 %v574, %v582
        %v585 = vtanh.pop %v584
        %587 = vrot.lane.b32.xlu0 %v585, 64
        %v588 = vpop.permute.xlu0 %587
        %v590 = vmul.f32 %v572, %v588
        %592 = vrot.lane.b32.xlu0 %v590, 32
        %v593 = vpop.permute.xlu0 %592
        %s595 = scalar_lea.vmem %s4, 24
        %596 = vst.msk [vmem:[%s595] sm:$0xff] %vm231, %v593
        %s597 = scalar_lea.vmem %s0, 32
        %v598 = vld [vmem:[%s597] sm:$0xff]
        %v599 = vsel %vm231, %v593, 0
        %601 = vmatpush.msra.mxu0 0.0
        %602 = vmatpush.msra.mxu0 0.0
        %603 = vmatpush.msra.mxu0 0.0
        %604 = vmatpush.msra.mxu0 0.0
        %605 = vmatpush.msra.mxu0 0.0
        %606 = vmatpush.msra.mxu0 0.0
        %607 = vmatpush.msra.mxu0 0.0
        %608 = vmatpush.msra.mxu0 0.0
        %609 = vmatpush.msra.mxu0 0.0
        %610 = vmatpush.msra.mxu0 0.0
        %611 = vmatpush.msra.mxu0 0.0
        %612 = vmatpush.msra.mxu0 0.0
        %613 = vmatpush.msra.mxu0 %v224
        %614 = vmatpush.msra.mxu0 %v223
        %615 = vmatpush.msra.mxu0 %v222
        %616 = vmatpush.msra.mxu0 %v221
        %617 = vmatmul.f32.gmra.mxu0 %v599
        %v618 = vpop.f32.mrf.mxu0
        %v619 = vadd.f32 0.0, %v618
        %620 = vdwg.mxu0
        %v622 = vsel %vm231, %v598, 0
        %624 = vmatpush.msra.mxu0 0.0
        %625 = vmatpush.msra.mxu0 0.0
        %626 = vmatpush.msra.mxu0 0.0
        %627 = vmatpush.msra.mxu0 0.0
        %628 = vmatpush.msra.mxu0 0.0
        %629 = vmatpush.msra.mxu0 0.0
        %630 = vmatpush.msra.mxu0 0.0
        %631 = vmatpush.msra.mxu0 0.0
        %632 = vmatpush.msra.mxu0 0.0
        %633 = vmatpush.msra.mxu0 0.0
        %634 = vmatpush.msra.mxu0 0.0
        %635 = vmatpush.msra.mxu0 0.0
        %636 = vmatpush.msra.mxu0 %v220
        %637 = vmatpush.msra.mxu0 %v219
        %638 = vmatpush.msra.mxu0 %v218
        %639 = vmatpush.msra.mxu0 %v217
        %640 = vmatmul.f32.gmra.mxu0 %v622
        %v641 = vpop.f32.mrf.mxu0
        %v642 = vadd.f32 %v619, %v641
        %643 = vdwg.mxu0
        %v644 = vadd.f32 %v642, %v279
        %v645 = vxor.u32 %v644, 2147483648
        %v646 = vmul.f32 %v645, 1.442695
        %v647 = vpow.pop %v646
        %v648 = vadd.f32 %v647, 1.0
        %v649 = vrcp.pop %v648
        %v650 = vmul.f32 %v648, %v649
        %v651 = vsub.f32 1.0, %v650
        %v652 = vmul.f32 %v649, %v651
        %v653 = vadd.f32 %v649, %v652
        %vm654 = vweird.f32 %v648
        %vm655 = vweird.f32 %v649
        %vm656 = vmor %vm654, %vm655
        %v657 = vsel %vm656, %v649, %v653
        %v658 = vand.u32 2147483647, %v648
        %vm659 = vcmp.eq.f32.partialorder %v658, 8.507059e+37
        %v660 = vand.u32 %v648, 2147483648
        %v661 = vor.u32 1.1754944e-38, %v660
        %v662 = vsel %vm659, %v661, %v657
        %v663 = vmul.f32 1.0, %v662
        %v664 = vtanh.pop %v644
        %v665 = vmul.f32 %v663, %v584
        %667 = vrot.lane.b32.xlu0 %v664, 64
        %v668 = vpop.permute.xlu0 %667
        %v670 = vmul.f32 %v663, %v668
        %672 = vrot.lane.b32.xlu0 %v670, 32
        %v673 = vpop.permute.xlu0 %672
        %v675 = vadd.f32 %v665, %v673
        %v676 = vtanh.pop %v675
        %678 = vrot.lane.b32.xlu0 %v676, 64
        %v679 = vpop.permute.xlu0 %678
        %v681 = vmul.f32 %v663, %v679
        %683 = vrot.lane.b32.xlu0 %v681, 32
        %v684 = vpop.permute.xlu0 %683
        %s686 = scalar_lea.vmem %s4, 32
        %687 = vst.msk [vmem:[%s686] sm:$0xff] %vm231, %v684
        %s688 = scalar_lea.vmem %s0, 40
        %v689 = vld [vmem:[%s688] sm:$0xff]
        %v690 = vsel %vm231, %v684, 0
        %692 = vmatpush.msra.mxu0 0.0
        %693 = vmatpush.msra.mxu0 0.0
        %694 = vmatpush.msra.mxu0 0.0
        %695 = vmatpush.msra.mxu0 0.0
        %696 = vmatpush.msra.mxu0 0.0
        %697 = vmatpush.msra.mxu0 0.0
        %698 = vmatpush.msra.mxu0 0.0
        %699 = vmatpush.msra.mxu0 0.0
        %700 = vmatpush.msra.mxu0 0.0
        %701 = vmatpush.msra.mxu0 0.0
        %702 = vmatpush.msra.mxu0 0.0
        %703 = vmatpush.msra.mxu0 0.0
        %704 = vmatpush.msra.mxu0 %v224
        %705 = vmatpush.msra.mxu0 %v223
        %706 = vmatpush.msra.mxu0 %v222
        %707 = vmatpush.msra.mxu0 %v221
        %708 = vmatmul.f32.gmra.mxu0 %v690
        %v709 = vpop.f32.mrf.mxu0
        %v710 = vadd.f32 0.0, %v709
        %711 = vdwg.mxu0
        %v713 = vsel %vm231, %v689, 0
        %715 = vmatpush.msra.mxu0 0.0
        %716 = vmatpush.msra.mxu0 0.0
        %717 = vmatpush.msra.mxu0 0.0
        %718 = vmatpush.msra.mxu0 0.0
        %719 = vmatpush.msra.mxu0 0.0
        %720 = vmatpush.msra.mxu0 0.0
        %721 = vmatpush.msra.mxu0 0.0
        %722 = vmatpush.msra.mxu0 0.0
        %723 = vmatpush.msra.mxu0 0.0
        %724 = vmatpush.msra.mxu0 0.0
        %725 = vmatpush.msra.mxu0 0.0
        %726 = vmatpush.msra.mxu0 0.0
        %727 = vmatpush.msra.mxu0 %v220
        %728 = vmatpush.msra.mxu0 %v219
        %729 = vmatpush.msra.mxu0 %v218
        %730 = vmatpush.msra.mxu0 %v217
        %731 = vmatmul.f32.gmra.mxu0 %v713
        %v732 = vpop.f32.mrf.mxu0
        %v733 = vadd.f32 %v710, %v732
        %734 = vdwg.mxu0
        %v735 = vadd.f32 %v733, %v279
        %v736 = vxor.u32 %v735, 2147483648
        %v737 = vmul.f32 %v736, 1.442695
        %v738 = vpow.pop %v737
        %v739 = vadd.f32 %v738, 1.0
        %v740 = vrcp.pop %v739
        %v741 = vmul.f32 %v739, %v740
        %v742 = vsub.f32 1.0, %v741
        %v743 = vmul.f32 %v740, %v742
        %v744 = vadd.f32 %v740, %v743
        %vm745 = vweird.f32 %v739
        %vm746 = vweird.f32 %v740
        %vm747 = vmor %vm745, %vm746
        %v748 = vsel %vm747, %v740, %v744
        %v749 = vand.u32 2147483647, %v739
        %vm750 = vcmp.eq.f32.partialorder %v749, 8.507059e+37
        %v751 = vand.u32 %v739, 2147483648
        %v752 = vor.u32 1.1754944e-38, %v751
        %v753 = vsel %vm750, %v752, %v748
        %v754 = vmul.f32 1.0, %v753
        %v755 = vtanh.pop %v735
        %v756 = vmul.f32 %v754, %v675
        %758 = vrot.lane.b32.xlu0 %v755, 64
        %v759 = vpop.permute.xlu0 %758
        %v761 = vmul.f32 %v754, %v759
        %763 = vrot.lane.b32.xlu0 %v761, 32
        %v764 = vpop.permute.xlu0 %763
        %v766 = vadd.f32 %v756, %v764
        %v767 = vtanh.pop %v766
        %769 = vrot.lane.b32.xlu0 %v767, 64
        %v770 = vpop.permute.xlu0 %769
        %v772 = vmul.f32 %v754, %v770
        %774 = vrot.lane.b32.xlu0 %v772, 32
        %v775 = vpop.permute.xlu0 %774
        %s777 = scalar_lea.vmem %s4, 40
        %778 = vst.msk [vmem:[%s777] sm:$0xff] %vm231, %v775
        %s779 = scalar_lea.vmem %s0, 48
        %v780 = vld [vmem:[%s779] sm:$0xff]
        %v781 = vsel %vm231, %v775, 0
        %783 = vmatpush.msra.mxu0 0.0
        %784 = vmatpush.msra.mxu0 0.0
        %785 = vmatpush.msra.mxu0 0.0
        %786 = vmatpush.msra.mxu0 0.0
        %787 = vmatpush.msra.mxu0 0.0
        %788 = vmatpush.msra.mxu0 0.0
        %789 = vmatpush.msra.mxu0 0.0
        %790 = vmatpush.msra.mxu0 0.0
        %791 = vmatpush.msra.mxu0 0.0
        %792 = vmatpush.msra.mxu0 0.0
        %793 = vmatpush.msra.mxu0 0.0
        %794 = vmatpush.msra.mxu0 0.0
        %795 = vmatpush.msra.mxu0 %v224
        %796 = vmatpush.msra.mxu0 %v223
        %797 = vmatpush.msra.mxu0 %v222
        %798 = vmatpush.msra.mxu0 %v221
        %799 = vmatmul.f32.gmra.mxu0 %v781
        %v800 = vpop.f32.mrf.mxu0
        %v801 = vadd.f32 0.0, %v800
        %802 = vdwg.mxu0
        %v804 = vsel %vm231, %v780, 0
        %806 = vmatpush.msra.mxu0 0.0
        %807 = vmatpush.msra.mxu0 0.0
        %808 = vmatpush.msra.mxu0 0.0
        %809 = vmatpush.msra.mxu0 0.0
        %810 = vmatpush.msra.mxu0 0.0
        %811 = vmatpush.msra.mxu0 0.0
        %812 = vmatpush.msra.mxu0 0.0
        %813 = vmatpush.msra.mxu0 0.0
        %814 = vmatpush.msra.mxu0 0.0
        %815 = vmatpush.msra.mxu0 0.0
        %816 = vmatpush.msra.mxu0 0.0
        %817 = vmatpush.msra.mxu0 0.0
        %818 = vmatpush.msra.mxu0 %v220
        %819 = vmatpush.msra.mxu0 %v219
        %820 = vmatpush.msra.mxu0 %v218
        %821 = vmatpush.msra.mxu0 %v217
        %822 = vmatmul.f32.gmra.mxu0 %v804
        %v823 = vpop.f32.mrf.mxu0
        %v824 = vadd.f32 %v801, %v823
        %825 = vdwg.mxu0
        %v826 = vadd.f32 %v824, %v279
        %v827 = vxor.u32 %v826, 2147483648
        %v828 = vmul.f32 %v827, 1.442695
        %v829 = vpow.pop %v828
        %v830 = vadd.f32 %v829, 1.0
        %v831 = vrcp.pop %v830
        %v832 = vmul.f32 %v830, %v831
        %v833 = vsub.f32 1.0, %v832
        %v834 = vmul.f32 %v831, %v833
        %v835 = vadd.f32 %v831, %v834
        %vm836 = vweird.f32 %v830
        %vm837 = vweird.f32 %v831
        %vm838 = vmor %vm836, %vm837
        %v839 = vsel %vm838, %v831, %v835
        %v840 = vand.u32 2147483647, %v830
        %vm841 = vcmp.eq.f32.partialorder %v840, 8.507059e+37
        %v842 = vand.u32 %v830, 2147483648
        %v843 = vor.u32 1.1754944e-38, %v842
        %v844 = vsel %vm841, %v843, %v839
        %v845 = vmul.f32 1.0, %v844
        %v846 = vtanh.pop %v826
        %v847 = vmul.f32 %v845, %v766
        %849 = vrot.lane.b32.xlu0 %v846, 64
        %v850 = vpop.permute.xlu0 %849
        %v852 = vmul.f32 %v845, %v850
        %854 = vrot.lane.b32.xlu0 %v852, 32
        %v855 = vpop.permute.xlu0 %854
        %v857 = vadd.f32 %v847, %v855
        %v858 = vtanh.pop %v857
        %860 = vrot.lane.b32.xlu0 %v858, 64
        %v861 = vpop.permute.xlu0 %860
        %v863 = vmul.f32 %v845, %v861
        %865 = vrot.lane.b32.xlu0 %v863, 32
        %v866 = vpop.permute.xlu0 %865
        %s868 = scalar_lea.vmem %s4, 48
        %869 = vst.msk [vmem:[%s868] sm:$0xff] %vm231, %v866
        %s870 = scalar_lea.vmem %s0, 56
        %v871 = vld [vmem:[%s870] sm:$0xff]
        %v872 = vsel %vm231, %v866, 0
        %874 = vmatpush.msra.mxu0 0.0
        %875 = vmatpush.msra.mxu0 0.0
        %876 = vmatpush.msra.mxu0 0.0
        %877 = vmatpush.msra.mxu0 0.0
        %878 = vmatpush.msra.mxu0 0.0
        %879 = vmatpush.msra.mxu0 0.0
        %880 = vmatpush.msra.mxu0 0.0
        %881 = vmatpush.msra.mxu0 0.0
        %882 = vmatpush.msra.mxu0 0.0
        %883 = vmatpush.msra.mxu0 0.0
        %884 = vmatpush.msra.mxu0 0.0
        %885 = vmatpush.msra.mxu0 0.0
        %886 = vmatpush.msra.mxu0 %v224
        %887 = vmatpush.msra.mxu0 %v223
        %888 = vmatpush.msra.mxu0 %v222
        %889 = vmatpush.msra.mxu0 %v221
        %890 = vmatmul.f32.gmra.mxu0 %v872
        %v891 = vpop.f32.mrf.mxu0
        %v892 = vadd.f32 0.0, %v891
        %893 = vdwg.mxu0
        %v895 = vsel %vm231, %v871, 0
        %897 = vmatpush.msra.mxu0 0.0
        %898 = vmatpush.msra.mxu0 0.0
        %899 = vmatpush.msra.mxu0 0.0
        %900 = vmatpush.msra.mxu0 0.0
        %901 = vmatpush.msra.mxu0 0.0
        %902 = vmatpush.msra.mxu0 0.0
        %903 = vmatpush.msra.mxu0 0.0
        %904 = vmatpush.msra.mxu0 0.0
        %905 = vmatpush.msra.mxu0 0.0
        %906 = vmatpush.msra.mxu0 0.0
        %907 = vmatpush.msra.mxu0 0.0
        %908 = vmatpush.msra.mxu0 0.0
        %909 = vmatpush.msra.mxu0 %v220
        %910 = vmatpush.msra.mxu0 %v219
        %911 = vmatpush.msra.mxu0 %v218
        %912 = vmatpush.msra.mxu0 %v217
        %913 = vmatmul.f32.gmra.mxu0 %v895
        %v914 = vpop.f32.mrf.mxu0
        %v915 = vadd.f32 %v892, %v914
        %916 = vdwg.mxu0
        %v917 = vadd.f32 %v915, %v279
        %v918 = vxor.u32 %v917, 2147483648
        %v919 = vmul.f32 %v918, 1.442695
        %v920 = vpow.pop %v919
        %v921 = vadd.f32 %v920, 1.0
        %v922 = vrcp.pop %v921
        %v923 = vmul.f32 %v921, %v922
        %v924 = vsub.f32 1.0, %v923
        %v925 = vmul.f32 %v922, %v924
        %v926 = vadd.f32 %v922, %v925
        %vm927 = vweird.f32 %v921
        %vm928 = vweird.f32 %v922
        %vm929 = vmor %vm927, %vm928
        %v930 = vsel %vm929, %v922, %v926
        %v931 = vand.u32 2147483647, %v921
        %vm932 = vcmp.eq.f32.partialorder %v931, 8.507059e+37
        %v933 = vand.u32 %v921, 2147483648
        %v934 = vor.u32 1.1754944e-38, %v933
        %v935 = vsel %vm932, %v934, %v930
        %v936 = vmul.f32 1.0, %v935
        %v937 = vtanh.pop %v917
        %v938 = vmul.f32 %v936, %v857
        %940 = vrot.lane.b32.xlu0 %v937, 64
        %v941 = vpop.permute.xlu0 %940
        %v943 = vmul.f32 %v936, %v941
        %945 = vrot.lane.b32.xlu0 %v943, 32
        %v946 = vpop.permute.xlu0 %945
        %v948 = vadd.f32 %v938, %v946
        %v949 = vtanh.pop %v948
        %951 = vrot.lane.b32.xlu0 %v949, 64
        %v952 = vpop.permute.xlu0 %951
        %v954 = vmul.f32 %v936, %v952
        %956 = vrot.lane.b32.xlu0 %v954, 32
        %v957 = vpop.permute.xlu0 %956
        %s959 = scalar_lea.vmem %s4, 56
        %960 = vst.msk [vmem:[%s959] sm:$0xff] %vm231, %v957
      $region40: #{birnn_forward.2} parent=35 // pred_fallthru
        _
      %p961 = scmp.eq.s32.totalorder %s15, 1
      // Predicated region
      $region41: #{birnn_forward.2} parent=35 // pred_check
        %p962 = pneg %p961
      $region42: #{birnn_forward.2} parent=35 // pred_check_branch
        %964 = sbr.rel (%p962) target = $region44
      $region43: #{birnn_forward.2} parent=35 // pred_region
        %s965 = scalar_lea.vmem %s0, 56
        %v966 = vld [vmem:[%s965] sm:$0xff]
        %vm967 = vcmask 261120
        %v969 = vsel %vm967, 0.0, 0
        %971 = vmatpush.msra.mxu0 0.0
        %972 = vmatpush.msra.mxu0 0.0
        %973 = vmatpush.msra.mxu0 0.0
        %974 = vmatpush.msra.mxu0 0.0
        %975 = vmatpush.msra.mxu0 0.0
        %976 = vmatpush.msra.mxu0 0.0
        %977 = vmatpush.msra.mxu0 0.0
        %978 = vmatpush.msra.mxu0 0.0
        %979 = vmatpush.msra.mxu0 0.0
        %980 = vmatpush.msra.mxu0 0.0
        %981 = vmatpush.msra.mxu0 0.0
        %982 = vmatpush.msra.mxu0 0.0
        %983 = vmatpush.msra.mxu0 %v224
        %984 = vmatpush.msra.mxu0 %v223
        %985 = vmatpush.msra.mxu0 %v222
        %986 = vmatpush.msra.mxu0 %v221
        %987 = vmatmul.f32.gmra.mxu0 %v969
        %v988 = vpop.f32.mrf.mxu0
        %v989 = vadd.f32 0.0, %v988
        %990 = vdwg.mxu0
        %v992 = vsel %vm967, %v966, 0
        %994 = vmatpush.msra.mxu0 0.0
        %995 = vmatpush.msra.mxu0 0.0
        %996 = vmatpush.msra.mxu0 0.0
        %997 = vmatpush.msra.mxu0 0.0
        %998 = vmatpush.msra.mxu0 0.0
        %999 = vmatpush.msra.mxu0 0.0
        %1000 = vmatpush.msra.mxu0 0.0
        %1001 = vmatpush.msra.mxu0 0.0
        %1002 = vmatpush.msra.mxu0 0.0
        %1003 = vmatpush.msra.mxu0 0.0
        %1004 = vmatpush.msra.mxu0 0.0
        %1005 = vmatpush.msra.mxu0 0.0
        %1006 = vmatpush.msra.mxu0 %v220
        %1007 = vmatpush.msra.mxu0 %v219
        %1008 = vmatpush.msra.mxu0 %v218
        %1009 = vmatpush.msra.mxu0 %v217
        %1010 = vmatmul.f32.gmra.mxu0 %v992
        %v1011 = vpop.f32.mrf.mxu0
        %v1012 = vadd.f32 %v989, %v1011
        %1013 = vdwg.mxu0
        %v1015 = vperm.slane %v225, 0
        %v1017 = vadd.f32 %v1012, %v1015
        %v1018 = vxor.u32 %v1017, 2147483648
        %v1019 = vmul.f32 %v1018, 1.442695
        %v1020 = vpow.pop %v1019
        %v1021 = vadd.f32 %v1020, 1.0
        %v1022 = vrcp.pop %v1021
        %v1023 = vmul.f32 %v1021, %v1022
        %v1024 = vsub.f32 1.0, %v1023
        %v1025 = vmul.f32 %v1022, %v1024
        %v1026 = vadd.f32 %v1022, %v1025
        %vm1027 = vweird.f32 %v1021
        %vm1028 = vweird.f32 %v1022
        %vm1029 = vmor %vm1027, %vm1028
        %v1030 = vsel %vm1029, %v1022, %v1026
        %v1031 = vand.u32 2147483647, %v1021
        %vm1032 = vcmp.eq.f32.partialorder %v1031, 8.507059e+37
        %v1033 = vand.u32 %v1021, 2147483648
        %v1034 = vor.u32 1.1754944e-38, %v1033
        %v1035 = vsel %vm1032, %v1034, %v1030
        %v1036 = vmul.f32 1.0, %v1035
        %v1037 = vtanh.pop %v1017
        %v1038 = vmul.f32 %v1036, 0.0
        %1040 = vrot.lane.b32.xlu0 %v1037, 64
        %v1041 = vpop.permute.xlu0 %1040
        %v1043 = vmul.f32 %v1036, %v1041
        %1045 = vrot.lane.b32.xlu0 %v1043, 32
        %v1046 = vpop.permute.xlu0 %1045
        %v1048 = vadd.f32 %v1038, %v1046
        %v1049 = vtanh.pop %v1048
        %1051 = vrot.lane.b32.xlu0 %v1049, 64
        %v1052 = vpop.permute.xlu0 %1051
        %v1054 = vmul.f32 %v1036, %v1052
        %1056 = vrot.lane.b32.xlu0 %v1054, 64
        %v1057 = vpop.permute.xlu0 %1056
        %s1059 = scalar_lea.vmem %s4, 56
        %vm1060 = vcmask 523520
        %1061 = vst.msk [vmem:[%s1059] sm:$0xff] %vm1060, %v1057
        %s1062 = scalar_lea.vmem %s0, 48
        %v1063 = vld [vmem:[%s1062] sm:$0xff]
        %1064 = vrot.lane.b32.xlu0 %v1054, 32
        %v1065 = vpop.permute.xlu0 %1064
        %v1066 = vsel %vm967, %v1065, 0
        %1068 = vmatpush.msra.mxu0 0.0
        %1069 = vmatpush.msra.mxu0 0.0
        %1070 = vmatpush.msra.mxu0 0.0
        %1071 = vmatpush.msra.mxu0 0.0
        %1072 = vmatpush.msra.mxu0 0.0
        %1073 = vmatpush.msra.mxu0 0.0
        %1074 = vmatpush.msra.mxu0 0.0
        %1075 = vmatpush.msra.mxu0 0.0
        %1076 = vmatpush.msra.mxu0 0.0
        %1077 = vmatpush.msra.mxu0 0.0
        %1078 = vmatpush.msra.mxu0 0.0
        %1079 = vmatpush.msra.mxu0 0.0
        %1080 = vmatpush.msra.mxu0 %v224
        %1081 = vmatpush.msra.mxu0 %v223
        %1082 = vmatpush.msra.mxu0 %v222
        %1083 = vmatpush.msra.mxu0 %v221
        %1084 = vmatmul.f32.gmra.mxu0 %v1066
        %v1085 = vpop.f32.mrf.mxu0
        %v1086 = vadd.f32 0.0, %v1085
        %1087 = vdwg.mxu0
        %v1089 = vsel %vm967, %v1063, 0
        %1091 = vmatpush.msra.mxu0 0.0
        %1092 = vmatpush.msra.mxu0 0.0
        %1093 = vmatpush.msra.mxu0 0.0
        %1094 = vmatpush.msra.mxu0 0.0
        %1095 = vmatpush.msra.mxu0 0.0
        %1096 = vmatpush.msra.mxu0 0.0
        %1097 = vmatpush.msra.mxu0 0.0
        %1098 = vmatpush.msra.mxu0 0.0
        %1099 = vmatpush.msra.mxu0 0.0
        %1100 = vmatpush.msra.mxu0 0.0
        %1101 = vmatpush.msra.mxu0 0.0
        %1102 = vmatpush.msra.mxu0 0.0
        %1103 = vmatpush.msra.mxu0 %v220
        %1104 = vmatpush.msra.mxu0 %v219
        %1105 = vmatpush.msra.mxu0 %v218
        %1106 = vmatpush.msra.mxu0 %v217
        %1107 = vmatmul.f32.gmra.mxu0 %v1089
        %v1108 = vpop.f32.mrf.mxu0
        %v1109 = vadd.f32 %v1086, %v1108
        %1110 = vdwg.mxu0
        %v1111 = vadd.f32 %v1109, %v1015
        %v1112 = vxor.u32 %v1111, 2147483648
        %v1113 = vmul.f32 %v1112, 1.442695
        %v1114 = vpow.pop %v1113
        %v1115 = vadd.f32 %v1114, 1.0
        %v1116 = vrcp.pop %v1115
        %v1117 = vmul.f32 %v1115, %v1116
        %v1118 = vsub.f32 1.0, %v1117
        %v1119 = vmul.f32 %v1116, %v1118
        %v1120 = vadd.f32 %v1116, %v1119
        %vm1121 = vweird.f32 %v1115
        %vm1122 = vweird.f32 %v1116
        %vm1123 = vmor %vm1121, %vm1122
        %v1124 = vsel %vm1123, %v1116, %v1120
        %v1125 = vand.u32 2147483647, %v1115
        %vm1126 = vcmp.eq.f32.partialorder %v1125, 8.507059e+37
        %v1127 = vand.u32 %v1115, 2147483648
        %v1128 = vor.u32 1.1754944e-38, %v1127
        %v1129 = vsel %vm1126, %v1128, %v1124
        %v1130 = vmul.f32 1.0, %v1129
        %v1131 = vtanh.pop %v1111
        %v1132 = vmul.f32 %v1130, %v1048
        %1134 = vrot.lane.b32.xlu0 %v1131, 64
        %v1135 = vpop.permute.xlu0 %1134
        %v1137 = vmul.f32 %v1130, %v1135
        %1139 = vrot.lane.b32.xlu0 %v1137, 32
        %v1140 = vpop.permute.xlu0 %1139
        %v1142 = vadd.f32 %v1132, %v1140
        %v1143 = vtanh.pop %v1142
        %1145 = vrot.lane.b32.xlu0 %v1143, 64
        %v1146 = vpop.permute.xlu0 %1145
        %v1148 = vmul.f32 %v1130, %v1146
        %1150 = vrot.lane.b32.xlu0 %v1148, 64
        %v1151 = vpop.permute.xlu0 %1150
        %s1153 = scalar_lea.vmem %s4, 48
        %1154 = vst.msk [vmem:[%s1153] sm:$0xff] %vm1060, %v1151
        %s1155 = scalar_lea.vmem %s0, 40
        %v1156 = vld [vmem:[%s1155] sm:$0xff]
        %1157 = vrot.lane.b32.xlu0 %v1148, 32
        %v1158 = vpop.permute.xlu0 %1157
        %v1159 = vsel %vm967, %v1158, 0
        %1161 = vmatpush.msra.mxu0 0.0
        %1162 = vmatpush.msra.mxu0 0.0
        %1163 = vmatpush.msra.mxu0 0.0
        %1164 = vmatpush.msra.mxu0 0.0
        %1165 = vmatpush.msra.mxu0 0.0
        %1166 = vmatpush.msra.mxu0 0.0
        %1167 = vmatpush.msra.mxu0 0.0
        %1168 = vmatpush.msra.mxu0 0.0
        %1169 = vmatpush.msra.mxu0 0.0
        %1170 = vmatpush.msra.mxu0 0.0
        %1171 = vmatpush.msra.mxu0 0.0
        %1172 = vmatpush.msra.mxu0 0.0
        %1173 = vmatpush.msra.mxu0 %v224
        %1174 = vmatpush.msra.mxu0 %v223
        %1175 = vmatpush.msra.mxu0 %v222
        %1176 = vmatpush.msra.mxu0 %v221
        %1177 = vmatmul.f32.gmra.mxu0 %v1159
        %v1178 = vpop.f32.mrf.mxu0
        %v1179 = vadd.f32 0.0, %v1178
        %1180 = vdwg.mxu0
        %v1182 = vsel %vm967, %v1156, 0
        %1184 = vmatpush.msra.mxu0 0.0
        %1185 = vmatpush.msra.mxu0 0.0
        %1186 = vmatpush.msra.mxu0 0.0
        %1187 = vmatpush.msra.mxu0 0.0
        %1188 = vmatpush.msra.mxu0 0.0
        %1189 = vmatpush.msra.mxu0 0.0
        %1190 = vmatpush.msra.mxu0 0.0
        %1191 = vmatpush.msra.mxu0 0.0
        %1192 = vmatpush.msra.mxu0 0.0
        %1193 = vmatpush.msra.mxu0 0.0
        %1194 = vmatpush.msra.mxu0 0.0
        %1195 = vmatpush.msra.mxu0 0.0
        %1196 = vmatpush.msra.mxu0 %v220
        %1197 = vmatpush.msra.mxu0 %v219
        %1198 = vmatpush.msra.mxu0 %v218
        %1199 = vmatpush.msra.mxu0 %v217
        %1200 = vmatmul.f32.gmra.mxu0 %v1182
        %v1201 = vpop.f32.mrf.mxu0
        %v1202 = vadd.f32 %v1179, %v1201
        %1203 = vdwg.mxu0
        %v1204 = vadd.f32 %v1202, %v1015
        %v1205 = vxor.u32 %v1204, 2147483648
        %v1206 = vmul.f32 %v1205, 1.442695
        %v1207 = vpow.pop %v1206
        %v1208 = vadd.f32 %v1207, 1.0
        %v1209 = vrcp.pop %v1208
        %v1210 = vmul.f32 %v1208, %v1209
        %v1211 = vsub.f32 1.0, %v1210
        %v1212 = vmul.f32 %v1209, %v1211
        %v1213 = vadd.f32 %v1209, %v1212
        %vm1214 = vweird.f32 %v1208
        %vm1215 = vweird.f32 %v1209
        %vm1216 = vmor %vm1214, %vm1215
        %v1217 = vsel %vm1216, %v1209, %v1213
        %v1218 = vand.u32 2147483647, %v1208
        %vm1219 = vcmp.eq.f32.partialorder %v1218, 8.507059e+37
        %v1220 = vand.u32 %v1208, 2147483648
        %v1221 = vor.u32 1.1754944e-38, %v1220
        %v1222 = vsel %vm1219, %v1221, %v1217
        %v1223 = vmul.f32 1.0, %v1222
        %v1224 = vtanh.pop %v1204
        %v1225 = vmul.f32 %v1223, %v1142
        %1227 = vrot.lane.b32.xlu0 %v1224, 64
        %v1228 = vpop.permute.xlu0 %1227
        %v1230 = vmul.f32 %v1223, %v1228
        %1232 = vrot.lane.b32.xlu0 %v1230, 32
        %v1233 = vpop.permute.xlu0 %1232
        %v1235 = vadd.f32 %v1225, %v1233
        %v1236 = vtanh.pop %v1235
        %1238 = vrot.lane.b32.xlu0 %v1236, 64
        %v1239 = vpop.permute.xlu0 %1238
        %v1241 = vmul.f32 %v1223, %v1239
        %1243 = vrot.lane.b32.xlu0 %v1241, 64
        %v1244 = vpop.permute.xlu0 %1243
        %s1246 = scalar_lea.vmem %s4, 40
        %1247 = vst.msk [vmem:[%s1246] sm:$0xff] %vm1060, %v1244
        %s1248 = scalar_lea.vmem %s0, 32
        %v1249 = vld [vmem:[%s1248] sm:$0xff]
        %1250 = vrot.lane.b32.xlu0 %v1241, 32
        %v1251 = vpop.permute.xlu0 %1250
        %v1252 = vsel %vm967, %v1251, 0
        %1254 = vmatpush.msra.mxu0 0.0
        %1255 = vmatpush.msra.mxu0 0.0
        %1256 = vmatpush.msra.mxu0 0.0
        %1257 = vmatpush.msra.mxu0 0.0
        %1258 = vmatpush.msra.mxu0 0.0
        %1259 = vmatpush.msra.mxu0 0.0
        %1260 = vmatpush.msra.mxu0 0.0
        %1261 = vmatpush.msra.mxu0 0.0
        %1262 = vmatpush.msra.mxu0 0.0
        %1263 = vmatpush.msra.mxu0 0.0
        %1264 = vmatpush.msra.mxu0 0.0
        %1265 = vmatpush.msra.mxu0 0.0
        %1266 = vmatpush.msra.mxu0 %v224
        %1267 = vmatpush.msra.mxu0 %v223
        %1268 = vmatpush.msra.mxu0 %v222
        %1269 = vmatpush.msra.mxu0 %v221
        %1270 = vmatmul.f32.gmra.mxu0 %v1252
        %v1271 = vpop.f32.mrf.mxu0
        %v1272 = vadd.f32 0.0, %v1271
        %1273 = vdwg.mxu0
        %v1275 = vsel %vm967, %v1249, 0
        %1277 = vmatpush.msra.mxu0 0.0
        %1278 = vmatpush.msra.mxu0 0.0
        %1279 = vmatpush.msra.mxu0 0.0
        %1280 = vmatpush.msra.mxu0 0.0
        %1281 = vmatpush.msra.mxu0 0.0
        %1282 = vmatpush.msra.mxu0 0.0
        %1283 = vmatpush.msra.mxu0 0.0
        %1284 = vmatpush.msra.mxu0 0.0
        %1285 = vmatpush.msra.mxu0 0.0
        %1286 = vmatpush.msra.mxu0 0.0
        %1287 = vmatpush.msra.mxu0 0.0
        %1288 = vmatpush.msra.mxu0 0.0
        %1289 = vmatpush.msra.mxu0 %v220
        %1290 = vmatpush.msra.mxu0 %v219
        %1291 = vmatpush.msra.mxu0 %v218
        %1292 = vmatpush.msra.mxu0 %v217
        %1293 = vmatmul.f32.gmra.mxu0 %v1275
        %v1294 = vpop.f32.mrf.mxu0
        %v1295 = vadd.f32 %v1272, %v1294
        %1296 = vdwg.mxu0
        %v1297 = vadd.f32 %v1295, %v1015
        %v1298 = vxor.u32 %v1297, 2147483648
        %v1299 = vmul.f32 %v1298, 1.442695
        %v1300 = vpow.pop %v1299
        %v1301 = vadd.f32 %v1300, 1.0
        %v1302 = vrcp.pop %v1301
        %v1303 = vmul.f32 %v1301, %v1302
        %v1304 = vsub.f32 1.0, %v1303
        %v1305 = vmul.f32 %v1302, %v1304
        %v1306 = vadd.f32 %v1302, %v1305
        %vm1307 = vweird.f32 %v1301
        %vm1308 = vweird.f32 %v1302
        %vm1309 = vmor %vm1307, %vm1308
        %v1310 = vsel %vm1309, %v1302, %v1306
        %v1311 = vand.u32 2147483647, %v1301
        %vm1312 = vcmp.eq.f32.partialorder %v1311, 8.507059e+37
        %v1313 = vand.u32 %v1301, 2147483648
        %v1314 = vor.u32 1.1754944e-38, %v1313
        %v1315 = vsel %vm1312, %v1314, %v1310
        %v1316 = vmul.f32 1.0, %v1315
        %v1317 = vtanh.pop %v1297
        %v1318 = vmul.f32 %v1316, %v1235
        %1320 = vrot.lane.b32.xlu0 %v1317, 64
        %v1321 = vpop.permute.xlu0 %1320
        %v1323 = vmul.f32 %v1316, %v1321
        %1325 = vrot.lane.b32.xlu0 %v1323, 32
        %v1326 = vpop.permute.xlu0 %1325
        %v1328 = vadd.f32 %v1318, %v1326
        %v1329 = vtanh.pop %v1328
        %1331 = vrot.lane.b32.xlu0 %v1329, 64
        %v1332 = vpop.permute.xlu0 %1331
        %v1334 = vmul.f32 %v1316, %v1332
        %1336 = vrot.lane.b32.xlu0 %v1334, 64
        %v1337 = vpop.permute.xlu0 %1336
        %s1339 = scalar_lea.vmem %s4, 32
        %1340 = vst.msk [vmem:[%s1339] sm:$0xff] %vm1060, %v1337
        %s1341 = scalar_lea.vmem %s0, 24
        %v1342 = vld [vmem:[%s1341] sm:$0xff]
        %1343 = vrot.lane.b32.xlu0 %v1334, 32
        %v1344 = vpop.permute.xlu0 %1343
        %v1345 = vsel %vm967, %v1344, 0
        %1347 = vmatpush.msra.mxu0 0.0
        %1348 = vmatpush.msra.mxu0 0.0
        %1349 = vmatpush.msra.mxu0 0.0
        %1350 = vmatpush.msra.mxu0 0.0
        %1351 = vmatpush.msra.mxu0 0.0
        %1352 = vmatpush.msra.mxu0 0.0
        %1353 = vmatpush.msra.mxu0 0.0
        %1354 = vmatpush.msra.mxu0 0.0
        %1355 = vmatpush.msra.mxu0 0.0
        %1356 = vmatpush.msra.mxu0 0.0
        %1357 = vmatpush.msra.mxu0 0.0
        %1358 = vmatpush.msra.mxu0 0.0
        %1359 = vmatpush.msra.mxu0 %v224
        %1360 = vmatpush.msra.mxu0 %v223
        %1361 = vmatpush.msra.mxu0 %v222
        %1362 = vmatpush.msra.mxu0 %v221
        %1363 = vmatmul.f32.gmra.mxu0 %v1345
        %v1364 = vpop.f32.mrf.mxu0
        %v1365 = vadd.f32 0.0, %v1364
        %1366 = vdwg.mxu0
        %v1368 = vsel %vm967, %v1342, 0
        %1370 = vmatpush.msra.mxu0 0.0
        %1371 = vmatpush.msra.mxu0 0.0
        %1372 = vmatpush.msra.mxu0 0.0
        %1373 = vmatpush.msra.mxu0 0.0
        %1374 = vmatpush.msra.mxu0 0.0
        %1375 = vmatpush.msra.mxu0 0.0
        %1376 = vmatpush.msra.mxu0 0.0
        %1377 = vmatpush.msra.mxu0 0.0
        %1378 = vmatpush.msra.mxu0 0.0
        %1379 = vmatpush.msra.mxu0 0.0
        %1380 = vmatpush.msra.mxu0 0.0
        %1381 = vmatpush.msra.mxu0 0.0
        %1382 = vmatpush.msra.mxu0 %v220
        %1383 = vmatpush.msra.mxu0 %v219
        %1384 = vmatpush.msra.mxu0 %v218
        %1385 = vmatpush.msra.mxu0 %v217
        %1386 = vmatmul.f32.gmra.mxu0 %v1368
        %v1387 = vpop.f32.mrf.mxu0
        %v1388 = vadd.f32 %v1365, %v1387
        %1389 = vdwg.mxu0
        %v1390 = vadd.f32 %v1388, %v1015
        %v1391 = vxor.u32 %v1390, 2147483648
        %v1392 = vmul.f32 %v1391, 1.442695
        %v1393 = vpow.pop %v1392
        %v1394 = vadd.f32 %v1393, 1.0
        %v1395 = vrcp.pop %v1394
        %v1396 = vmul.f32 %v1394, %v1395
        %v1397 = vsub.f32 1.0, %v1396
        %v1398 = vmul.f32 %v1395, %v1397
        %v1399 = vadd.f32 %v1395, %v1398
        %vm1400 = vweird.f32 %v1394
        %vm1401 = vweird.f32 %v1395
        %vm1402 = vmor %vm1400, %vm1401
        %v1403 = vsel %vm1402, %v1395, %v1399
        %v1404 = vand.u32 2147483647, %v1394
        %vm1405 = vcmp.eq.f32.partialorder %v1404, 8.507059e+37
        %v1406 = vand.u32 %v1394, 2147483648
        %v1407 = vor.u32 1.1754944e-38, %v1406
        %v1408 = vsel %vm1405, %v1407, %v1403
        %v1409 = vmul.f32 1.0, %v1408
        %v1410 = vtanh.pop %v1390
        %v1411 = vmul.f32 %v1409, %v1328
        %1413 = vrot.lane.b32.xlu0 %v1410, 64
        %v1414 = vpop.permute.xlu0 %1413
        %v1416 = vmul.f32 %v1409, %v1414
        %1418 = vrot.lane.b32.xlu0 %v1416, 32
        %v1419 = vpop.permute.xlu0 %1418
        %v1421 = vadd.f32 %v1411, %v1419
        %v1422 = vtanh.pop %v1421
        %1424 = vrot.lane.b32.xlu0 %v1422, 64
        %v1425 = vpop.permute.xlu0 %1424
        %v1427 = vmul.f32 %v1409, %v1425
        %1429 = vrot.lane.b32.xlu0 %v1427, 64
        %v1430 = vpop.permute.xlu0 %1429
        %s1432 = scalar_lea.vmem %s4, 24
        %1433 = vst.msk [vmem:[%s1432] sm:$0xff] %vm1060, %v1430
        %s1434 = scalar_lea.vmem %s0, 16
        %v1435 = vld [vmem:[%s1434] sm:$0xff]
        %1436 = vrot.lane.b32.xlu0 %v1427, 32
        %v1437 = vpop.permute.xlu0 %1436
        %v1438 = vsel %vm967, %v1437, 0
        %1440 = vmatpush.msra.mxu0 0.0
        %1441 = vmatpush.msra.mxu0 0.0
        %1442 = vmatpush.msra.mxu0 0.0
        %1443 = vmatpush.msra.mxu0 0.0
        %1444 = vmatpush.msra.mxu0 0.0
        %1445 = vmatpush.msra.mxu0 0.0
        %1446 = vmatpush.msra.mxu0 0.0
        %1447 = vmatpush.msra.mxu0 0.0
        %1448 = vmatpush.msra.mxu0 0.0
        %1449 = vmatpush.msra.mxu0 0.0
        %1450 = vmatpush.msra.mxu0 0.0
        %1451 = vmatpush.msra.mxu0 0.0
        %1452 = vmatpush.msra.mxu0 %v224
        %1453 = vmatpush.msra.mxu0 %v223
        %1454 = vmatpush.msra.mxu0 %v222
        %1455 = vmatpush.msra.mxu0 %v221
        %1456 = vmatmul.f32.gmra.mxu0 %v1438
        %v1457 = vpop.f32.mrf.mxu0
        %v1458 = vadd.f32 0.0, %v1457
        %1459 = vdwg.mxu0
        %v1461 = vsel %vm967, %v1435, 0
        %1463 = vmatpush.msra.mxu0 0.0
        %1464 = vmatpush.msra.mxu0 0.0
        %1465 = vmatpush.msra.mxu0 0.0
        %1466 = vmatpush.msra.mxu0 0.0
        %1467 = vmatpush.msra.mxu0 0.0
        %1468 = vmatpush.msra.mxu0 0.0
        %1469 = vmatpush.msra.mxu0 0.0
        %1470 = vmatpush.msra.mxu0 0.0
        %1471 = vmatpush.msra.mxu0 0.0
        %1472 = vmatpush.msra.mxu0 0.0
        %1473 = vmatpush.msra.mxu0 0.0
        %1474 = vmatpush.msra.mxu0 0.0
        %1475 = vmatpush.msra.mxu0 %v220
        %1476 = vmatpush.msra.mxu0 %v219
        %1477 = vmatpush.msra.mxu0 %v218
        %1478 = vmatpush.msra.mxu0 %v217
        %1479 = vmatmul.f32.gmra.mxu0 %v1461
        %v1480 = vpop.f32.mrf.mxu0
        %v1481 = vadd.f32 %v1458, %v1480
        %1482 = vdwg.mxu0
        %v1483 = vadd.f32 %v1481, %v1015
        %v1484 = vxor.u32 %v1483, 2147483648
        %v1485 = vmul.f32 %v1484, 1.442695
        %v1486 = vpow.pop %v1485
        %v1487 = vadd.f32 %v1486, 1.0
        %v1488 = vrcp.pop %v1487
        %v1489 = vmul.f32 %v1487, %v1488
        %v1490 = vsub.f32 1.0, %v1489
        %v1491 = vmul.f32 %v1488, %v1490
        %v1492 = vadd.f32 %v1488, %v1491
        %vm1493 = vweird.f32 %v1487
        %vm1494 = vweird.f32 %v1488
        %vm1495 = vmor %vm1493, %vm1494
        %v1496 = vsel %vm1495, %v1488, %v1492
        %v1497 = vand.u32 2147483647, %v1487
        %vm1498 = vcmp.eq.f32.partialorder %v1497, 8.507059e+37
        %v1499 = vand.u32 %v1487, 2147483648
        %v1500 = vor.u32 1.1754944e-38, %v1499
        %v1501 = vsel %vm1498, %v1500, %v1496
        %v1502 = vmul.f32 1.0, %v1501
        %v1503 = vtanh.pop %v1483
        %v1504 = vmul.f32 %v1502, %v1421
        %1506 = vrot.lane.b32.xlu0 %v1503, 64
        %v1507 = vpop.permute.xlu0 %1506
        %v1509 = vmul.f32 %v1502, %v1507
        %1511 = vrot.lane.b32.xlu0 %v1509, 32
        %v1512 = vpop.permute.xlu0 %1511
        %v1514 = vadd.f32 %v1504, %v1512
        %v1515 = vtanh.pop %v1514
        %1517 = vrot.lane.b32.xlu0 %v1515, 64
        %v1518 = vpop.permute.xlu0 %1517
        %v1520 = vmul.f32 %v1502, %v1518
        %1522 = vrot.lane.b32.xlu0 %v1520, 64
        %v1523 = vpop.permute.xlu0 %1522
        %s1525 = scalar_lea.vmem %s4, 16
        %1526 = vst.msk [vmem:[%s1525] sm:$0xff] %vm1060, %v1523
        %s1527 = scalar_lea.vmem %s0, 8
        %v1528 = vld [vmem:[%s1527] sm:$0xff]
        %1529 = vrot.lane.b32.xlu0 %v1520, 32
        %v1530 = vpop.permute.xlu0 %1529
        %v1531 = vsel %vm967, %v1530, 0
        %1533 = vmatpush.msra.mxu0 0.0
        %1534 = vmatpush.msra.mxu0 0.0
        %1535 = vmatpush.msra.mxu0 0.0
        %1536 = vmatpush.msra.mxu0 0.0
        %1537 = vmatpush.msra.mxu0 0.0
        %1538 = vmatpush.msra.mxu0 0.0
        %1539 = vmatpush.msra.mxu0 0.0
        %1540 = vmatpush.msra.mxu0 0.0
        %1541 = vmatpush.msra.mxu0 0.0
        %1542 = vmatpush.msra.mxu0 0.0
        %1543 = vmatpush.msra.mxu0 0.0
        %1544 = vmatpush.msra.mxu0 0.0
        %1545 = vmatpush.msra.mxu0 %v224
        %1546 = vmatpush.msra.mxu0 %v223
        %1547 = vmatpush.msra.mxu0 %v222
        %1548 = vmatpush.msra.mxu0 %v221
        %1549 = vmatmul.f32.gmra.mxu0 %v1531
        %v1550 = vpop.f32.mrf.mxu0
        %v1551 = vadd.f32 0.0, %v1550
        %1552 = vdwg.mxu0
        %v1554 = vsel %vm967, %v1528, 0
        %1556 = vmatpush.msra.mxu0 0.0
        %1557 = vmatpush.msra.mxu0 0.0
        %1558 = vmatpush.msra.mxu0 0.0
        %1559 = vmatpush.msra.mxu0 0.0
        %1560 = vmatpush.msra.mxu0 0.0
        %1561 = vmatpush.msra.mxu0 0.0
        %1562 = vmatpush.msra.mxu0 0.0
        %1563 = vmatpush.msra.mxu0 0.0
        %1564 = vmatpush.msra.mxu0 0.0
        %1565 = vmatpush.msra.mxu0 0.0
        %1566 = vmatpush.msra.mxu0 0.0
        %1567 = vmatpush.msra.mxu0 0.0
        %1568 = vmatpush.msra.mxu0 %v220
        %1569 = vmatpush.msra.mxu0 %v219
        %1570 = vmatpush.msra.mxu0 %v218
        %1571 = vmatpush.msra.mxu0 %v217
        %1572 = vmatmul.f32.gmra.mxu0 %v1554
        %v1573 = vpop.f32.mrf.mxu0
        %v1574 = vadd.f32 %v1551, %v1573
        %1575 = vdwg.mxu0
        %v1576 = vadd.f32 %v1574, %v1015
        %v1577 = vxor.u32 %v1576, 2147483648
        %v1578 = vmul.f32 %v1577, 1.442695
        %v1579 = vpow.pop %v1578
        %v1580 = vadd.f32 %v1579, 1.0
        %v1581 = vrcp.pop %v1580
        %v1582 = vmul.f32 %v1580, %v1581
        %v1583 = vsub.f32 1.0, %v1582
        %v1584 = vmul.f32 %v1581, %v1583
        %v1585 = vadd.f32 %v1581, %v1584
        %vm1586 = vweird.f32 %v1580
        %vm1587 = vweird.f32 %v1581
        %vm1588 = vmor %vm1586, %vm1587
        %v1589 = vsel %vm1588, %v1581, %v1585
        %v1590 = vand.u32 2147483647, %v1580
        %vm1591 = vcmp.eq.f32.partialorder %v1590, 8.507059e+37
        %v1592 = vand.u32 %v1580, 2147483648
        %v1593 = vor.u32 1.1754944e-38, %v1592
        %v1594 = vsel %vm1591, %v1593, %v1589
        %v1595 = vmul.f32 1.0, %v1594
        %v1596 = vtanh.pop %v1576
        %v1597 = vmul.f32 %v1595, %v1514
        %1599 = vrot.lane.b32.xlu0 %v1596, 64
        %v1600 = vpop.permute.xlu0 %1599
        %v1602 = vmul.f32 %v1595, %v1600
        %1604 = vrot.lane.b32.xlu0 %v1602, 32
        %v1605 = vpop.permute.xlu0 %1604
        %v1607 = vadd.f32 %v1597, %v1605
        %v1608 = vtanh.pop %v1607
        %1610 = vrot.lane.b32.xlu0 %v1608, 64
        %v1611 = vpop.permute.xlu0 %1610
        %v1613 = vmul.f32 %v1595, %v1611
        %1615 = vrot.lane.b32.xlu0 %v1613, 64
        %v1616 = vpop.permute.xlu0 %1615
        %s1618 = scalar_lea.vmem %s4, 8
        %1619 = vst.msk [vmem:[%s1618] sm:$0xff] %vm1060, %v1616
        %v1620 = vld [vmem:[%s0] sm:$0xff]
        %1621 = vrot.lane.b32.xlu0 %v1613, 32
        %v1622 = vpop.permute.xlu0 %1621
        %v1623 = vsel %vm967, %v1622, 0
        %1625 = vmatpush.msra.mxu0 0.0
        %1626 = vmatpush.msra.mxu0 0.0
        %1627 = vmatpush.msra.mxu0 0.0
        %1628 = vmatpush.msra.mxu0 0.0
        %1629 = vmatpush.msra.mxu0 0.0
        %1630 = vmatpush.msra.mxu0 0.0
        %1631 = vmatpush.msra.mxu0 0.0
        %1632 = vmatpush.msra.mxu0 0.0
        %1633 = vmatpush.msra.mxu0 0.0
        %1634 = vmatpush.msra.mxu0 0.0
        %1635 = vmatpush.msra.mxu0 0.0
        %1636 = vmatpush.msra.mxu0 0.0
        %1637 = vmatpush.msra.mxu0 %v224
        %1638 = vmatpush.msra.mxu0 %v223
        %1639 = vmatpush.msra.mxu0 %v222
        %1640 = vmatpush.msra.mxu0 %v221
        %1641 = vmatmul.f32.gmra.mxu0 %v1623
        %v1642 = vpop.f32.mrf.mxu0
        %v1643 = vadd.f32 0.0, %v1642
        %1644 = vdwg.mxu0
        %v1646 = vsel %vm967, %v1620, 0
        %1648 = vmatpush.msra.mxu0 0.0
        %1649 = vmatpush.msra.mxu0 0.0
        %1650 = vmatpush.msra.mxu0 0.0
        %1651 = vmatpush.msra.mxu0 0.0
        %1652 = vmatpush.msra.mxu0 0.0
        %1653 = vmatpush.msra.mxu0 0.0
        %1654 = vmatpush.msra.mxu0 0.0
        %1655 = vmatpush.msra.mxu0 0.0
        %1656 = vmatpush.msra.mxu0 0.0
        %1657 = vmatpush.msra.mxu0 0.0
        %1658 = vmatpush.msra.mxu0 0.0
        %1659 = vmatpush.msra.mxu0 0.0
        %1660 = vmatpush.msra.mxu0 %v220
        %1661 = vmatpush.msra.mxu0 %v219
        %1662 = vmatpush.msra.mxu0 %v218
        %1663 = vmatpush.msra.mxu0 %v217
        %1664 = vmatmul.f32.gmra.mxu0 %v1646
        %v1665 = vpop.f32.mrf.mxu0
        %v1666 = vadd.f32 %v1643, %v1665
        %1667 = vdwg.mxu0
        %v1668 = vadd.f32 %v1666, %v1015
        %v1669 = vxor.u32 %v1668, 2147483648
        %v1670 = vmul.f32 %v1669, 1.442695
        %v1671 = vpow.pop %v1670
        %v1672 = vadd.f32 %v1671, 1.0
        %v1673 = vrcp.pop %v1672
        %v1674 = vmul.f32 %v1672, %v1673
        %v1675 = vsub.f32 1.0, %v1674
        %v1676 = vmul.f32 %v1673, %v1675
        %v1677 = vadd.f32 %v1673, %v1676
        %vm1678 = vweird.f32 %v1672
        %vm1679 = vweird.f32 %v1673
        %vm1680 = vmor %vm1678, %vm1679
        %v1681 = vsel %vm1680, %v1673, %v1677
        %v1682 = vand.u32 2147483647, %v1672
        %vm1683 = vcmp.eq.f32.partialorder %v1682, 8.507059e+37
        %v1684 = vand.u32 %v1672, 2147483648
        %v1685 = vor.u32 1.1754944e-38, %v1684
        %v1686 = vsel %vm1683, %v1685, %v1681
        %v1687 = vmul.f32 1.0, %v1686
        %v1688 = vtanh.pop %v1668
        %v1689 = vmul.f32 %v1687, %v1607
        %1691 = vrot.lane.b32.xlu0 %v1688, 64
        %v1692 = vpop.permute.xlu0 %1691
        %v1694 = vmul.f32 %v1687, %v1692
        %1696 = vrot.lane.b32.xlu0 %v1694, 32
        %v1697 = vpop.permute.xlu0 %1696
        %v1699 = vadd.f32 %v1689, %v1697
        %v1700 = vtanh.pop %v1699
        %1702 = vrot.lane.b32.xlu0 %v1700, 64
        %v1703 = vpop.permute.xlu0 %1702
        %v1705 = vmul.f32 %v1687, %v1703
        %1707 = vrot.lane.b32.xlu0 %v1705, 64
        %v1708 = vpop.permute.xlu0 %1707
        %1710 = vst.msk [vmem:[%s4] sm:$0xff] %vm1060, %v1708
      $region44: #{birnn_forward.2} parent=35 // pred_fallthru
        _
      // Predicated region
      $region45: #{birnn_forward.2} parent=35 // pred_check
        %p1711 = pneg %p127
      $region46: #{birnn_forward.2} parent=35 // pred_check_branch
        %1713 = sbr.rel (%p1711) target = $region48
      $region47: #{birnn_forward.2} parent=35 // pred_region
        _
      $region48: #{birnn_forward.2} parent=35 // pred_fallthru
        _
      // Predicated region
      $region49: #{birnn_forward.2} parent=35 // pred_check
        %p1714 = pneg %p127
      $region50: #{birnn_forward.2} parent=35 // pred_check_branch
        %1716 = sbr.rel (%p1714) target = $region52
      $region51: #{birnn_forward.2} parent=35 // pred_region
        _
      $region52: #{birnn_forward.2} parent=35 // pred_fallthru
        _
    $region36: #{birnn_forward.2} parent=5 // pred_fallthru
      _
    %p1717 = scmp.le.s32.totalorder 2, %s10
    // Predicated region
    $region53: #{birnn_forward.2} parent=5 // pred_check
      %p1718 = pneg %p1717
    $region54: #{birnn_forward.2} parent=5 // pred_check_branch
      %1720 = sbr.rel (%p1718) target = $region56
    $region55: #{birnn_forward.2} parent=5 // pred_region
      %s1721 = ssub.s32 %s10, 2
    $region56: #{birnn_forward.2} parent=5 // pred_fallthru
      _
  $region6: #{birnn_forward.2} parent=0 // loop_footer
    %s14 = sadd.s32 1, %s10
  $region7: #{birnn_forward.2} parent=0 // loop_footer_branch
    %9 = sbr.rel target = $region3
  $region8: #{birnn_forward.2} parent=0 // loop_exit
    _

// kernel: birnn_forward.3
$region0: #{birnn_forward.3}
  #allocation0 [shape = 'u32[]', space=smem, size = 0x4, offset = 0x4, fixed_abs, tag = 'smem constant byte address 0x4 - core index']
  #allocation1 [shape = 'u32[72,128]{1,0:T(1,128)}', space=vmem, size = 0x9000, scoped, tag = 'internal scratch']
  %s0 = inlined_call_operand.vmem [shape: f32[8,8,64], index: 0, kind: input, shape index: {}]
  %s1 = inlined_call_operand.vmem [shape: f32[2,64,128], index: 1, kind: input, shape index: {}]
  %s2 = inlined_call_operand.vmem [shape: f32[2,32,128], index: 2, kind: input, shape index: {}]
  %s3 = inlined_call_operand.vmem [shape: f32[2,1,128], index: 3, kind: input, shape index: {}]
  %s4 = inlined_call_operand.vmem [shape: f32[128,2], index: 4, kind: input, shape index: {}]
  %s5 = inlined_call_operand.vmem [shape: f32[1,2], index: 5, kind: input, shape index: {}]
  %s6 = inlined_call_operand.hbm [shape: f32[8,8,64], index: 6, kind: output, shape index: {0}]
  %s7 = inlined_call_operand.vmem [shape: f32[8,2], index: 7, kind: output, shape index: {1}]
  %8 = xla_tuple %s6, %s7
  %s9 = sld [smem:[#allocation0]]
  $region73: #{birnn_forward.3} parent=0
    _
  %s11 = ssub.s32 1, %s9
  %s12 = scalar_select 0, %s11, %s9
  $region1: #{birnn_forward.3} parent=0
    #allocation2 [shape = 'u8[32768]{0}', space=vmem, size = 0x8000, scoped, tag = 'output window, operand 0, single buffered']
    #allocation3 [shape = 's32[2]{0}', space=sflag, size = 0x8, scoped, tag = 'scoped memory for birnn_forward.3']
    %13 = vsyncpa [#allocation3], 0
    loop: start=0, step=1, limit=4
    $region2: #{birnn_forward.3} parent=1 // loop_pre_header
      _
    $region3: #{birnn_forward.3} parent=1 // loop_header
      %s15 = sphi 0, %s19
      %p16 = scmp.ge.s32.totalorder %s15, 4
      %s23 = sphi 0, %s23
      %s25 = sphi 0, %s23
      %s26 = sphi 0, %s25
      %s40 = sphi 0, %s26
      %s46 = sphi 0, %s48
      %s49 = sphi 0, %s46
      %s50 = sphi 0, %s49
      %s66 = sphi 0, %s50
      %s72 = sphi 0, %s74
      %s75 = sphi 0, %s72
      %s76 = sphi 0, %s75
      %s92 = sphi 0, %s76
      %s98 = sphi 0, %s100
      %s101 = sphi 0, %s98
      %s102 = sphi 0, %s101
      %s118 = sphi 0, %s102
      %s122 = sphi 0, %s122
      %s124 = sphi 0, %s122
      %s125 = sphi 0, %s124
      %s139 = sphi 0, %s125
      %s143 = sphi 0, %s143
      %s145 = sphi 0, %s143
      %s146 = sphi 0, %s145
      %s160 = sphi 0, %s146
      %s164 = sphi 0, %s164
      %s166 = sphi 0, %s164
      %s167 = sphi 0, %s166
      %s181 = sphi 0, %s167
      %s185 = sphi 0, %s185
      %s187 = sphi 0, %s185
      %s188 = sphi 0, %s187
      %s202 = sphi 0, %s188
    $region4: #{birnn_forward.3} parent=1 // loop_header_branch
      %18 = sbr.rel (%p16) target = $region8
    $region5: #{birnn_forward.3} parent=1 // loop_body
      %s20 = ssub.s32 %s15, 1
      %s21 = ssub.s32 %s15, 2
      %s22 = sadd.s32 %s15, 1
      %s24 = sadd.s32 %s23, 1
      %p27 = scmp.eq.s32.totalorder %s15, 1
      %p28 = scmp.ne.s32.totalorder %s23, %s25
      %p29 = scmp.eq.s32.totalorder %s15, 0
      %p30 = por %p28, %p29
      %p31 = scmp.ne.s32.totalorder %s23, %s25
      %p32 = scmp.eq.s32.totalorder %s20, 1
      %p33 = por %p31, %p32
      %p34 = scmp.ne.s32.totalorder %s25, %s26
      %p35 = scmp.eq.s32.totalorder %s20, 0
      %p36 = por %p34, %p35
      %p37 = scmp.ne.s32.totalorder %s25, %s26
      %p38 = scmp.eq.s32.totalorder %s21, 1
      %p39 = por %p37, %p38
      %p41 = scmp.ne.s32.totalorder %s26, %s40
      %p42 = scmp.eq.s32.totalorder %s21, 0
      %p43 = por %p41, %p42
      %s44 = ssub.s32 %s15, %s22
      %p45 = scmp.eq.s32.totalorder %s44, 0
      %s47 = sadd.s32 %s46, 1
      %s48 = scalar_select %p45, %s46, %s47
      %p51 = pneg %p45
      %p52 = scmp.eq.s32.totalorder %s15, 1
      %p53 = por %p51, %p52
      %p54 = scmp.ne.s32.totalorder %s46, %s49
      %p55 = scmp.eq.s32.totalorder %s15, 0
      %p56 = por %p54, %p55
      %p57 = scmp.ne.s32.totalorder %s46, %s49
      %p58 = scmp.eq.s32.totalorder %s20, 1
      %p59 = por %p57, %p58
      %p60 = scmp.ne.s32.totalorder %s49, %s50
      %p61 = scmp.eq.s32.totalorder %s20, 0
      %p62 = por %p60, %p61
      %p63 = scmp.ne.s32.totalorder %s49, %s50
      %p64 = scmp.eq.s32.totalorder %s21, 1
      %p65 = por %p63, %p64
      %p67 = scmp.ne.s32.totalorder %s50, %s66
      %p68 = scmp.eq.s32.totalorder %s21, 0
      %p69 = por %p67, %p68
      %s70 = ssub.s32 %s15, %s22
      %p71 = scmp.eq.s32.totalorder %s70, 0
      %s73 = sadd.s32 %s72, 1
      %s74 = scalar_select %p71, %s72, %s73
      %p77 = pneg %p71
      %p78 = scmp.eq.s32.totalorder %s15, 1
      %p79 = por %p77, %p78
      %p80 = scmp.ne.s32.totalorder %s72, %s75
      %p81 = scmp.eq.s32.totalorder %s15, 0
      %p82 = por %p80, %p81
      %p83 = scmp.ne.s32.totalorder %s72, %s75
      %p84 = scmp.eq.s32.totalorder %s20, 1
      %p85 = por %p83, %p84
      %p86 = scmp.ne.s32.totalorder %s75, %s76
      %p87 = scmp.eq.s32.totalorder %s20, 0
      %p88 = por %p86, %p87
      %p89 = scmp.ne.s32.totalorder %s75, %s76
      %p90 = scmp.eq.s32.totalorder %s21, 1
      %p91 = por %p89, %p90
      %p93 = scmp.ne.s32.totalorder %s76, %s92
      %p94 = scmp.eq.s32.totalorder %s21, 0
      %p95 = por %p93, %p94
      %s96 = ssub.s32 %s15, %s22
      %p97 = scmp.eq.s32.totalorder %s96, 0
      %s99 = sadd.s32 %s98, 1
      %s100 = scalar_select %p97, %s98, %s99
      %p103 = pneg %p97
      %p104 = scmp.eq.s32.totalorder %s15, 1
      %p105 = por %p103, %p104
      %p106 = scmp.ne.s32.totalorder %s98, %s101
      %p107 = scmp.eq.s32.totalorder %s15, 0
      %p108 = por %p106, %p107
      %p109 = scmp.ne.s32.totalorder %s98, %s101
      %p110 = scmp.eq.s32.totalorder %s20, 1
      %p111 = por %p109, %p110
      %p112 = scmp.ne.s32.totalorder %s101, %s102
      %p113 = scmp.eq.s32.totalorder %s20, 0
      %p114 = por %p112, %p113
      %p115 = scmp.ne.s32.totalorder %s101, %s102
      %p116 = scmp.eq.s32.totalorder %s21, 1
      %p117 = por %p115, %p116
      %p119 = scmp.ne.s32.totalorder %s102, %s118
      %p120 = scmp.eq.s32.totalorder %s21, 0
      %p121 = por %p119, %p120
      %s123 = sadd.s32 %s122, 1
      %p126 = scmp.eq.s32.totalorder %s15, 1
      %p127 = scmp.ne.s32.totalorder %s122, %s124
      %p128 = scmp.eq.s32.totalorder %s15, 0
      %p129 = por %p127, %p128
      %p130 = scmp.ne.s32.totalorder %s122, %s124
      %p131 = scmp.eq.s32.totalorder %s20, 1
      %p132 = por %p130, %p131
      %p133 = scmp.ne.s32.totalorder %s124, %s125
      %p134 = scmp.eq.s32.totalorder %s20, 0
      %p135 = por %p133, %p134
      %p136 = scmp.ne.s32.totalorder %s124, %s125
      %p137 = scmp.eq.s32.totalorder %s21, 1
      %p138 = por %p136, %p137
      %p140 = scmp.ne.s32.totalorder %s125, %s139
      %p141 = scmp.eq.s32.totalorder %s21, 0
      %p142 = por %p140, %p141
      %s144 = sadd.s32 %s143, 1
      %p147 = scmp.eq.s32.totalorder %s15, 1
      %p148 = scmp.ne.s32.totalorder %s143, %s145
      %p149 = scmp.eq.s32.totalorder %s15, 0
      %p150 = por %p148, %p149
      %p151 = scmp.ne.s32.totalorder %s143, %s145
      %p152 = scmp.eq.s32.totalorder %s20, 1
      %p153 = por %p151, %p152
      %p154 = scmp.ne.s32.totalorder %s145, %s146
      %p155 = scmp.eq.s32.totalorder %s20, 0
      %p156 = por %p154, %p155
      %p157 = scmp.ne.s32.totalorder %s145, %s146
      %p158 = scmp.eq.s32.totalorder %s21, 1
      %p159 = por %p157, %p158
      %p161 = scmp.ne.s32.totalorder %s146, %s160
      %p162 = scmp.eq.s32.totalorder %s21, 0
      %p163 = por %p161, %p162
      %s165 = sadd.s32 %s164, 1
      %p168 = scmp.eq.s32.totalorder %s15, 1
      %p169 = scmp.ne.s32.totalorder %s164, %s166
      %p170 = scmp.eq.s32.totalorder %s15, 0
      %p171 = por %p169, %p170
      %p172 = scmp.ne.s32.totalorder %s164, %s166
      %p173 = scmp.eq.s32.totalorder %s20, 1
      %p174 = por %p172, %p173
      %p175 = scmp.ne.s32.totalorder %s166, %s167
      %p176 = scmp.eq.s32.totalorder %s20, 0
      %p177 = por %p175, %p176
      %p178 = scmp.ne.s32.totalorder %s166, %s167
      %p179 = scmp.eq.s32.totalorder %s21, 1
      %p180 = por %p178, %p179
      %p182 = scmp.ne.s32.totalorder %s167, %s181
      %p183 = scmp.eq.s32.totalorder %s21, 0
      %p184 = por %p182, %p183
      %s186 = sadd.s32 %s185, 1
      %p189 = scmp.eq.s32.totalorder %s15, 1
      %p190 = scmp.ne.s32.totalorder %s185, %s187
      %p191 = scmp.eq.s32.totalorder %s15, 0
      %p192 = por %p190, %p191
      %p193 = scmp.ne.s32.totalorder %s185, %s187
      %p194 = scmp.eq.s32.totalorder %s20, 1
      %p195 = por %p193, %p194
      %p196 = scmp.ne.s32.totalorder %s187, %s188
      %p197 = scmp.eq.s32.totalorder %s20, 0
      %p198 = por %p196, %p197
      %p199 = scmp.ne.s32.totalorder %s187, %s188
      %p200 = scmp.eq.s32.totalorder %s21, 1
      %p201 = por %p199, %p200
      %p203 = scmp.ne.s32.totalorder %s188, %s202
      %p204 = scmp.eq.s32.totalorder %s21, 0
      %p205 = por %p203, %p204
      %p206 = scmp.le.s32.totalorder 1, %s15
      %p207 = scmp.lt.s32.totalorder %s15, 3
      %p208 = pnand %p206, %p207
      %p209 = pneg %p208
      // Predicated region
      $region9: #{birnn_forward.3} parent=5 // pred_check
        _
      $region10: #{birnn_forward.3} parent=5 // pred_check_branch
        %211 = sbr.rel (%p208) target = $region12
      $region11: #{birnn_forward.3} parent=5 // pred_region
        %s212 = ssub.s32 %s15, 1
        // Predicated region
        $region13: #{birnn_forward.3} parent=11 // pred_check
          %p213 = pneg %p36
        $region14: #{birnn_forward.3} parent=11 // pred_check_branch
          %215 = sbr.rel (%p213) target = $region16
        $region15: #{birnn_forward.3} parent=11 // pred_region
          _
        $region16: #{birnn_forward.3} parent=11 // pred_fallthru
          _
        // Predicated region
        $region17: #{birnn_forward.3} parent=11 // pred_check
          %p216 = pneg %p135
        $region18: #{birnn_forward.3} parent=11 // pred_check_branch
          %218 = sbr.rel (%p216) target = $region20
        $region19: #{birnn_forward.3} parent=11 // pred_region
          _
        $region20: #{birnn_forward.3} parent=11 // pred_fallthru
          _
        // Predicated region
        $region21: #{birnn_forward.3} parent=11 // pred_check
          %p219 = pneg %p156
        $region22: #{birnn_forward.3} parent=11 // pred_check_branch
          %221 = sbr.rel (%p219) target = $region24
        $region23: #{birnn_forward.3} parent=11 // pred_region
          _
        $region24: #{birnn_forward.3} parent=11 // pred_fallthru
          _
      $region12: #{birnn_forward.3} parent=5 // pred_fallthru
        _
      %p222 = scmp.lt.s32.totalorder %s15, 2
      // Predicated region
      $region25: #{birnn_forward.3} parent=5 // pred_check
        %p223 = pneg %p222
      $region26: #{birnn_forward.3} parent=5 // pred_check_branch
        %225 = sbr.rel (%p223) target = $region28
      $region27: #{birnn_forward.3} parent=5 // pred_region
        // Predicated region
        $region29: #{birnn_forward.3} parent=27 // pred_check
          %p226 = pneg %p56
        $region30: #{birnn_forward.3} parent=27 // pred_check_branch
          %228 = sbr.rel (%p226) target = $region32
        $region31: #{birnn_forward.3} parent=27 // pred_region
          %p229 = scmp.lt.s32.totalorder %s15, 1
          %s230 = scalar_select %p229, %s15, 1
          %s231 = smul.addr %s230, 8
          %s232 = smul.addr %s231, 8
          %s233 = scalar_lea.vmem %s1, %s232
        $region32: #{birnn_forward.3} parent=27 // pred_fallthru
          _
        // Predicated region
        $region33: #{birnn_forward.3} parent=27 // pred_check
          %p234 = pneg %p82
        $region34: #{birnn_forward.3} parent=27 // pred_check_branch
          %236 = sbr.rel (%p234) target = $region36
        $region35: #{birnn_forward.3} parent=27 // pred_region
          %p237 = scmp.lt.s32.totalorder %s15, 1
          %s238 = scalar_select %p237, %s15, 1
          %s239 = smul.addr %s238, 4
          %s240 = smul.addr %s239, 8
          %s241 = scalar_lea.vmem %s2, %s240
        $region36: #{birnn_forward.3} parent=27 // pred_fallthru
          _
        // Predicated region
        $region37: #{birnn_forward.3} parent=27 // pred_check
          %p242 = pneg %p108
        $region38: #{birnn_forward.3} parent=27 // pred_check_branch
          %244 = sbr.rel (%p242) target = $region40
        $region39: #{birnn_forward.3} parent=27 // pred_region
          %p245 = scmp.lt.s32.totalorder %s15, 1
          %s246 = scalar_select %p245, %s15, 1
          %s247 = scalar_lea.vmem %s3, %s246
        $region40: #{birnn_forward.3} parent=27 // pred_fallthru
          _
      $region28: #{birnn_forward.3} parent=5 // pred_fallthru
        _
      %p248 = scmp.le.s32.totalorder 1, %s15
      %p249 = scmp.lt.s32.totalorder %s15, 3
      %p250 = pnand %p248, %p249
      %p251 = pneg %p250
      // Predicated region
      $region41: #{birnn_forward.3} parent=5 // pred_check
        _
      $region42: #{birnn_forward.3} parent=5 // pred_check_branch
        %253 = sbr.rel (%p250) target = $region44
      $region43: #{birnn_forward.3} parent=5 // pred_region
        %s254 = ssub.s32 %s15, 1
        %p255 = pneg %p36
        %p256 = pneg %p33
        %p257 = scmp.lt.s32.totalorder %s20, 1
        %s258 = scalar_select %p257, %s20, 1
        %s259 = smul.addr %s258, 8
        %s260 = smul.addr %s259, 8
        %s261 = scalar_lea.vmem %s1, %s260
        %p262 = pneg %p62
        %p263 = pneg %p59
        %p264 = scmp.lt.s32.totalorder %s20, 1
        %s265 = scalar_select %p264, %s20, 1
        %s266 = smul.addr %s265, 4
        %s267 = smul.addr %s266, 8
        %s268 = scalar_lea.vmem %s2, %s267
        %p269 = pneg %p88
        %p270 = pneg %p85
        %p271 = scmp.lt.s32.totalorder %s20, 1
        %s272 = scalar_select %p271, %s20, 1
        %s273 = scalar_lea.vmem %s3, %s272
        %p274 = pneg %p114
        %p275 = pneg %p111
        %p276 = pneg %p135
        %p277 = pneg %p132
        %p278 = pneg %p156
        %p279 = pneg %p153
        %p280 = pneg %p177
        %p281 = pneg %p174
        %p282 = pneg %p198
        %p283 = pneg %p195
        %p284 = scmp.lt.s32.totalorder %s20, 1
        %s285 = scalar_select %p284, %s20, 1
        %s286 = smul.addr %s285, 8
        %s287 = smul.addr %s286, 8
        %s288 = scalar_lea.vmem %s1, %s287
        %p289 = scmp.lt.s32.totalorder %s20, 1
        %s290 = scalar_select %p289, %s20, 1
        %s291 = smul.addr %s290, 4
        %s292 = smul.addr %s291, 8
        %s293 = scalar_lea.vmem %s2, %s292
        %p294 = scmp.lt.s32.totalorder %s20, 1
        %s295 = scalar_select %p294, %s20, 1
        %s296 = scalar_lea.vmem %s3, %s295
        %v297 = vld [vmem:[%s288] sm:$0xff]
        %v298 = vld [vmem:[%s288 + $0x8] sm:$0xff]
        %v299 = vld [vmem:[%s288 + $0x10] sm:$0xff]
        %v300 = vld [vmem:[%s288 + $0x18] sm:$0xff]
        %v301 = vld [vmem:[%s288 + $0x20] sm:$0xff]
        %v302 = vld [vmem:[%s288 + $0x28] sm:$0xff]
        %v303 = vld [vmem:[%s288 + $0x30] sm:$0xff]
        %v304 = vld [vmem:[%s288 + $0x38] sm:$0xff]
        %v305 = vld [vmem:[%s293] sm:$0xff]
        %v306 = vld [vmem:[%s293 + $0x8] sm:$0xff]
        %v307 = vld [vmem:[%s293 + $0x10] sm:$0xff]
        %v308 = vld [vmem:[%s293 + $0x18] sm:$0xff]
        %v309 = vld [vmem:[%s296] sm:$0x1]
        %p310 = scmp.eq.s32.totalorder %s20, 0
        // Predicated region
        $region45: #{birnn_forward.3} parent=43 // pred_check
          %p311 = pneg %p310
        $region46: #{birnn_forward.3} parent=43 // pred_check_branch
          %313 = sbr.rel (%p311) target = $region48
        $region47: #{birnn_forward.3} parent=43 // pred_region
          %v314 = vld [vmem:[%s0] sm:$0xff]
          %vm315 = vcmask 261120
          %v317 = vsel %vm315, 0.0, 0
          %319 = vmatpush.msra.mxu0 0.0
          %320 = vmatpush.msra.mxu0 0.0
          %321 = vmatpush.msra.mxu0 0.0
          %322 = vmatpush.msra.mxu0 0.0
          %323 = vmatpush.msra.mxu0 0.0
          %324 = vmatpush.msra.mxu0 0.0
          %325 = vmatpush.msra.mxu0 0.0
          %326 = vmatpush.msra.mxu0 0.0
          %327 = vmatpush.msra.mxu0 0.0
          %328 = vmatpush.msra.mxu0 0.0
          %329 = vmatpush.msra.mxu0 0.0
          %330 = vmatpush.msra.mxu0 0.0
          %331 = vmatpush.msra.mxu0 %v308
          %332 = vmatpush.msra.mxu0 %v307
          %333 = vmatpush.msra.mxu0 %v306
          %334 = vmatpush.msra.mxu0 %v305
          %335 = vmatmul.f32.gmra.mxu0 %v317
          %v336 = vpop.f32.mrf.mxu0
          %v337 = vadd.f32 0.0, %v336
          %338 = vdwg.mxu0
          %vm339 = vcmask 523264
          %v341 = vsel %vm339, %v314, 0
          %343 = vmatpush.msra.mxu0 0.0
          %344 = vmatpush.msra.mxu0 0.0
          %345 = vmatpush.msra.mxu0 0.0
          %346 = vmatpush.msra.mxu0 0.0
          %347 = vmatpush.msra.mxu0 0.0
          %348 = vmatpush.msra.mxu0 0.0
          %349 = vmatpush.msra.mxu0 0.0
          %350 = vmatpush.msra.mxu0 0.0
          %351 = vmatpush.msra.mxu0 %v304
          %352 = vmatpush.msra.mxu0 %v303
          %353 = vmatpush.msra.mxu0 %v302
          %354 = vmatpush.msra.mxu0 %v301
          %355 = vmatpush.msra.mxu0 %v300
          %356 = vmatpush.msra.mxu0 %v299
          %357 = vmatpush.msra.mxu0 %v298
          %358 = vmatpush.msra.mxu0 %v297
          %359 = vmatmul.f32.gmra.mxu0 %v341
          %v360 = vpop.f32.mrf.mxu0
          %v361 = vadd.f32 %v337, %v360
          %362 = vdwg.mxu0
          %v364 = vperm.slane %v309, 0
          %v366 = vadd.f32 %v361, %v364
          %v367 = vxor.u32 %v366, 2147483648
          %v368 = vmul.f32 %v367, 1.442695
          %v369 = vpow.pop %v368
          %v370 = vadd.f32 %v369, 1.0
          %v371 = vrcp.pop %v370
          %v372 = vmul.f32 %v370, %v371
          %v373 = vsub.f32 1.0, %v372
          %v374 = vmul.f32 %v371, %v373
          %v375 = vadd.f32 %v371, %v374
          %vm376 = vweird.f32 %v370
          %vm377 = vweird.f32 %v371
          %vm378 = vmor %vm376, %vm377
          %v379 = vsel %vm378, %v371, %v375
          %v380 = vand.u32 2147483647, %v370
          %vm381 = vcmp.eq.f32.partialorder %v380, 8.507059e+37
          %v382 = vand.u32 %v370, 2147483648
          %v383 = vor.u32 1.1754944e-38, %v382
          %v384 = vsel %vm381, %v383, %v379
          %v385 = vmul.f32 1.0, %v384
          %v386 = vtanh.pop %v366
          %v387 = vmul.f32 %v385, 0.0
          %389 = vrot.lane.b32.xlu0 %v386, 64
          %v390 = vpop.permute.xlu0 %389
          %v392 = vmul.f32 %v385, %v390
          %394 = vrot.lane.b32.xlu0 %v392, 32
          %v395 = vpop.permute.xlu0 %394
          %v397 = vadd.f32 %v387, %v395
          %v398 = vtanh.pop %v397
          %400 = vrot.lane.b32.xlu0 %v398, 64
          %v401 = vpop.permute.xlu0 %400
          %v403 = vmul.f32 %v385, %v401
          %405 = vrot.lane.b32.xlu0 %v403, 32
          %v406 = vpop.permute.xlu0 %405
          %408 = vst.msk [vmem:[#allocation2] sm:$0xff] %vm315, %v406
          %s409 = scalar_lea.vmem %s0, 8
          %v410 = vld [vmem:[%s409] sm:$0xff]
          %v411 = vsel %vm315, %v406, 0
          %413 = vmatpush.msra.mxu0 0.0
          %414 = vmatpush.msra.mxu0 0.0
          %415 = vmatpush.msra.mxu0 0.0
          %416 = vmatpush.msra.mxu0 0.0
          %417 = vmatpush.msra.mxu0 0.0
          %418 = vmatpush.msra.mxu0 0.0
          %419 = vmatpush.msra.mxu0 0.0
          %420 = vmatpush.msra.mxu0 0.0
          %421 = vmatpush.msra.mxu0 0.0
          %422 = vmatpush.msra.mxu0 0.0
          %423 = vmatpush.msra.mxu0 0.0
          %424 = vmatpush.msra.mxu0 0.0
          %425 = vmatpush.msra.mxu0 %v308
          %426 = vmatpush.msra.mxu0 %v307
          %427 = vmatpush.msra.mxu0 %v306
          %428 = vmatpush.msra.mxu0 %v305
          %429 = vmatmul.f32.gmra.mxu0 %v411
          %v430 = vpop.f32.mrf.mxu0
          %v431 = vadd.f32 0.0, %v430
          %432 = vdwg.mxu0
          %v434 = vsel %vm339, %v410, 0
          %436 = vmatpush.msra.mxu0 0.0
          %437 = vmatpush.msra.mxu0 0.0
          %438 = vmatpush.msra.mxu0 0.0
          %439 = vmatpush.msra.mxu0 0.0
          %440 = vmatpush.msra.mxu0 0.0
          %441 = vmatpush.msra.mxu0 0.0
          %442 = vmatpush.msra.mxu0 0.0
          %443 = vmatpush.msra.mxu0 0.0
          %444 = vmatpush.msra.mxu0 %v304
          %445 = vmatpush.msra.mxu0 %v303
          %446 = vmatpush.msra.mxu0 %v302
          %447 = vmatpush.msra.mxu0 %v301
          %448 = vmatpush.msra.mxu0 %v300
          %449 = vmatpush.msra.mxu0 %v299
          %450 = vmatpush.msra.mxu0 %v298
          %451 = vmatpush.msra.mxu0 %v297
          %452 = vmatmul.f32.gmra.mxu0 %v434
          %v453 = vpop.f32.mrf.mxu0
          %v454 = vadd.f32 %v431, %v453
          %455 = vdwg.mxu0
          %v456 = vadd.f32 %v454, %v364
          %v457 = vxor.u32 %v456, 2147483648
          %v458 = vmul.f32 %v457, 1.442695
          %v459 = vpow.pop %v458
          %v460 = vadd.f32 %v459, 1.0
          %v461 = vrcp.pop %v460
          %v462 = vmul.f32 %v460, %v461
          %v463 = vsub.f32 1.0, %v462
          %v464 = vmul.f32 %v461, %v463
          %v465 = vadd.f32 %v461, %v464
          %vm466 = vweird.f32 %v460
          %vm467 = vweird.f32 %v461
          %vm468 = vmor %vm466, %vm467
          %v469 = vsel %vm468, %v461, %v465
          %v470 = vand.u32 2147483647, %v460
          %vm471 = vcmp.eq.f32.partialorder %v470, 8.507059e+37
          %v472 = vand.u32 %v460, 2147483648
          %v473 = vor.u32 1.1754944e-38, %v472
          %v474 = vsel %vm471, %v473, %v469
          %v475 = vmul.f32 1.0, %v474
          %v476 = vtanh.pop %v456
          %v477 = vmul.f32 %v475, %v397
          %479 = vrot.lane.b32.xlu0 %v476, 64
          %v480 = vpop.permute.xlu0 %479
          %v482 = vmul.f32 %v475, %v480
          %484 = vrot.lane.b32.xlu0 %v482, 32
          %v485 = vpop.permute.xlu0 %484
          %v487 = vadd.f32 %v477, %v485
          %v488 = vtanh.pop %v487
          %490 = vrot.lane.b32.xlu0 %v488, 64
          %v491 = vpop.permute.xlu0 %490
          %v493 = vmul.f32 %v475, %v491
          %495 = vrot.lane.b32.xlu0 %v493, 32
          %v496 = vpop.permute.xlu0 %495
          %s498 = scalar_lea.vmem [#allocation2], 8
          %499 = vst.msk [vmem:[%s498] sm:$0xff] %vm315, %v496
          %s500 = scalar_lea.vmem %s0, 16
          %v501 = vld [vmem:[%s500] sm:$0xff]
          %v502 = vsel %vm315, %v496, 0
          %504 = vmatpush.msra.mxu0 0.0
          %505 = vmatpush.msra.mxu0 0.0
          %506 = vmatpush.msra.mxu0 0.0
          %507 = vmatpush.msra.mxu0 0.0
          %508 = vmatpush.msra.mxu0 0.0
          %509 = vmatpush.msra.mxu0 0.0
          %510 = vmatpush.msra.mxu0 0.0
          %511 = vmatpush.msra.mxu0 0.0
          %512 = vmatpush.msra.mxu0 0.0
          %513 = vmatpush.msra.mxu0 0.0
          %514 = vmatpush.msra.mxu0 0.0
          %515 = vmatpush.msra.mxu0 0.0
          %516 = vmatpush.msra.mxu0 %v308
          %517 = vmatpush.msra.mxu0 %v307
          %518 = vmatpush.msra.mxu0 %v306
          %519 = vmatpush.msra.mxu0 %v305
          %520 = vmatmul.f32.gmra.mxu0 %v502
          %v521 = vpop.f32.mrf.mxu0
          %v522 = vadd.f32 0.0, %v521
          %523 = vdwg.mxu0
          %v525 = vsel %vm339, %v501, 0
          %527 = vmatpush.msra.mxu0 0.0
          %528 = vmatpush.msra.mxu0 0.0
          %529 = vmatpush.msra.mxu0 0.0
          %530 = vmatpush.msra.mxu0 0.0
          %531 = vmatpush.msra.mxu0 0.0
          %532 = vmatpush.msra.mxu0 0.0
          %533 = vmatpush.msra.mxu0 0.0
          %534 = vmatpush.msra.mxu0 0.0
          %535 = vmatpush.msra.mxu0 %v304
          %536 = vmatpush.msra.mxu0 %v303
          %537 = vmatpush.msra.mxu0 %v302
          %538 = vmatpush.msra.mxu0 %v301
          %539 = vmatpush.msra.mxu0 %v300
          %540 = vmatpush.msra.mxu0 %v299
          %541 = vmatpush.msra.mxu0 %v298
          %542 = vmatpush.msra.mxu0 %v297
          %543 = vmatmul.f32.gmra.mxu0 %v525
          %v544 = vpop.f32.mrf.mxu0
          %v545 = vadd.f32 %v522, %v544
          %546 = vdwg.mxu0
          %v547 = vadd.f32 %v545, %v364
          %v548 = vxor.u32 %v547, 2147483648
          %v549 = vmul.f32 %v548, 1.442695
          %v550 = vpow.pop %v549
          %v551 = vadd.f32 %v550, 1.0
          %v552 = vrcp.pop %v551
          %v553 = vmul.f32 %v551, %v552
          %v554 = vsub.f32 1.0, %v553
          %v555 = vmul.f32 %v552, %v554
          %v556 = vadd.f32 %v552, %v555
          %vm557 = vweird.f32 %v551
          %vm558 = vweird.f32 %v552
          %vm559 = vmor %vm557, %vm558
          %v560 = vsel %vm559, %v552, %v556
          %v561 = vand.u32 2147483647, %v551
          %vm562 = vcmp.eq.f32.partialorder %v561, 8.507059e+37
          %v563 = vand.u32 %v551, 2147483648
          %v564 = vor.u32 1.1754944e-38, %v563
          %v565 = vsel %vm562, %v564, %v560
          %v566 = vmul.f32 1.0, %v565
          %v567 = vtanh.pop %v547
          %v568 = vmul.f32 %v566, %v487
          %570 = vrot.lane.b32.xlu0 %v567, 64
          %v571 = vpop.permute.xlu0 %570
          %v573 = vmul.f32 %v566, %v571
          %575 = vrot.lane.b32.xlu0 %v573, 32
          %v576 = vpop.permute.xlu0 %575
          %v578 = vadd.f32 %v568, %v576
          %v579 = vtanh.pop %v578
          %581 = vrot.lane.b32.xlu0 %v579, 64
          %v582 = vpop.permute.xlu0 %581
          %v584 = vmul.f32 %v566, %v582
          %586 = vrot.lane.b32.xlu0 %v584, 32
          %v587 = vpop.permute.xlu0 %586
          %s589 = scalar_lea.vmem [#allocation2], 16
          %590 = vst.msk [vmem:[%s589] sm:$0xff] %vm315, %v587
          %s591 = scalar_lea.vmem %s0, 24
          %v592 = vld [vmem:[%s591] sm:$0xff]
          %v593 = vsel %vm315, %v587, 0
          %595 = vmatpush.msra.mxu0 0.0
          %596 = vmatpush.msra.mxu0 0.0
          %597 = vmatpush.msra.mxu0 0.0
          %598 = vmatpush.msra.mxu0 0.0
          %599 = vmatpush.msra.mxu0 0.0
          %600 = vmatpush.msra.mxu0 0.0
          %601 = vmatpush.msra.mxu0 0.0
          %602 = vmatpush.msra.mxu0 0.0
          %603 = vmatpush.msra.mxu0 0.0
          %604 = vmatpush.msra.mxu0 0.0
          %605 = vmatpush.msra.mxu0 0.0
          %606 = vmatpush.msra.mxu0 0.0
          %607 = vmatpush.msra.mxu0 %v308
          %608 = vmatpush.msra.mxu0 %v307
          %609 = vmatpush.msra.mxu0 %v306
          %610 = vmatpush.msra.mxu0 %v305
          %611 = vmatmul.f32.gmra.mxu0 %v593
          %v612 = vpop.f32.mrf.mxu0
          %v613 = vadd.f32 0.0, %v612
          %614 = vdwg.mxu0
          %v616 = vsel %vm339, %v592, 0
          %618 = vmatpush.msra.mxu0 0.0
          %619 = vmatpush.msra.mxu0 0.0
          %620 = vmatpush.msra.mxu0 0.0
          %621 = vmatpush.msra.mxu0 0.0
          %622 = vmatpush.msra.mxu0 0.0
          %623 = vmatpush.msra.mxu0 0.0
          %624 = vmatpush.msra.mxu0 0.0
          %625 = vmatpush.msra.mxu0 0.0
          %626 = vmatpush.msra.mxu0 %v304
          %627 = vmatpush.msra.mxu0 %v303
          %628 = vmatpush.msra.mxu0 %v302
          %629 = vmatpush.msra.mxu0 %v301
          %630 = vmatpush.msra.mxu0 %v300
          %631 = vmatpush.msra.mxu0 %v299
          %632 = vmatpush.msra.mxu0 %v298
          %633 = vmatpush.msra.mxu0 %v297
          %634 = vmatmul.f32.gmra.mxu0 %v616
          %v635 = vpop.f32.mrf.mxu0
          %v636 = vadd.f32 %v613, %v635
          %637 = vdwg.mxu0
          %v638 = vadd.f32 %v636, %v364
          %v639 = vxor.u32 %v638, 2147483648
          %v640 = vmul.f32 %v639, 1.442695
          %v641 = vpow.pop %v640
          %v642 = vadd.f32 %v641, 1.0
          %v643 = vrcp.pop %v642
          %v644 = vmul.f32 %v642, %v643
          %v645 = vsub.f32 1.0, %v644
          %v646 = vmul.f32 %v643, %v645
          %v647 = vadd.f32 %v643, %v646
          %vm648 = vweird.f32 %v642
          %vm649 = vweird.f32 %v643
          %vm650 = vmor %vm648, %vm649
          %v651 = vsel %vm650, %v643, %v647
          %v652 = vand.u32 2147483647, %v642
          %vm653 = vcmp.eq.f32.partialorder %v652, 8.507059e+37
          %v654 = vand.u32 %v642, 2147483648
          %v655 = vor.u32 1.1754944e-38, %v654
          %v656 = vsel %vm653, %v655, %v651
          %v657 = vmul.f32 1.0, %v656
          %v658 = vtanh.pop %v638
          %v659 = vmul.f32 %v657, %v578
          %661 = vrot.lane.b32.xlu0 %v658, 64
          %v662 = vpop.permute.xlu0 %661
          %v664 = vmul.f32 %v657, %v662
          %666 = vrot.lane.b32.xlu0 %v664, 32
          %v667 = vpop.permute.xlu0 %666
          %v669 = vadd.f32 %v659, %v667
          %v670 = vtanh.pop %v669
          %672 = vrot.lane.b32.xlu0 %v670, 64
          %v673 = vpop.permute.xlu0 %672
          %v675 = vmul.f32 %v657, %v673
          %677 = vrot.lane.b32.xlu0 %v675, 32
          %v678 = vpop.permute.xlu0 %677
          %s680 = scalar_lea.vmem [#allocation2], 24
          %681 = vst.msk [vmem:[%s680] sm:$0xff] %vm315, %v678
          %s682 = scalar_lea.vmem %s0, 32
          %v683 = vld [vmem:[%s682] sm:$0xff]
          %v684 = vsel %vm315, %v678, 0
          %686 = vmatpush.msra.mxu0 0.0
          %687 = vmatpush.msra.mxu0 0.0
          %688 = vmatpush.msra.mxu0 0.0
          %689 = vmatpush.msra.mxu0 0.0
          %690 = vmatpush.msra.mxu0 0.0
          %691 = vmatpush.msra.mxu0 0.0
          %692 = vmatpush.msra.mxu0 0.0
          %693 = vmatpush.msra.mxu0 0.0
          %694 = vmatpush.msra.mxu0 0.0
          %695 = vmatpush.msra.mxu0 0.0
          %696 = vmatpush.msra.mxu0 0.0
          %697 = vmatpush.msra.mxu0 0.0
          %698 = vmatpush.msra.mxu0 %v308
          %699 = vmatpush.msra.mxu0 %v307
          %700 = vmatpush.msra.mxu0 %v306
          %701 = vmatpush.msra.mxu0 %v305
          %702 = vmatmul.f32.gmra.mxu0 %v684
          %v703 = vpop.f32.mrf.mxu0
          %v704 = vadd.f32 0.0, %v703
          %705 = vdwg.mxu0
          %v707 = vsel %vm339, %v683, 0
          %709 = vmatpush.msra.mxu0 0.0
          %710 = vmatpush.msra.mxu0 0.0
          %711 = vmatpush.msra.mxu0 0.0
          %712 = vmatpush.msra.mxu0 0.0
          %713 = vmatpush.msra.mxu0 0.0
          %714 = vmatpush.msra.mxu0 0.0
          %715 = vmatpush.msra.mxu0 0.0
          %716 = vmatpush.msra.mxu0 0.0
          %717 = vmatpush.msra.mxu0 %v304
          %718 = vmatpush.msra.mxu0 %v303
          %719 = vmatpush.msra.mxu0 %v302
          %720 = vmatpush.msra.mxu0 %v301
          %721 = vmatpush.msra.mxu0 %v300
          %722 = vmatpush.msra.mxu0 %v299
          %723 = vmatpush.msra.mxu0 %v298
          %724 = vmatpush.msra.mxu0 %v297
          %725 = vmatmul.f32.gmra.mxu0 %v707
          %v726 = vpop.f32.mrf.mxu0
          %v727 = vadd.f32 %v704, %v726
          %728 = vdwg.mxu0
          %v729 = vadd.f32 %v727, %v364
          %v730 = vxor.u32 %v729, 2147483648
          %v731 = vmul.f32 %v730, 1.442695
          %v732 = vpow.pop %v731
          %v733 = vadd.f32 %v732, 1.0
          %v734 = vrcp.pop %v733
          %v735 = vmul.f32 %v733, %v734
          %v736 = vsub.f32 1.0, %v735
          %v737 = vmul.f32 %v734, %v736
          %v738 = vadd.f32 %v734, %v737
          %vm739 = vweird.f32 %v733
          %vm740 = vweird.f32 %v734
          %vm741 = vmor %vm739, %vm740
          %v742 = vsel %vm741, %v734, %v738
          %v743 = vand.u32 2147483647, %v733
          %vm744 = vcmp.eq.f32.partialorder %v743, 8.507059e+37
          %v745 = vand.u32 %v733, 2147483648
          %v746 = vor.u32 1.1754944e-38, %v745
          %v747 = vsel %vm744, %v746, %v742
          %v748 = vmul.f32 1.0, %v747
          %v749 = vtanh.pop %v729
          %v750 = vmul.f32 %v748, %v669
          %752 = vrot.lane.b32.xlu0 %v749, 64
          %v753 = vpop.permute.xlu0 %752
          %v755 = vmul.f32 %v748, %v753
          %757 = vrot.lane.b32.xlu0 %v755, 32
          %v758 = vpop.permute.xlu0 %757
          %v760 = vadd.f32 %v750, %v758
          %v761 = vtanh.pop %v760
          %763 = vrot.lane.b32.xlu0 %v761, 64
          %v764 = vpop.permute.xlu0 %763
          %v766 = vmul.f32 %v748, %v764
          %768 = vrot.lane.b32.xlu0 %v766, 32
          %v769 = vpop.permute.xlu0 %768
          %s771 = scalar_lea.vmem [#allocation2], 32
          %772 = vst.msk [vmem:[%s771] sm:$0xff] %vm315, %v769
          %s773 = scalar_lea.vmem %s0, 40
          %v774 = vld [vmem:[%s773] sm:$0xff]
          %v775 = vsel %vm315, %v769, 0
          %777 = vmatpush.msra.mxu0 0.0
          %778 = vmatpush.msra.mxu0 0.0
          %779 = vmatpush.msra.mxu0 0.0
          %780 = vmatpush.msra.mxu0 0.0
          %781 = vmatpush.msra.mxu0 0.0
          %782 = vmatpush.msra.mxu0 0.0
          %783 = vmatpush.msra.mxu0 0.0
          %784 = vmatpush.msra.mxu0 0.0
          %785 = vmatpush.msra.mxu0 0.0
          %786 = vmatpush.msra.mxu0 0.0
          %787 = vmatpush.msra.mxu0 0.0
          %788 = vmatpush.msra.mxu0 0.0
          %789 = vmatpush.msra.mxu0 %v308
          %790 = vmatpush.msra.mxu0 %v307
          %791 = vmatpush.msra.mxu0 %v306
          %792 = vmatpush.msra.mxu0 %v305
          %793 = vmatmul.f32.gmra.mxu0 %v775
          %v794 = vpop.f32.mrf.mxu0
          %v795 = vadd.f32 0.0, %v794
          %796 = vdwg.mxu0
          %v798 = vsel %vm339, %v774, 0
          %800 = vmatpush.msra.mxu0 0.0
          %801 = vmatpush.msra.mxu0 0.0
          %802 = vmatpush.msra.mxu0 0.0
          %803 = vmatpush.msra.mxu0 0.0
          %804 = vmatpush.msra.mxu0 0.0
          %805 = vmatpush.msra.mxu0 0.0
          %806 = vmatpush.msra.mxu0 0.0
          %807 = vmatpush.msra.mxu0 0.0
          %808 = vmatpush.msra.mxu0 %v304
          %809 = vmatpush.msra.mxu0 %v303
          %810 = vmatpush.msra.mxu0 %v302
          %811 = vmatpush.msra.mxu0 %v301
          %812 = vmatpush.msra.mxu0 %v300
          %813 = vmatpush.msra.mxu0 %v299
          %814 = vmatpush.msra.mxu0 %v298
          %815 = vmatpush.msra.mxu0 %v297
          %816 = vmatmul.f32.gmra.mxu0 %v798
          %v817 = vpop.f32.mrf.mxu0
          %v818 = vadd.f32 %v795, %v817
          %819 = vdwg.mxu0
          %v820 = vadd.f32 %v818, %v364
          %v821 = vxor.u32 %v820, 2147483648
          %v822 = vmul.f32 %v821, 1.442695
          %v823 = vpow.pop %v822
          %v824 = vadd.f32 %v823, 1.0
          %v825 = vrcp.pop %v824
          %v826 = vmul.f32 %v824, %v825
          %v827 = vsub.f32 1.0, %v826
          %v828 = vmul.f32 %v825, %v827
          %v829 = vadd.f32 %v825, %v828
          %vm830 = vweird.f32 %v824
          %vm831 = vweird.f32 %v825
          %vm832 = vmor %vm830, %vm831
          %v833 = vsel %vm832, %v825, %v829
          %v834 = vand.u32 2147483647, %v824
          %vm835 = vcmp.eq.f32.partialorder %v834, 8.507059e+37
          %v836 = vand.u32 %v824, 2147483648
          %v837 = vor.u32 1.1754944e-38, %v836
          %v838 = vsel %vm835, %v837, %v833
          %v839 = vmul.f32 1.0, %v838
          %v840 = vtanh.pop %v820
          %v841 = vmul.f32 %v839, %v760
          %843 = vrot.lane.b32.xlu0 %v840, 64
          %v844 = vpop.permute.xlu0 %843
          %v846 = vmul.f32 %v839, %v844
          %848 = vrot.lane.b32.xlu0 %v846, 32
          %v849 = vpop.permute.xlu0 %848
          %v851 = vadd.f32 %v841, %v849
          %v852 = vtanh.pop %v851
          %854 = vrot.lane.b32.xlu0 %v852, 64
          %v855 = vpop.permute.xlu0 %854
          %v857 = vmul.f32 %v839, %v855
          %859 = vrot.lane.b32.xlu0 %v857, 32
          %v860 = vpop.permute.xlu0 %859
          %s862 = scalar_lea.vmem [#allocation2], 40
          %863 = vst.msk [vmem:[%s862] sm:$0xff] %vm315, %v860
          %s864 = scalar_lea.vmem %s0, 48
          %v865 = vld [vmem:[%s864] sm:$0xff]
          %v866 = vsel %vm315, %v860, 0
          %868 = vmatpush.msra.mxu0 0.0
          %869 = vmatpush.msra.mxu0 0.0
          %870 = vmatpush.msra.mxu0 0.0
          %871 = vmatpush.msra.mxu0 0.0
          %872 = vmatpush.msra.mxu0 0.0
          %873 = vmatpush.msra.mxu0 0.0
          %874 = vmatpush.msra.mxu0 0.0
          %875 = vmatpush.msra.mxu0 0.0
          %876 = vmatpush.msra.mxu0 0.0
          %877 = vmatpush.msra.mxu0 0.0
          %878 = vmatpush.msra.mxu0 0.0
          %879 = vmatpush.msra.mxu0 0.0
          %880 = vmatpush.msra.mxu0 %v308
          %881 = vmatpush.msra.mxu0 %v307
          %882 = vmatpush.msra.mxu0 %v306
          %883 = vmatpush.msra.mxu0 %v305
          %884 = vmatmul.f32.gmra.mxu0 %v866
          %v885 = vpop.f32.mrf.mxu0
          %v886 = vadd.f32 0.0, %v885
          %887 = vdwg.mxu0
          %v889 = vsel %vm339, %v865, 0
          %891 = vmatpush.msra.mxu0 0.0
          %892 = vmatpush.msra.mxu0 0.0
          %893 = vmatpush.msra.mxu0 0.0
          %894 = vmatpush.msra.mxu0 0.0
          %895 = vmatpush.msra.mxu0 0.0
          %896 = vmatpush.msra.mxu0 0.0
          %897 = vmatpush.msra.mxu0 0.0
          %898 = vmatpush.msra.mxu0 0.0
          %899 = vmatpush.msra.mxu0 %v304
          %900 = vmatpush.msra.mxu0 %v303
          %901 = vmatpush.msra.mxu0 %v302
          %902 = vmatpush.msra.mxu0 %v301
          %903 = vmatpush.msra.mxu0 %v300
          %904 = vmatpush.msra.mxu0 %v299
          %905 = vmatpush.msra.mxu0 %v298
          %906 = vmatpush.msra.mxu0 %v297
          %907 = vmatmul.f32.gmra.mxu0 %v889
          %v908 = vpop.f32.mrf.mxu0
          %v909 = vadd.f32 %v886, %v908
          %910 = vdwg.mxu0
          %v911 = vadd.f32 %v909, %v364
          %v912 = vxor.u32 %v911, 2147483648
          %v913 = vmul.f32 %v912, 1.442695
          %v914 = vpow.pop %v913
          %v915 = vadd.f32 %v914, 1.0
          %v916 = vrcp.pop %v915
          %v917 = vmul.f32 %v915, %v916
          %v918 = vsub.f32 1.0, %v917
          %v919 = vmul.f32 %v916, %v918
          %v920 = vadd.f32 %v916, %v919
          %vm921 = vweird.f32 %v915
          %vm922 = vweird.f32 %v916
          %vm923 = vmor %vm921, %vm922
          %v924 = vsel %vm923, %v916, %v920
          %v925 = vand.u32 2147483647, %v915
          %vm926 = vcmp.eq.f32.partialorder %v925, 8.507059e+37
          %v927 = vand.u32 %v915, 2147483648
          %v928 = vor.u32 1.1754944e-38, %v927
          %v929 = vsel %vm926, %v928, %v924
          %v930 = vmul.f32 1.0, %v929
          %v931 = vtanh.pop %v911
          %v932 = vmul.f32 %v930, %v851
          %934 = vrot.lane.b32.xlu0 %v931, 64
          %v935 = vpop.permute.xlu0 %934
          %v937 = vmul.f32 %v930, %v935
          %939 = vrot.lane.b32.xlu0 %v937, 32
          %v940 = vpop.permute.xlu0 %939
          %v942 = vadd.f32 %v932, %v940
          %v943 = vtanh.pop %v942
          %945 = vrot.lane.b32.xlu0 %v943, 64
          %v946 = vpop.permute.xlu0 %945
          %v948 = vmul.f32 %v930, %v946
          %950 = vrot.lane.b32.xlu0 %v948, 32
          %v951 = vpop.permute.xlu0 %950
          %s953 = scalar_lea.vmem [#allocation2], 48
          %954 = vst.msk [vmem:[%s953] sm:$0xff] %vm315, %v951
          %s955 = scalar_lea.vmem %s0, 56
          %v956 = vld [vmem:[%s955] sm:$0xff]
          %v957 = vsel %vm315, %v951, 0
          %959 = vmatpush.msra.mxu0 0.0
          %960 = vmatpush.msra.mxu0 0.0
          %961 = vmatpush.msra.mxu0 0.0
          %962 = vmatpush.msra.mxu0 0.0
          %963 = vmatpush.msra.mxu0 0.0
          %964 = vmatpush.msra.mxu0 0.0
          %965 = vmatpush.msra.mxu0 0.0
          %966 = vmatpush.msra.mxu0 0.0
          %967 = vmatpush.msra.mxu0 0.0
          %968 = vmatpush.msra.mxu0 0.0
          %969 = vmatpush.msra.mxu0 0.0
          %970 = vmatpush.msra.mxu0 0.0
          %971 = vmatpush.msra.mxu0 %v308
          %972 = vmatpush.msra.mxu0 %v307
          %973 = vmatpush.msra.mxu0 %v306
          %974 = vmatpush.msra.mxu0 %v305
          %975 = vmatmul.f32.gmra.mxu0 %v957
          %v976 = vpop.f32.mrf.mxu0
          %v977 = vadd.f32 0.0, %v976
          %978 = vdwg.mxu0
          %v980 = vsel %vm339, %v956, 0
          %982 = vmatpush.msra.mxu0 0.0
          %983 = vmatpush.msra.mxu0 0.0
          %984 = vmatpush.msra.mxu0 0.0
          %985 = vmatpush.msra.mxu0 0.0
          %986 = vmatpush.msra.mxu0 0.0
          %987 = vmatpush.msra.mxu0 0.0
          %988 = vmatpush.msra.mxu0 0.0
          %989 = vmatpush.msra.mxu0 0.0
          %990 = vmatpush.msra.mxu0 %v304
          %991 = vmatpush.msra.mxu0 %v303
          %992 = vmatpush.msra.mxu0 %v302
          %993 = vmatpush.msra.mxu0 %v301
          %994 = vmatpush.msra.mxu0 %v300
          %995 = vmatpush.msra.mxu0 %v299
          %996 = vmatpush.msra.mxu0 %v298
          %997 = vmatpush.msra.mxu0 %v297
          %998 = vmatmul.f32.gmra.mxu0 %v980
          %v999 = vpop.f32.mrf.mxu0
          %v1000 = vadd.f32 %v977, %v999
          %1001 = vdwg.mxu0
          %v1002 = vadd.f32 %v1000, %v364
          %v1003 = vxor.u32 %v1002, 2147483648
          %v1004 = vmul.f32 %v1003, 1.442695
          %v1005 = vpow.pop %v1004
          %v1006 = vadd.f32 %v1005, 1.0
          %v1007 = vrcp.pop %v1006
          %v1008 = vmul.f32 %v1006, %v1007
          %v1009 = vsub.f32 1.0, %v1008
          %v1010 = vmul.f32 %v1007, %v1009
          %v1011 = vadd.f32 %v1007, %v1010
          %vm1012 = vweird.f32 %v1006
          %vm1013 = vweird.f32 %v1007
          %vm1014 = vmor %vm1012, %vm1013
          %v1015 = vsel %vm1014, %v1007, %v1011
          %v1016 = vand.u32 2147483647, %v1006
          %vm1017 = vcmp.eq.f32.partialorder %v1016, 8.507059e+37
          %v1018 = vand.u32 %v1006, 2147483648
          %v1019 = vor.u32 1.1754944e-38, %v1018
          %v1020 = vsel %vm1017, %v1019, %v1015
          %v1021 = vmul.f32 1.0, %v1020
          %v1022 = vtanh.pop %v1002
          %v1023 = vmul.f32 %v1021, %v942
          %1025 = vrot.lane.b32.xlu0 %v1022, 64
          %v1026 = vpop.permute.xlu0 %1025
          %v1028 = vmul.f32 %v1021, %v1026
          %1030 = vrot.lane.b32.xlu0 %v1028, 32
          %v1031 = vpop.permute.xlu0 %1030
          %v1033 = vadd.f32 %v1023, %v1031
          %v1034 = vtanh.pop %v1033
          %1036 = vrot.lane.b32.xlu0 %v1034, 64
          %v1037 = vpop.permute.xlu0 %1036
          %v1039 = vmul.f32 %v1021, %v1037
          %1041 = vrot.lane.b32.xlu0 %v1039, 32
          %v1042 = vpop.permute.xlu0 %1041
          %s1044 = scalar_lea.vmem [#allocation2], 56
          %1045 = vst.msk [vmem:[%s1044] sm:$0xff] %vm315, %v1042
        $region48: #{birnn_forward.3} parent=43 // pred_fallthru
          _
        %p1046 = scmp.eq.s32.totalorder %s20, 1
        // Predicated region
        $region49: #{birnn_forward.3} parent=43 // pred_check
          %p1047 = pneg %p1046
        $region50: #{birnn_forward.3} parent=43 // pred_check_branch
          %1049 = sbr.rel (%p1047) target = $region52
        $region51: #{birnn_forward.3} parent=43 // pred_region
          %s1050 = scalar_lea.vmem %s0, 56
          %v1051 = vld [vmem:[%s1050] sm:$0xff]
          %vm1052 = vcmask 261120
          %v1054 = vsel %vm1052, 0.0, 0
          %1056 = vmatpush.msra.mxu0 0.0
          %1057 = vmatpush.msra.mxu0 0.0
          %1058 = vmatpush.msra.mxu0 0.0
          %1059 = vmatpush.msra.mxu0 0.0
          %1060 = vmatpush.msra.mxu0 0.0
          %1061 = vmatpush.msra.mxu0 0.0
          %1062 = vmatpush.msra.mxu0 0.0
          %1063 = vmatpush.msra.mxu0 0.0
          %1064 = vmatpush.msra.mxu0 0.0
          %1065 = vmatpush.msra.mxu0 0.0
          %1066 = vmatpush.msra.mxu0 0.0
          %1067 = vmatpush.msra.mxu0 0.0
          %1068 = vmatpush.msra.mxu0 %v308
          %1069 = vmatpush.msra.mxu0 %v307
          %1070 = vmatpush.msra.mxu0 %v306
          %1071 = vmatpush.msra.mxu0 %v305
          %1072 = vmatmul.f32.gmra.mxu0 %v1054
          %v1073 = vpop.f32.mrf.mxu0
          %v1074 = vadd.f32 0.0, %v1073
          %1075 = vdwg.mxu0
          %vm1076 = vcmask 523264
          %v1078 = vsel %vm1076, %v1051, 0
          %1080 = vmatpush.msra.mxu0 0.0
          %1081 = vmatpush.msra.mxu0 0.0
          %1082 = vmatpush.msra.mxu0 0.0
          %1083 = vmatpush.msra.mxu0 0.0
          %1084 = vmatpush.msra.mxu0 0.0
          %1085 = vmatpush.msra.mxu0 0.0
          %1086 = vmatpush.msra.mxu0 0.0
          %1087 = vmatpush.msra.mxu0 0.0
          %1088 = vmatpush.msra.mxu0 %v304
          %1089 = vmatpush.msra.mxu0 %v303
          %1090 = vmatpush.msra.mxu0 %v302
          %1091 = vmatpush.msra.mxu0 %v301
          %1092 = vmatpush.msra.mxu0 %v300
          %1093 = vmatpush.msra.mxu0 %v299
          %1094 = vmatpush.msra.mxu0 %v298
          %1095 = vmatpush.msra.mxu0 %v297
          %1096 = vmatmul.f32.gmra.mxu0 %v1078
          %v1097 = vpop.f32.mrf.mxu0
          %v1098 = vadd.f32 %v1074, %v1097
          %1099 = vdwg.mxu0
          %v1101 = vperm.slane %v309, 0
          %v1103 = vadd.f32 %v1098, %v1101
          %v1104 = vxor.u32 %v1103, 2147483648
          %v1105 = vmul.f32 %v1104, 1.442695
          %v1106 = vpow.pop %v1105
          %v1107 = vadd.f32 %v1106, 1.0
          %v1108 = vrcp.pop %v1107
          %v1109 = vmul.f32 %v1107, %v1108
          %v1110 = vsub.f32 1.0, %v1109
          %v1111 = vmul.f32 %v1108, %v1110
          %v1112 = vadd.f32 %v1108, %v1111
          %vm1113 = vweird.f32 %v1107
          %vm1114 = vweird.f32 %v1108
          %vm1115 = vmor %vm1113, %vm1114
          %v1116 = vsel %vm1115, %v1108, %v1112
          %v1117 = vand.u32 2147483647, %v1107
          %vm1118 = vcmp.eq.f32.partialorder %v1117, 8.507059e+37
          %v1119 = vand.u32 %v1107, 2147483648
          %v1120 = vor.u32 1.1754944e-38, %v1119
          %v1121 = vsel %vm1118, %v1120, %v1116
          %v1122 = vmul.f32 1.0, %v1121
          %v1123 = vtanh.pop %v1103
          %v1124 = vmul.f32 %v1122, 0.0
          %1126 = vrot.lane.b32.xlu0 %v1123, 64
          %v1127 = vpop.permute.xlu0 %1126
          %v1129 = vmul.f32 %v1122, %v1127
          %1131 = vrot.lane.b32.xlu0 %v1129, 32
          %v1132 = vpop.permute.xlu0 %1131
          %v1134 = vadd.f32 %v1124, %v1132
          %v1135 = vtanh.pop %v1134
          %1137 = vrot.lane.b32.xlu0 %v1135, 64
          %v1138 = vpop.permute.xlu0 %1137
          %v1140 = vmul.f32 %v1122, %v1138
          %1142 = vrot.lane.b32.xlu0 %v1140, 64
          %v1143 = vpop.permute.xlu0 %1142
          %s1145 = scalar_lea.vmem [#allocation2], 56
          %vm1146 = vcmask 523520
          %1147 = vst.msk [vmem:[%s1145] sm:$0xff] %vm1146, %v1143
          %s1148 = scalar_lea.vmem %s0, 48
          %v1149 = vld [vmem:[%s1148] sm:$0xff]
          %1150 = vrot.lane.b32.xlu0 %v1140, 32
          %v1151 = vpop.permute.xlu0 %1150
          %v1152 = vsel %vm1052, %v1151, 0
          %1154 = vmatpush.msra.mxu0 0.0
          %1155 = vmatpush.msra.mxu0 0.0
          %1156 = vmatpush.msra.mxu0 0.0
          %1157 = vmatpush.msra.mxu0 0.0
          %1158 = vmatpush.msra.mxu0 0.0
          %1159 = vmatpush.msra.mxu0 0.0
          %1160 = vmatpush.msra.mxu0 0.0
          %1161 = vmatpush.msra.mxu0 0.0
          %1162 = vmatpush.msra.mxu0 0.0
          %1163 = vmatpush.msra.mxu0 0.0
          %1164 = vmatpush.msra.mxu0 0.0
          %1165 = vmatpush.msra.mxu0 0.0
          %1166 = vmatpush.msra.mxu0 %v308
          %1167 = vmatpush.msra.mxu0 %v307
          %1168 = vmatpush.msra.mxu0 %v306
          %1169 = vmatpush.msra.mxu0 %v305
          %1170 = vmatmul.f32.gmra.mxu0 %v1152
          %v1171 = vpop.f32.mrf.mxu0
          %v1172 = vadd.f32 0.0, %v1171
          %1173 = vdwg.mxu0
          %v1175 = vsel %vm1076, %v1149, 0
          %1177 = vmatpush.msra.mxu0 0.0
          %1178 = vmatpush.msra.mxu0 0.0
          %1179 = vmatpush.msra.mxu0 0.0
          %1180 = vmatpush.msra.mxu0 0.0
          %1181 = vmatpush.msra.mxu0 0.0
          %1182 = vmatpush.msra.mxu0 0.0
          %1183 = vmatpush.msra.mxu0 0.0
          %1184 = vmatpush.msra.mxu0 0.0
          %1185 = vmatpush.msra.mxu0 %v304
          %1186 = vmatpush.msra.mxu0 %v303
          %1187 = vmatpush.msra.mxu0 %v302
          %1188 = vmatpush.msra.mxu0 %v301
          %1189 = vmatpush.msra.mxu0 %v300
          %1190 = vmatpush.msra.mxu0 %v299
          %1191 = vmatpush.msra.mxu0 %v298
          %1192 = vmatpush.msra.mxu0 %v297
          %1193 = vmatmul.f32.gmra.mxu0 %v1175
          %v1194 = vpop.f32.mrf.mxu0
          %v1195 = vadd.f32 %v1172, %v1194
          %1196 = vdwg.mxu0
          %v1197 = vadd.f32 %v1195, %v1101
          %v1198 = vxor.u32 %v1197, 2147483648
          %v1199 = vmul.f32 %v1198, 1.442695
          %v1200 = vpow.pop %v1199
          %v1201 = vadd.f32 %v1200, 1.0
          %v1202 = vrcp.pop %v1201
          %v1203 = vmul.f32 %v1201, %v1202
          %v1204 = vsub.f32 1.0, %v1203
          %v1205 = vmul.f32 %v1202, %v1204
          %v1206 = vadd.f32 %v1202, %v1205
          %vm1207 = vweird.f32 %v1201
          %vm1208 = vweird.f32 %v1202
          %vm1209 = vmor %vm1207, %vm1208
          %v1210 = vsel %vm1209, %v1202, %v1206
          %v1211 = vand.u32 2147483647, %v1201
          %vm1212 = vcmp.eq.f32.partialorder %v1211, 8.507059e+37
          %v1213 = vand.u32 %v1201, 2147483648
          %v1214 = vor.u32 1.1754944e-38, %v1213
          %v1215 = vsel %vm1212, %v1214, %v1210
          %v1216 = vmul.f32 1.0, %v1215
          %v1217 = vtanh.pop %v1197
          %v1218 = vmul.f32 %v1216, %v1134
          %1220 = vrot.lane.b32.xlu0 %v1217, 64
          %v1221 = vpop.permute.xlu0 %1220
          %v1223 = vmul.f32 %v1216, %v1221
          %1225 = vrot.lane.b32.xlu0 %v1223, 32
          %v1226 = vpop.permute.xlu0 %1225
          %v1228 = vadd.f32 %v1218, %v1226
          %v1229 = vtanh.pop %v1228
          %1231 = vrot.lane.b32.xlu0 %v1229, 64
          %v1232 = vpop.permute.xlu0 %1231
          %v1234 = vmul.f32 %v1216, %v1232
          %1236 = vrot.lane.b32.xlu0 %v1234, 64
          %v1237 = vpop.permute.xlu0 %1236
          %s1239 = scalar_lea.vmem [#allocation2], 48
          %1240 = vst.msk [vmem:[%s1239] sm:$0xff] %vm1146, %v1237
          %s1241 = scalar_lea.vmem %s0, 40
          %v1242 = vld [vmem:[%s1241] sm:$0xff]
          %1243 = vrot.lane.b32.xlu0 %v1234, 32
          %v1244 = vpop.permute.xlu0 %1243
          %v1245 = vsel %vm1052, %v1244, 0
          %1247 = vmatpush.msra.mxu0 0.0
          %1248 = vmatpush.msra.mxu0 0.0
          %1249 = vmatpush.msra.mxu0 0.0
          %1250 = vmatpush.msra.mxu0 0.0
          %1251 = vmatpush.msra.mxu0 0.0
          %1252 = vmatpush.msra.mxu0 0.0
          %1253 = vmatpush.msra.mxu0 0.0
          %1254 = vmatpush.msra.mxu0 0.0
          %1255 = vmatpush.msra.mxu0 0.0
          %1256 = vmatpush.msra.mxu0 0.0
          %1257 = vmatpush.msra.mxu0 0.0
          %1258 = vmatpush.msra.mxu0 0.0
          %1259 = vmatpush.msra.mxu0 %v308
          %1260 = vmatpush.msra.mxu0 %v307
          %1261 = vmatpush.msra.mxu0 %v306
          %1262 = vmatpush.msra.mxu0 %v305
          %1263 = vmatmul.f32.gmra.mxu0 %v1245
          %v1264 = vpop.f32.mrf.mxu0
          %v1265 = vadd.f32 0.0, %v1264
          %1266 = vdwg.mxu0
          %v1268 = vsel %vm1076, %v1242, 0
          %1270 = vmatpush.msra.mxu0 0.0
          %1271 = vmatpush.msra.mxu0 0.0
          %1272 = vmatpush.msra.mxu0 0.0
          %1273 = vmatpush.msra.mxu0 0.0
          %1274 = vmatpush.msra.mxu0 0.0
          %1275 = vmatpush.msra.mxu0 0.0
          %1276 = vmatpush.msra.mxu0 0.0
          %1277 = vmatpush.msra.mxu0 0.0
          %1278 = vmatpush.msra.mxu0 %v304
          %1279 = vmatpush.msra.mxu0 %v303
          %1280 = vmatpush.msra.mxu0 %v302
          %1281 = vmatpush.msra.mxu0 %v301
          %1282 = vmatpush.msra.mxu0 %v300
          %1283 = vmatpush.msra.mxu0 %v299
          %1284 = vmatpush.msra.mxu0 %v298
          %1285 = vmatpush.msra.mxu0 %v297
          %1286 = vmatmul.f32.gmra.mxu0 %v1268
          %v1287 = vpop.f32.mrf.mxu0
          %v1288 = vadd.f32 %v1265, %v1287
          %1289 = vdwg.mxu0
          %v1290 = vadd.f32 %v1288, %v1101
          %v1291 = vxor.u32 %v1290, 2147483648
          %v1292 = vmul.f32 %v1291, 1.442695
          %v1293 = vpow.pop %v1292
          %v1294 = vadd.f32 %v1293, 1.0
          %v1295 = vrcp.pop %v1294
          %v1296 = vmul.f32 %v1294, %v1295
          %v1297 = vsub.f32 1.0, %v1296
          %v1298 = vmul.f32 %v1295, %v1297
          %v1299 = vadd.f32 %v1295, %v1298
          %vm1300 = vweird.f32 %v1294
          %vm1301 = vweird.f32 %v1295
          %vm1302 = vmor %vm1300, %vm1301
          %v1303 = vsel %vm1302, %v1295, %v1299
          %v1304 = vand.u32 2147483647, %v1294
          %vm1305 = vcmp.eq.f32.partialorder %v1304, 8.507059e+37
          %v1306 = vand.u32 %v1294, 2147483648
          %v1307 = vor.u32 1.1754944e-38, %v1306
          %v1308 = vsel %vm1305, %v1307, %v1303
          %v1309 = vmul.f32 1.0, %v1308
          %v1310 = vtanh.pop %v1290
          %v1311 = vmul.f32 %v1309, %v1228
          %1313 = vrot.lane.b32.xlu0 %v1310, 64
          %v1314 = vpop.permute.xlu0 %1313
          %v1316 = vmul.f32 %v1309, %v1314
          %1318 = vrot.lane.b32.xlu0 %v1316, 32
          %v1319 = vpop.permute.xlu0 %1318
          %v1321 = vadd.f32 %v1311, %v1319
          %v1322 = vtanh.pop %v1321
          %1324 = vrot.lane.b32.xlu0 %v1322, 64
          %v1325 = vpop.permute.xlu0 %1324
          %v1327 = vmul.f32 %v1309, %v1325
          %1329 = vrot.lane.b32.xlu0 %v1327, 64
          %v1330 = vpop.permute.xlu0 %1329
          %s1332 = scalar_lea.vmem [#allocation2], 40
          %1333 = vst.msk [vmem:[%s1332] sm:$0xff] %vm1146, %v1330
          %s1334 = scalar_lea.vmem %s0, 32
          %v1335 = vld [vmem:[%s1334] sm:$0xff]
          %1336 = vrot.lane.b32.xlu0 %v1327, 32
          %v1337 = vpop.permute.xlu0 %1336
          %v1338 = vsel %vm1052, %v1337, 0
          %1340 = vmatpush.msra.mxu0 0.0
          %1341 = vmatpush.msra.mxu0 0.0
          %1342 = vmatpush.msra.mxu0 0.0
          %1343 = vmatpush.msra.mxu0 0.0
          %1344 = vmatpush.msra.mxu0 0.0
          %1345 = vmatpush.msra.mxu0 0.0
          %1346 = vmatpush.msra.mxu0 0.0
          %1347 = vmatpush.msra.mxu0 0.0
          %1348 = vmatpush.msra.mxu0 0.0
          %1349 = vmatpush.msra.mxu0 0.0
          %1350 = vmatpush.msra.mxu0 0.0
          %1351 = vmatpush.msra.mxu0 0.0
          %1352 = vmatpush.msra.mxu0 %v308
          %1353 = vmatpush.msra.mxu0 %v307
          %1354 = vmatpush.msra.mxu0 %v306
          %1355 = vmatpush.msra.mxu0 %v305
          %1356 = vmatmul.f32.gmra.mxu0 %v1338
          %v1357 = vpop.f32.mrf.mxu0
          %v1358 = vadd.f32 0.0, %v1357
          %1359 = vdwg.mxu0
          %v1361 = vsel %vm1076, %v1335, 0
          %1363 = vmatpush.msra.mxu0 0.0
          %1364 = vmatpush.msra.mxu0 0.0
          %1365 = vmatpush.msra.mxu0 0.0
          %1366 = vmatpush.msra.mxu0 0.0
          %1367 = vmatpush.msra.mxu0 0.0
          %1368 = vmatpush.msra.mxu0 0.0
          %1369 = vmatpush.msra.mxu0 0.0
          %1370 = vmatpush.msra.mxu0 0.0
          %1371 = vmatpush.msra.mxu0 %v304
          %1372 = vmatpush.msra.mxu0 %v303
          %1373 = vmatpush.msra.mxu0 %v302
          %1374 = vmatpush.msra.mxu0 %v301
          %1375 = vmatpush.msra.mxu0 %v300
          %1376 = vmatpush.msra.mxu0 %v299
          %1377 = vmatpush.msra.mxu0 %v298
          %1378 = vmatpush.msra.mxu0 %v297
          %1379 = vmatmul.f32.gmra.mxu0 %v1361
          %v1380 = vpop.f32.mrf.mxu0
          %v1381 = vadd.f32 %v1358, %v1380
          %1382 = vdwg.mxu0
          %v1383 = vadd.f32 %v1381, %v1101
          %v1384 = vxor.u32 %v1383, 2147483648
          %v1385 = vmul.f32 %v1384, 1.442695
          %v1386 = vpow.pop %v1385
          %v1387 = vadd.f32 %v1386, 1.0
          %v1388 = vrcp.pop %v1387
          %v1389 = vmul.f32 %v1387, %v1388
          %v1390 = vsub.f32 1.0, %v1389
          %v1391 = vmul.f32 %v1388, %v1390
          %v1392 = vadd.f32 %v1388, %v1391
          %vm1393 = vweird.f32 %v1387
          %vm1394 = vweird.f32 %v1388
          %vm1395 = vmor %vm1393, %vm1394
          %v1396 = vsel %vm1395, %v1388, %v1392
          %v1397 = vand.u32 2147483647, %v1387
          %vm1398 = vcmp.eq.f32.partialorder %v1397, 8.507059e+37
          %v1399 = vand.u32 %v1387, 2147483648
          %v1400 = vor.u32 1.1754944e-38, %v1399
          %v1401 = vsel %vm1398, %v1400, %v1396
          %v1402 = vmul.f32 1.0, %v1401
          %v1403 = vtanh.pop %v1383
          %v1404 = vmul.f32 %v1402, %v1321
          %1406 = vrot.lane.b32.xlu0 %v1403, 64
          %v1407 = vpop.permute.xlu0 %1406
          %v1409 = vmul.f32 %v1402, %v1407
          %1411 = vrot.lane.b32.xlu0 %v1409, 32
          %v1412 = vpop.permute.xlu0 %1411
          %v1414 = vadd.f32 %v1404, %v1412
          %v1415 = vtanh.pop %v1414
          %1417 = vrot.lane.b32.xlu0 %v1415, 64
          %v1418 = vpop.permute.xlu0 %1417
          %v1420 = vmul.f32 %v1402, %v1418
          %1422 = vrot.lane.b32.xlu0 %v1420, 64
          %v1423 = vpop.permute.xlu0 %1422
          %s1425 = scalar_lea.vmem [#allocation2], 32
          %1426 = vst.msk [vmem:[%s1425] sm:$0xff] %vm1146, %v1423
          %s1427 = scalar_lea.vmem %s0, 24
          %v1428 = vld [vmem:[%s1427] sm:$0xff]
          %1429 = vrot.lane.b32.xlu0 %v1420, 32
          %v1430 = vpop.permute.xlu0 %1429
          %v1431 = vsel %vm1052, %v1430, 0
          %1433 = vmatpush.msra.mxu0 0.0
          %1434 = vmatpush.msra.mxu0 0.0
          %1435 = vmatpush.msra.mxu0 0.0
          %1436 = vmatpush.msra.mxu0 0.0
          %1437 = vmatpush.msra.mxu0 0.0
          %1438 = vmatpush.msra.mxu0 0.0
          %1439 = vmatpush.msra.mxu0 0.0
          %1440 = vmatpush.msra.mxu0 0.0
          %1441 = vmatpush.msra.mxu0 0.0
          %1442 = vmatpush.msra.mxu0 0.0
          %1443 = vmatpush.msra.mxu0 0.0
          %1444 = vmatpush.msra.mxu0 0.0
          %1445 = vmatpush.msra.mxu0 %v308
          %1446 = vmatpush.msra.mxu0 %v307
          %1447 = vmatpush.msra.mxu0 %v306
          %1448 = vmatpush.msra.mxu0 %v305
          %1449 = vmatmul.f32.gmra.mxu0 %v1431
          %v1450 = vpop.f32.mrf.mxu0
          %v1451 = vadd.f32 0.0, %v1450
          %1452 = vdwg.mxu0
          %v1454 = vsel %vm1076, %v1428, 0
          %1456 = vmatpush.msra.mxu0 0.0
          %1457 = vmatpush.msra.mxu0 0.0
          %1458 = vmatpush.msra.mxu0 0.0
          %1459 = vmatpush.msra.mxu0 0.0
          %1460 = vmatpush.msra.mxu0 0.0
          %1461 = vmatpush.msra.mxu0 0.0
          %1462 = vmatpush.msra.mxu0 0.0
          %1463 = vmatpush.msra.mxu0 0.0
          %1464 = vmatpush.msra.mxu0 %v304
          %1465 = vmatpush.msra.mxu0 %v303
          %1466 = vmatpush.msra.mxu0 %v302
          %1467 = vmatpush.msra.mxu0 %v301
          %1468 = vmatpush.msra.mxu0 %v300
          %1469 = vmatpush.msra.mxu0 %v299
          %1470 = vmatpush.msra.mxu0 %v298
          %1471 = vmatpush.msra.mxu0 %v297
          %1472 = vmatmul.f32.gmra.mxu0 %v1454
          %v1473 = vpop.f32.mrf.mxu0
          %v1474 = vadd.f32 %v1451, %v1473
          %1475 = vdwg.mxu0
          %v1476 = vadd.f32 %v1474, %v1101
          %v1477 = vxor.u32 %v1476, 2147483648
          %v1478 = vmul.f32 %v1477, 1.442695
          %v1479 = vpow.pop %v1478
          %v1480 = vadd.f32 %v1479, 1.0
          %v1481 = vrcp.pop %v1480
          %v1482 = vmul.f32 %v1480, %v1481
          %v1483 = vsub.f32 1.0, %v1482
          %v1484 = vmul.f32 %v1481, %v1483
          %v1485 = vadd.f32 %v1481, %v1484
          %vm1486 = vweird.f32 %v1480
          %vm1487 = vweird.f32 %v1481
          %vm1488 = vmor %vm1486, %vm1487
          %v1489 = vsel %vm1488, %v1481, %v1485
          %v1490 = vand.u32 2147483647, %v1480
          %vm1491 = vcmp.eq.f32.partialorder %v1490, 8.507059e+37
          %v1492 = vand.u32 %v1480, 2147483648
          %v1493 = vor.u32 1.1754944e-38, %v1492
          %v1494 = vsel %vm1491, %v1493, %v1489
          %v1495 = vmul.f32 1.0, %v1494
          %v1496 = vtanh.pop %v1476
          %v1497 = vmul.f32 %v1495, %v1414
          %1499 = vrot.lane.b32.xlu0 %v1496, 64
          %v1500 = vpop.permute.xlu0 %1499
          %v1502 = vmul.f32 %v1495, %v1500
          %1504 = vrot.lane.b32.xlu0 %v1502, 32
          %v1505 = vpop.permute.xlu0 %1504
          %v1507 = vadd.f32 %v1497, %v1505
          %v1508 = vtanh.pop %v1507
          %1510 = vrot.lane.b32.xlu0 %v1508, 64
          %v1511 = vpop.permute.xlu0 %1510
          %v1513 = vmul.f32 %v1495, %v1511
          %1515 = vrot.lane.b32.xlu0 %v1513, 64
          %v1516 = vpop.permute.xlu0 %1515
          %s1518 = scalar_lea.vmem [#allocation2], 24
          %1519 = vst.msk [vmem:[%s1518] sm:$0xff] %vm1146, %v1516
          %s1520 = scalar_lea.vmem %s0, 16
          %v1521 = vld [vmem:[%s1520] sm:$0xff]
          %1522 = vrot.lane.b32.xlu0 %v1513, 32
          %v1523 = vpop.permute.xlu0 %1522
          %v1524 = vsel %vm1052, %v1523, 0
          %1526 = vmatpush.msra.mxu0 0.0
          %1527 = vmatpush.msra.mxu0 0.0
          %1528 = vmatpush.msra.mxu0 0.0
          %1529 = vmatpush.msra.mxu0 0.0
          %1530 = vmatpush.msra.mxu0 0.0
          %1531 = vmatpush.msra.mxu0 0.0
          %1532 = vmatpush.msra.mxu0 0.0
          %1533 = vmatpush.msra.mxu0 0.0
          %1534 = vmatpush.msra.mxu0 0.0
          %1535 = vmatpush.msra.mxu0 0.0
          %1536 = vmatpush.msra.mxu0 0.0
          %1537 = vmatpush.msra.mxu0 0.0
          %1538 = vmatpush.msra.mxu0 %v308
          %1539 = vmatpush.msra.mxu0 %v307
          %1540 = vmatpush.msra.mxu0 %v306
          %1541 = vmatpush.msra.mxu0 %v305
          %1542 = vmatmul.f32.gmra.mxu0 %v1524
          %v1543 = vpop.f32.mrf.mxu0
          %v1544 = vadd.f32 0.0, %v1543
          %1545 = vdwg.mxu0
          %v1547 = vsel %vm1076, %v1521, 0
          %1549 = vmatpush.msra.mxu0 0.0
          %1550 = vmatpush.msra.mxu0 0.0
          %1551 = vmatpush.msra.mxu0 0.0
          %1552 = vmatpush.msra.mxu0 0.0
          %1553 = vmatpush.msra.mxu0 0.0
          %1554 = vmatpush.msra.mxu0 0.0
          %1555 = vmatpush.msra.mxu0 0.0
          %1556 = vmatpush.msra.mxu0 0.0
          %1557 = vmatpush.msra.mxu0 %v304
          %1558 = vmatpush.msra.mxu0 %v303
          %1559 = vmatpush.msra.mxu0 %v302
          %1560 = vmatpush.msra.mxu0 %v301
          %1561 = vmatpush.msra.mxu0 %v300
          %1562 = vmatpush.msra.mxu0 %v299
          %1563 = vmatpush.msra.mxu0 %v298
          %1564 = vmatpush.msra.mxu0 %v297
          %1565 = vmatmul.f32.gmra.mxu0 %v1547
          %v1566 = vpop.f32.mrf.mxu0
          %v1567 = vadd.f32 %v1544, %v1566
          %1568 = vdwg.mxu0
          %v1569 = vadd.f32 %v1567, %v1101
          %v1570 = vxor.u32 %v1569, 2147483648
          %v1571 = vmul.f32 %v1570, 1.442695
          %v1572 = vpow.pop %v1571
          %v1573 = vadd.f32 %v1572, 1.0
          %v1574 = vrcp.pop %v1573
          %v1575 = vmul.f32 %v1573, %v1574
          %v1576 = vsub.f32 1.0, %v1575
          %v1577 = vmul.f32 %v1574, %v1576
          %v1578 = vadd.f32 %v1574, %v1577
          %vm1579 = vweird.f32 %v1573
          %vm1580 = vweird.f32 %v1574
          %vm1581 = vmor %vm1579, %vm1580
          %v1582 = vsel %vm1581, %v1574, %v1578
          %v1583 = vand.u32 2147483647, %v1573
          %vm1584 = vcmp.eq.f32.partialorder %v1583, 8.507059e+37
          %v1585 = vand.u32 %v1573, 2147483648
          %v1586 = vor.u32 1.1754944e-38, %v1585
          %v1587 = vsel %vm1584, %v1586, %v1582
          %v1588 = vmul.f32 1.0, %v1587
          %v1589 = vtanh.pop %v1569
          %v1590 = vmul.f32 %v1588, %v1507
          %1592 = vrot.lane.b32.xlu0 %v1589, 64
          %v1593 = vpop.permute.xlu0 %1592
          %v1595 = vmul.f32 %v1588, %v1593
          %1597 = vrot.lane.b32.xlu0 %v1595, 32
          %v1598 = vpop.permute.xlu0 %1597
          %v1600 = vadd.f32 %v1590, %v1598
          %v1601 = vtanh.pop %v1600
          %1603 = vrot.lane.b32.xlu0 %v1601, 64
          %v1604 = vpop.permute.xlu0 %1603
          %v1606 = vmul.f32 %v1588, %v1604
          %1608 = vrot.lane.b32.xlu0 %v1606, 64
          %v1609 = vpop.permute.xlu0 %1608
          %s1611 = scalar_lea.vmem [#allocation2], 16
          %1612 = vst.msk [vmem:[%s1611] sm:$0xff] %vm1146, %v1609
          %s1613 = scalar_lea.vmem %s0, 8
          %v1614 = vld [vmem:[%s1613] sm:$0xff]
          %1615 = vrot.lane.b32.xlu0 %v1606, 32
          %v1616 = vpop.permute.xlu0 %1615
          %v1617 = vsel %vm1052, %v1616, 0
          %1619 = vmatpush.msra.mxu0 0.0
          %1620 = vmatpush.msra.mxu0 0.0
          %1621 = vmatpush.msra.mxu0 0.0
          %1622 = vmatpush.msra.mxu0 0.0
          %1623 = vmatpush.msra.mxu0 0.0
          %1624 = vmatpush.msra.mxu0 0.0
          %1625 = vmatpush.msra.mxu0 0.0
          %1626 = vmatpush.msra.mxu0 0.0
          %1627 = vmatpush.msra.mxu0 0.0
          %1628 = vmatpush.msra.mxu0 0.0
          %1629 = vmatpush.msra.mxu0 0.0
          %1630 = vmatpush.msra.mxu0 0.0
          %1631 = vmatpush.msra.mxu0 %v308
          %1632 = vmatpush.msra.mxu0 %v307
          %1633 = vmatpush.msra.mxu0 %v306
          %1634 = vmatpush.msra.mxu0 %v305
          %1635 = vmatmul.f32.gmra.mxu0 %v1617
          %v1636 = vpop.f32.mrf.mxu0
          %v1637 = vadd.f32 0.0, %v1636
          %1638 = vdwg.mxu0
          %v1640 = vsel %vm1076, %v1614, 0
          %1642 = vmatpush.msra.mxu0 0.0
          %1643 = vmatpush.msra.mxu0 0.0
          %1644 = vmatpush.msra.mxu0 0.0
          %1645 = vmatpush.msra.mxu0 0.0
          %1646 = vmatpush.msra.mxu0 0.0
          %1647 = vmatpush.msra.mxu0 0.0
          %1648 = vmatpush.msra.mxu0 0.0
          %1649 = vmatpush.msra.mxu0 0.0
          %1650 = vmatpush.msra.mxu0 %v304
          %1651 = vmatpush.msra.mxu0 %v303
          %1652 = vmatpush.msra.mxu0 %v302
          %1653 = vmatpush.msra.mxu0 %v301
          %1654 = vmatpush.msra.mxu0 %v300
          %1655 = vmatpush.msra.mxu0 %v299
          %1656 = vmatpush.msra.mxu0 %v298
          %1657 = vmatpush.msra.mxu0 %v297
          %1658 = vmatmul.f32.gmra.mxu0 %v1640
          %v1659 = vpop.f32.mrf.mxu0
          %v1660 = vadd.f32 %v1637, %v1659
          %1661 = vdwg.mxu0
          %v1662 = vadd.f32 %v1660, %v1101
          %v1663 = vxor.u32 %v1662, 2147483648
          %v1664 = vmul.f32 %v1663, 1.442695
          %v1665 = vpow.pop %v1664
          %v1666 = vadd.f32 %v1665, 1.0
          %v1667 = vrcp.pop %v1666
          %v1668 = vmul.f32 %v1666, %v1667
          %v1669 = vsub.f32 1.0, %v1668
          %v1670 = vmul.f32 %v1667, %v1669
          %v1671 = vadd.f32 %v1667, %v1670
          %vm1672 = vweird.f32 %v1666
          %vm1673 = vweird.f32 %v1667
          %vm1674 = vmor %vm1672, %vm1673
          %v1675 = vsel %vm1674, %v1667, %v1671
          %v1676 = vand.u32 2147483647, %v1666
          %vm1677 = vcmp.eq.f32.partialorder %v1676, 8.507059e+37
          %v1678 = vand.u32 %v1666, 2147483648
          %v1679 = vor.u32 1.1754944e-38, %v1678
          %v1680 = vsel %vm1677, %v1679, %v1675
          %v1681 = vmul.f32 1.0, %v1680
          %v1682 = vtanh.pop %v1662
          %v1683 = vmul.f32 %v1681, %v1600
          %1685 = vrot.lane.b32.xlu0 %v1682, 64
          %v1686 = vpop.permute.xlu0 %1685
          %v1688 = vmul.f32 %v1681, %v1686
          %1690 = vrot.lane.b32.xlu0 %v1688, 32
          %v1691 = vpop.permute.xlu0 %1690
          %v1693 = vadd.f32 %v1683, %v1691
          %v1694 = vtanh.pop %v1693
          %1696 = vrot.lane.b32.xlu0 %v1694, 64
          %v1697 = vpop.permute.xlu0 %1696
          %v1699 = vmul.f32 %v1681, %v1697
          %1701 = vrot.lane.b32.xlu0 %v1699, 64
          %v1702 = vpop.permute.xlu0 %1701
          %s1704 = scalar_lea.vmem [#allocation2], 8
          %1705 = vst.msk [vmem:[%s1704] sm:$0xff] %vm1146, %v1702
          %v1706 = vld [vmem:[%s0] sm:$0xff]
          %1707 = vrot.lane.b32.xlu0 %v1699, 32
          %v1708 = vpop.permute.xlu0 %1707
          %v1709 = vsel %vm1052, %v1708, 0
          %1711 = vmatpush.msra.mxu0 0.0
          %1712 = vmatpush.msra.mxu0 0.0
          %1713 = vmatpush.msra.mxu0 0.0
          %1714 = vmatpush.msra.mxu0 0.0
          %1715 = vmatpush.msra.mxu0 0.0
          %1716 = vmatpush.msra.mxu0 0.0
          %1717 = vmatpush.msra.mxu0 0.0
          %1718 = vmatpush.msra.mxu0 0.0
          %1719 = vmatpush.msra.mxu0 0.0
          %1720 = vmatpush.msra.mxu0 0.0
          %1721 = vmatpush.msra.mxu0 0.0
          %1722 = vmatpush.msra.mxu0 0.0
          %1723 = vmatpush.msra.mxu0 %v308
          %1724 = vmatpush.msra.mxu0 %v307
          %1725 = vmatpush.msra.mxu0 %v306
          %1726 = vmatpush.msra.mxu0 %v305
          %1727 = vmatmul.f32.gmra.mxu0 %v1709
          %v1728 = vpop.f32.mrf.mxu0
          %v1729 = vadd.f32 0.0, %v1728
          %1730 = vdwg.mxu0
          %v1732 = vsel %vm1076, %v1706, 0
          %1734 = vmatpush.msra.mxu0 0.0
          %1735 = vmatpush.msra.mxu0 0.0
          %1736 = vmatpush.msra.mxu0 0.0
          %1737 = vmatpush.msra.mxu0 0.0
          %1738 = vmatpush.msra.mxu0 0.0
          %1739 = vmatpush.msra.mxu0 0.0
          %1740 = vmatpush.msra.mxu0 0.0
          %1741 = vmatpush.msra.mxu0 0.0
          %1742 = vmatpush.msra.mxu0 %v304
          %1743 = vmatpush.msra.mxu0 %v303
          %1744 = vmatpush.msra.mxu0 %v302
          %1745 = vmatpush.msra.mxu0 %v301
          %1746 = vmatpush.msra.mxu0 %v300
          %1747 = vmatpush.msra.mxu0 %v299
          %1748 = vmatpush.msra.mxu0 %v298
          %1749 = vmatpush.msra.mxu0 %v297
          %1750 = vmatmul.f32.gmra.mxu0 %v1732
          %v1751 = vpop.f32.mrf.mxu0
          %v1752 = vadd.f32 %v1729, %v1751
          %1753 = vdwg.mxu0
          %v1754 = vadd.f32 %v1752, %v1101
          %v1755 = vxor.u32 %v1754, 2147483648
          %v1756 = vmul.f32 %v1755, 1.442695
          %v1757 = vpow.pop %v1756
          %v1758 = vadd.f32 %v1757, 1.0
          %v1759 = vrcp.pop %v1758
          %v1760 = vmul.f32 %v1758, %v1759
          %v1761 = vsub.f32 1.0, %v1760
          %v1762 = vmul.f32 %v1759, %v1761
          %v1763 = vadd.f32 %v1759, %v1762
          %vm1764 = vweird.f32 %v1758
          %vm1765 = vweird.f32 %v1759
          %vm1766 = vmor %vm1764, %vm1765
          %v1767 = vsel %vm1766, %v1759, %v1763
          %v1768 = vand.u32 2147483647, %v1758
          %vm1769 = vcmp.eq.f32.partialorder %v1768, 8.507059e+37
          %v1770 = vand.u32 %v1758, 2147483648
          %v1771 = vor.u32 1.1754944e-38, %v1770
          %v1772 = vsel %vm1769, %v1771, %v1767
          %v1773 = vmul.f32 1.0, %v1772
          %v1774 = vtanh.pop %v1754
          %v1775 = vmul.f32 %v1773, %v1693
          %1777 = vrot.lane.b32.xlu0 %v1774, 64
          %v1778 = vpop.permute.xlu0 %1777
          %v1780 = vmul.f32 %v1773, %v1778
          %1782 = vrot.lane.b32.xlu0 %v1780, 32
          %v1783 = vpop.permute.xlu0 %1782
          %v1785 = vadd.f32 %v1775, %v1783
          %v1786 = vtanh.pop %v1785
          %1788 = vrot.lane.b32.xlu0 %v1786, 64
          %v1789 = vpop.permute.xlu0 %1788
          %v1791 = vmul.f32 %v1773, %v1789
          %1793 = vrot.lane.b32.xlu0 %v1791, 64
          %v1794 = vpop.permute.xlu0 %1793
          %1796 = vst.msk [vmem:[#allocation2] sm:$0xff] %vm1146, %v1794
          %v1797 = vld [vmem:[#allocation2] sm:$0xff]
          %v1798 = vld [vmem:[%s1145] sm:$0xff]
          %1800 = vrot.lane.b32.xlu0 %v1798, 64
          %v1801 = vpop.permute.xlu0 %1800
          %v1803 = vsel %vm1076, %v1797, %v1801
          %v1804 = vld [vmem:[%s4] sm:$0xff]
          %v1805 = vld [vmem:[%s4 + $0x8] sm:$0xff]
          %v1806 = vld [vmem:[%s4 + $0x10] sm:$0xff]
          %v1807 = vld [vmem:[%s4 + $0x18] sm:$0xff]
          %v1808 = vld [vmem:[%s4 + $0x20] sm:$0xff]
          %v1809 = vld [vmem:[%s4 + $0x28] sm:$0xff]
          %v1810 = vld [vmem:[%s4 + $0x30] sm:$0xff]
          %v1811 = vld [vmem:[%s4 + $0x38] sm:$0xff]
          %v1812 = vld [vmem:[%s4 + $0x40] sm:$0xff]
          %v1813 = vld [vmem:[%s4 + $0x48] sm:$0xff]
          %v1814 = vld [vmem:[%s4 + $0x50] sm:$0xff]
          %v1815 = vld [vmem:[%s4 + $0x58] sm:$0xff]
          %v1816 = vld [vmem:[%s4 + $0x60] sm:$0xff]
          %v1817 = vld [vmem:[%s4 + $0x68] sm:$0xff]
          %v1818 = vld [vmem:[%s4 + $0x70] sm:$0xff]
          %v1819 = vld [vmem:[%s4 + $0x78] sm:$0xff]
          %v1820 = vld [vmem:[%s5] sm:$0x1]
          %v1822 = vperm.slane %v1820, 0
          %1824 = vmatpush.msra.mxu0 %v1819
          %1825 = vmatpush.msra.mxu0 %v1818
          %1826 = vmatpush.msra.mxu0 %v1817
          %1827 = vmatpush.msra.mxu0 %v1816
          %1828 = vmatpush.msra.mxu0 %v1815
          %1829 = vmatpush.msra.mxu0 %v1814
          %1830 = vmatpush.msra.mxu0 %v1813
          %1831 = vmatpush.msra.mxu0 %v1812
          %1832 = vmatpush.msra.mxu0 %v1811
          %1833 = vmatpush.msra.mxu0 %v1810
          %1834 = vmatpush.msra.mxu0 %v1809
          %1835 = vmatpush.msra.mxu0 %v1808
          %1836 = vmatpush.msra.mxu0 %v1807
          %1837 = vmatpush.msra.mxu0 %v1806
          %1838 = vmatpush.msra.mxu0 %v1805
          %1839 = vmatpush.msra.mxu0 %v1804
          %1840 = vmatmul.f32.gmra.mxu0 %v1803
          %v1841 = vpop.f32.mrf.mxu0
          %v1842 = vadd.f32 %v1822, %v1841
          %1843 = vdwg.mxu0
          %vm1844 = vcmask 15360
          %1845 = vst.msk [vmem:[%s7] sm:$0xff] %vm1844, %v1842
        $region52: #{birnn_forward.3} parent=43 // pred_fallthru
          _
        // Predicated region
        $region53: #{birnn_forward.3} parent=43 // pred_check
          %p1846 = pneg %p174
        $region54: #{birnn_forward.3} parent=43 // pred_check_branch
          %1848 = sbr.rel (%p1846) target = $region56
        $region55: #{birnn_forward.3} parent=43 // pred_region
          %1850 = vsyncadd [#allocation3], 0
          %s1851 = sshll.u32 [#allocation2], 4
          %s1852 = int_to_ptr.vmem [resolvable:$true] %s1851
          %s1853 = sshll.u32 %s6, 4
          %s1854 = int_to_ptr.hbm [resolvable:$true] %s1853
          %1859 = dma.vmem_to_hbm [thread:$0]  %s1852, 1024, %s1854, [#allocation3], 128, 128, 8
        $region56: #{birnn_forward.3} parent=43 // pred_fallthru
          _
        // Predicated region
        $region57: #{birnn_forward.3} parent=43 // pred_check
          %p1860 = pneg %p195
        $region58: #{birnn_forward.3} parent=43 // pred_check_branch
          %1862 = sbr.rel (%p1860) target = $region60
        $region59: #{birnn_forward.3} parent=43 // pred_region
          _
        $region60: #{birnn_forward.3} parent=43 // pred_fallthru
          _
        // Predicated region
        $region61: #{birnn_forward.3} parent=43 // pred_check
          %p1863 = pneg %p174
        $region62: #{birnn_forward.3} parent=43 // pred_check_branch
          %1865 = sbr.rel (%p1863) target = $region64
        $region63: #{birnn_forward.3} parent=43 // pred_region
          %1867 = dma.done [#allocation3], 1024
        $region64: #{birnn_forward.3} parent=43 // pred_fallthru
          _
        // Predicated region
        $region65: #{birnn_forward.3} parent=43 // pred_check
          %p1868 = pneg %p195
        $region66: #{birnn_forward.3} parent=43 // pred_check_branch
          %1870 = sbr.rel (%p1868) target = $region68
        $region67: #{birnn_forward.3} parent=43 // pred_region
          _
        $region68: #{birnn_forward.3} parent=43 // pred_fallthru
          _
      $region44: #{birnn_forward.3} parent=5 // pred_fallthru
        _
      %p1871 = scmp.le.s32.totalorder 2, %s15
      // Predicated region
      $region69: #{birnn_forward.3} parent=5 // pred_check
        %p1872 = pneg %p1871
      $region70: #{birnn_forward.3} parent=5 // pred_check_branch
        %1874 = sbr.rel (%p1872) target = $region72
      $region71: #{birnn_forward.3} parent=5 // pred_region
        %s1875 = ssub.s32 %s15, 2
      $region72: #{birnn_forward.3} parent=5 // pred_fallthru
        _
    $region6: #{birnn_forward.3} parent=1 // loop_footer
      %s19 = sadd.s32 1, %s15
    $region7: #{birnn_forward.3} parent=1 // loop_footer_branch
      %14 = sbr.rel target = $region3
    $region8: #{birnn_forward.3} parent=1 // loop_exit
      _
    %1876 = vsyncpa [#allocation3], 1
    %s1877 = scalar_lea.sflag [#allocation3], 1
    %1878 = vsyncpa %s1877, 1

</llo_original>
